<compile_context>
chip_gen: v5e
topology: v5e:2x2
jax: 0.10.0
libtpu: 0.0.40
codegen_flags: <defaults>
</compile_context>

<pallas_src>
import jax
import jax.numpy as jnp
from jax import lax
from jax.experimental import pallas as pl
from jax.experimental.pallas import tpu as pltpu


# ----------------------------- Pallas kernel ---------------------------------
def _mode_mul_kernel(xr_ref, xi_ref, wr_ref, wi_ref, or_ref, oi_ref):
    # xr/xi : (Cin,  B,    MS_T, 128)
    # wr/wi : (Cin,  CO_T, MS_T, 128)
    # or/oi : (CO_T, B,    MS_T, 128)
    cin = xr_ref.shape[0]
    co_t, b, ms_t, ml = or_ref.shape

    def body(i, carry):
        acc_r, acc_i = carry
        xr = xr_ref[i][None, :, :, :]      # (1, B, MS_T, 128)    dense slab load
        xi = xi_ref[i][None, :, :, :]
        wr = wr_ref[i][:, None, :, :]      # (CO_T, 1, MS_T, 128) dense slab load
        wi = wi_ref[i][:, None, :, :]
        # complex MAC: (xr + j*xi) * (wr + j*wi), broadcast over (CO_T, B)
        acc_r = acc_r + (xr * wr - xi * wi)
        acc_i = acc_i + (xr * wi + xi * wr)
        return acc_r, acc_i

    zeros = jnp.zeros((co_t, b, ms_t, ml), jnp.float32)
    # Cap the unroll so code size stays bounded for large Cin, full unroll otherwise.
    unroll = cin if cin <= 16 else 8
    acc_r, acc_i = lax.fori_loop(0, cin, body, (zeros, zeros), unroll=unroll)
    or_ref[...] = acc_r                    # single dense store per output tile
    oi_ref[...] = acc_i


def mode_mul(xr, xi, wr, wi):
    """out[o,b,ms,ml] = sum_i x[i,b,ms,ml] * w[i,o,ms,ml]  (complex, real/imag split)."""
    cin, b, ms, ml = xr.shape
    cout = wr.shape[1]
    assert wr.shape == (cin, cout, ms, ml) and ml == 128

    # Mode tile: full MS if small, otherwise 8 sublanes (keeps acc + loads inside 64 vregs).
    ms_t = ms if ms <= 8 else 8
    assert ms % ms_t == 0
    # Cout tile: largest of (4, 2, 1) dividing Cout (bounds vreg pressure of the acc).
    co_t = 1
    for cand in (4, 2, 1):
        if cout % cand == 0:
            co_t = cand
            break

    # Cout tiles innermost -> the (larger) x tile DMA is reused across Cout tiles.
    grid = (ms // ms_t, cout // co_t)

    x_spec = pl.BlockSpec((cin, b, ms_t, ml), lambda m, c: (0, 0, m, 0))
    w_spec = pl.BlockSpec((cin, co_t, ms_t, ml), lambda m, c: (0, c, m, 0))
    o_spec = pl.BlockSpec((co_t, b, ms_t, ml), lambda m, c: (c, 0, m, 0))

    # VMEM budget: double-buffered r/i blocks of x, w, out (+ headroom), clamped to chip limits.
    block_bytes = 4 * ms_t * ml * (2 * cin * b + 2 * cin * co_t + 2 * co_t * b)
    vmem_limit = int(min(max(4 * block_bytes + (4 << 20), 32 << 20), 64 << 20))

    cost = pl.CostEstimate(
        flops=8 * b * cin * cout * ms * ml,
        transcendentals=0,
        bytes_accessed=4 * ms * ml * (2 * b * cin + 2 * cin * cout + 2 * b * cout),
    )

    return pl.pallas_call(
        _mode_mul_kernel,
        out_shape=(
            jax.ShapeDtypeStruct((cout, b, ms, ml), jnp.float32),
            jax.ShapeDtypeStruct((cout, b, ms, ml), jnp.float32),
        ),
        grid=grid,
        in_specs=[x_spec, x_spec, w_spec, w_spec],
        out_specs=(o_spec, o_spec),
        compiler_params=pltpu.CompilerParams(
            dimension_semantics=("parallel", "parallel"),
            vmem_limit_bytes=vmem_limit),
        cost_estimate=cost,
    )(xr, xi, wr, wi)


# ----------------------------- FourierLayer ----------------------------------
def _mode_layout(modesSpace, modesTime):
    """Flat mode count M and its (MS, 128) padded packing."""
    M = (2 * modesSpace) * (2 * modesSpace) * modesTime
    ML = 128
    MS = -(-M // ML)                       # cdiv
    if MS > 8:
        MS = -(-MS // 8) * 8               # round sublane count up to a multiple of 8
    return M, MS, ML, MS * ML


def _pack_modes(a, M, M_pad, MS, ML):
    """(..., M) -> (..., MS, ML), zero-padded along the mode axis."""
    if M_pad != M:
        a = jnp.pad(a, [(0, 0)] * (a.ndim - 1) + [(0, M_pad - M)])
    return a.reshape(a.shape[:-1] + (MS, ML))


class FourierLayerPallas:
    def __init__(self, in_neurons, out_neurons, modesSpace, modesTime,
                 scaling=True, key=jax.random.PRNGKey(42)):
        self.in_neurons = in_neurons
        self.out_neurons = out_neurons
        self.modesSpace = modesSpace
        self.modesTime = modesTime
        scale = 1.0 / (in_neurons * out_neurons) if scaling else 1.0
        wshape = (in_neurons, out_neurons, 2 * modesSpace, 2 * modesSpace, modesTime)
        kr, ki = jax.random.split(key)
        # torch.rand(..., dtype=cfloat): real and imag parts ~ U[0,1), scaled.
        self.w_r = (scale * jax.random.uniform(kr, wshape)).astype(jnp.float32)
        self.w_i = (scale * jax.random.uniform(ki, wshape)).astype(jnp.float32)

        # Pack weights into the TPU (Cin, Cout, MS, 128) layout once (layout plumbing
        # only; keeps the per-call graph free of weight reshuffles).
        M, MS, ML, M_pad = _mode_layout(modesSpace, modesTime)
        self._M, self._MS, self._ML, self._M_pad = M, MS, ML, M_pad
        self._wr_packed = _pack_modes(self.w_r.reshape(in_neurons, out_neurons, M),
                                      M, M_pad, MS, ML)
        self._wi_packed = _pack_modes(self.w_i.reshape(in_neurons, out_neurons, M),
                                      M, M_pad, MS, ML)

    def __call__(self, x):
        # x: (B, Cin, X, Y, T) real float32
        B, Cin, X, Y, T = x.shape
        ms, mt = self.modesSpace, self.modesTime
        Cout = self.out_neurons
        assert Cin == self.in_neurons
        assert 2 * ms <= X and 2 * ms <= Y and mt <= T // 2 + 1, "modes exceed transform size"

        # TODO(synk): rfftn/fftshift/irfftn have no Pallas equivalent; kept in jnp.fft.
        x_ft = jnp.fft.rfftn(x, axes=(-3, -2, -1))            # (B, Cin, X, Y, T//2+1) c64
        x_ft = jnp.fft.fftshift(x_ft, axes=(-3, -2))
        midX, midY = X // 2, Y // 2
        slab = x_ft[..., midX - ms:midX + ms, midY - ms:midY + ms, :mt]

        M, MS, ML, M_pad = self._M, self._MS, self._ML, self._M_pad

        # x -> (Cin, B, MS, ML)  (layout plumbing only, lane-dense slabs for the kernel)
        xr = _pack_modes(jnp.real(slab).astype(jnp.float32)
                         .transpose(1, 0, 2, 3, 4).reshape(Cin, B, M), M, M_pad, MS, ML)
        xi = _pack_modes(jnp.imag(slab).astype(jnp.float32)
                         .transpose(1, 0, 2, 3, 4).reshape(Cin, B, M), M, M_pad, MS, ML)

        out_r, out_i = mode_mul(xr, xi, self._wr_packed, self._wi_packed)  # Pallas hot path
        out_r = out_r.reshape(Cout, B, M_pad)[..., :M]
        out_i = out_i.reshape(Cout, B, M_pad)[..., :M]
        out_slab = (out_r + 1j * out_i).astype(jnp.complex64)
        out_slab = out_slab.transpose(1, 0, 2).reshape(B, Cout, 2 * ms, 2 * ms, mt)

        Tf = T // 2 + 1
        out_ft = jnp.zeros((B, Cout, X, Y, Tf), dtype=jnp.complex64)
        out_ft = out_ft.at[..., midX - ms:midX + ms,
                           midY - ms:midY + ms, :mt].set(out_slab)
        # reference applies fftshift (not ifftshift) again; replicated verbatim
        out_ft = jnp.fft.fftshift(out_ft, axes=(-3, -2))
        out = jnp.fft.irfftn(out_ft, s=(X, Y, T), axes=(-3, -2, -1))
        return out                                             # (B, Cout, X, Y, T) f32


# --------------------------------- main ---------------------------------------
if __name__ == "__main__":
    B, Cin, Cout = 2, 8, 8
    X, Y, T = 32, 32, 16
    modesSpace, modesTime = 8, 8       # M = 16*16*8 = 2048 -> MS=16, ML=128, grid=(2, 2)

    key = jax.random.PRNGKey(0)
    kx, kw = jax.random.split(key)
    x = jax.random.normal(kx, (B, Cin, X, Y, T), dtype=jnp.float32)

    layer = FourierLayerPallas(Cin, Cout, modesSpace, modesTime, scaling=True, key=kw)
    out = jax.block_until_ready(jax.jit(layer.__call__)(x))

    # reference: same pipeline with a pure-JAX complex einsum (HIGHEST precision)
    x_ft = jnp.fft.fftshift(jnp.fft.rfftn(x, axes=(-3, -2, -1)), axes=(-3, -2))
    midX, midY = X // 2, Y // 2
    slab = x_ft[..., midX - modesSpace:midX + modesSpace,
                midY - modesSpace:midY + modesSpace, :modesTime]
    w_c = layer.w_r + 1j * layer.w_i
    ref_slab = jnp.einsum('bixyt,ioxyt->boxyt', slab, w_c,
                          precision=jax.lax.Precision.HIGHEST)
    out_ft = jnp.zeros((B, Cout, X, Y, T // 2 + 1), dtype=jnp.complex64)
    out_ft = out_ft.at[..., midX - modesSpace:midX + modesSpace,
                       midY - modesSpace:midY + modesSpace, :modesTime].set(ref_slab)
    out_ft = jnp.fft.fftshift(out_ft, axes=(-3, -2))
    ref = jnp.fft.irfftn(out_ft, s=(X, Y, T), axes=(-3, -2, -1))

    assert out.shape == (B, Cout, X, Y, T) and out.dtype == jnp.float32
    err = float(jnp.max(jnp.abs(out - ref)))
    assert jnp.allclose(out, ref, atol=1e-4, rtol=1e-4), f"max abs err {err}"

    print("KERNEL_OK")
</pallas_src>

<mosaic_0001>
module attributes {stable_mosaic.version = 11 : i64} {
  func.func @_mode_mul_kernel(%arg0: i32, %arg1: i32, %arg2: memref<8x2x8x128xf32, #tpu.memory_space<vmem>>, %arg3: memref<8x2x8x128xf32, #tpu.memory_space<vmem>>, %arg4: memref<8x4x8x128xf32, #tpu.memory_space<vmem>>, %arg5: memref<8x4x8x128xf32, #tpu.memory_space<vmem>>, %arg6: memref<4x2x8x128xf32, #tpu.memory_space<vmem>>, %arg7: memref<4x2x8x128xf32, #tpu.memory_space<vmem>>) attributes {dimension_semantics = [#tpu.dimension_semantics<parallel>, #tpu.dimension_semantics<parallel>], iteration_bounds = array<i64: 2, 2>, scalar_prefetch = 0 : i64, scratch_operands = 0 : i64, tpu.core_type = #tpu.core_type<tc>, window_params = [{transform_indices = @transform_0, window_bounds = array<i64: 8, 2, 8, 128>}, {transform_indices = @transform_1, window_bounds = array<i64: 8, 2, 8, 128>}, {transform_indices = @transform_2, window_bounds = array<i64: 8, 4, 8, 128>}, {transform_indices = @transform_3, window_bounds = array<i64: 8, 4, 8, 128>}, {transform_indices = @transform_4, window_bounds = array<i64: 4, 2, 8, 128>}, {transform_indices = @transform_5, window_bounds = array<i64: 4, 2, 8, 128>}]} {
    %cst = arith.constant 0.000000e+00 : f32
    %0 = vector.broadcast %cst : f32 to vector<4x2x8x128xf32>
    %c0_i32 = arith.constant 0 : i32
    %1 = arith.index_cast %c0_i32 : i32 to index
    %c0 = arith.constant 0 : index
    %c0_0 = arith.constant 0 : index
    %c0_1 = arith.constant 0 : index
    %2 = vector.load %arg2[%1, %c0, %c0_0, %c0_1] : memref<8x2x8x128xf32, #tpu.memory_space<vmem>>, vector<1x2x8x128xf32>
    %3 = vector.shape_cast %2 : vector<1x2x8x128xf32> to vector<2x8x128xf32>
    %4 = vector.shape_cast %3 : vector<2x8x128xf32> to vector<1x2x8x128xf32>
    %5 = arith.index_cast %c0_i32 : i32 to index
    %c0_2 = arith.constant 0 : index
    %c0_3 = arith.constant 0 : index
    %c0_4 = arith.constant 0 : index
    %6 = vector.load %arg3[%5, %c0_2, %c0_3, %c0_4] : memref<8x2x8x128xf32, #tpu.memory_space<vmem>>, vector<1x2x8x128xf32>
    %7 = vector.shape_cast %6 : vector<1x2x8x128xf32> to vector<2x8x128xf32>
    %8 = vector.shape_cast %7 : vector<2x8x128xf32> to vector<1x2x8x128xf32>
    %9 = arith.index_cast %c0_i32 : i32 to index
    %c0_5 = arith.constant 0 : index
    %c0_6 = arith.constant 0 : index
    %c0_7 = arith.constant 0 : index
    %10 = vector.load %arg4[%9, %c0_5, %c0_6, %c0_7] : memref<8x4x8x128xf32, #tpu.memory_space<vmem>>, vector<1x4x8x128xf32>
    %11 = vector.shape_cast %10 : vector<1x4x8x128xf32> to vector<4x8x128xf32>
    %12 = vector.shape_cast %11 : vector<4x8x128xf32> to vector<4x1x8x128xf32>
    %13 = arith.index_cast %c0_i32 : i32 to index
    %c0_8 = arith.constant 0 : index
    %c0_9 = arith.constant 0 : index
    %c0_10 = arith.constant 0 : index
    %14 = vector.load %arg5[%13, %c0_8, %c0_9, %c0_10] : memref<8x4x8x128xf32, #tpu.memory_space<vmem>>, vector<1x4x8x128xf32>
    %15 = vector.shape_cast %14 : vector<1x4x8x128xf32> to vector<4x8x128xf32>
    %16 = vector.shape_cast %15 : vector<4x8x128xf32> to vector<4x1x8x128xf32>
    %17 = vector.broadcast %4 : vector<1x2x8x128xf32> to vector<4x2x8x128xf32>
    %18 = vector.broadcast %12 : vector<4x1x8x128xf32> to vector<4x2x8x128xf32>
    %19 = arith.mulf %17, %18 : vector<4x2x8x128xf32>
    %20 = vector.broadcast %8 : vector<1x2x8x128xf32> to vector<4x2x8x128xf32>
    %21 = vector.broadcast %16 : vector<4x1x8x128xf32> to vector<4x2x8x128xf32>
    %22 = arith.mulf %20, %21 : vector<4x2x8x128xf32>
    %23 = arith.subf %19, %22 : vector<4x2x8x128xf32>
    %24 = arith.addf %0, %23 : vector<4x2x8x128xf32>
    %25 = vector.broadcast %4 : vector<1x2x8x128xf32> to vector<4x2x8x128xf32>
    %26 = vector.broadcast %16 : vector<4x1x8x128xf32> to vector<4x2x8x128xf32>
    %27 = arith.mulf %25, %26 : vector<4x2x8x128xf32>
    %28 = vector.broadcast %8 : vector<1x2x8x128xf32> to vector<4x2x8x128xf32>
    %29 = vector.broadcast %12 : vector<4x1x8x128xf32> to vector<4x2x8x128xf32>
    %30 = arith.mulf %28, %29 : vector<4x2x8x128xf32>
    %31 = arith.addf %27, %30 : vector<4x2x8x128xf32>
    %32 = arith.addf %0, %31 : vector<4x2x8x128xf32>
    %c1_i32 = arith.constant 1 : i32
    %33 = arith.index_cast %c1_i32 : i32 to index
    %c0_11 = arith.constant 0 : index
    %c0_12 = arith.constant 0 : index
    %c0_13 = arith.constant 0 : index
    %34 = vector.load %arg2[%33, %c0_11, %c0_12, %c0_13] : memref<8x2x8x128xf32, #tpu.memory_space<vmem>>, vector<1x2x8x128xf32>
    %35 = vector.shape_cast %34 : vector<1x2x8x128xf32> to vector<2x8x128xf32>
    %36 = vector.shape_cast %35 : vector<2x8x128xf32> to vector<1x2x8x128xf32>
    %37 = arith.index_cast %c1_i32 : i32 to index
    %c0_14 = arith.constant 0 : index
    %c0_15 = arith.constant 0 : index
    %c0_16 = arith.constant 0 : index
    %38 = vector.load %arg3[%37, %c0_14, %c0_15, %c0_16] : memref<8x2x8x128xf32, #tpu.memory_space<vmem>>, vector<1x2x8x128xf32>
    %39 = vector.shape_cast %38 : vector<1x2x8x128xf32> to vector<2x8x128xf32>
    %40 = vector.shape_cast %39 : vector<2x8x128xf32> to vector<1x2x8x128xf32>
    %41 = arith.index_cast %c1_i32 : i32 to index
    %c0_17 = arith.constant 0 : index
    %c0_18 = arith.constant 0 : index
    %c0_19 = arith.constant 0 : index
    %42 = vector.load %arg4[%41, %c0_17, %c0_18, %c0_19] : memref<8x4x8x128xf32, #tpu.memory_space<vmem>>, vector<1x4x8x128xf32>
    %43 = vector.shape_cast %42 : vector<1x4x8x128xf32> to vector<4x8x128xf32>
    %44 = vector.shape_cast %43 : vector<4x8x128xf32> to vector<4x1x8x128xf32>
    %45 = arith.index_cast %c1_i32 : i32 to index
    %c0_20 = arith.constant 0 : index
    %c0_21 = arith.constant 0 : index
    %c0_22 = arith.constant 0 : index
    %46 = vector.load %arg5[%45, %c0_20, %c0_21, %c0_22] : memref<8x4x8x128xf32, #tpu.memory_space<vmem>>, vector<1x4x8x128xf32>
    %47 = vector.shape_cast %46 : vector<1x4x8x128xf32> to vector<4x8x128xf32>
    %48 = vector.shape_cast %47 : vector<4x8x128xf32> to vector<4x1x8x128xf32>
    %49 = vector.broadcast %36 : vector<1x2x8x128xf32> to vector<4x2x8x128xf32>
    %50 = vector.broadcast %44 : vector<4x1x8x128xf32> to vector<4x2x8x128xf32>
    %51 = arith.mulf %49, %50 : vector<4x2x8x128xf32>
    %52 = vector.broadcast %40 : vector<1x2x8x128xf32> to vector<4x2x8x128xf32>
    %53 = vector.broadcast %48 : vector<4x1x8x128xf32> to vector<4x2x8x128xf32>
    %54 = arith.mulf %52, %53 : vector<4x2x8x128xf32>
    %55 = arith.subf %51, %54 : vector<4x2x8x128xf32>
    %56 = arith.addf %24, %55 : vector<4x2x8x128xf32>
    %57 = vector.broadcast %36 : vector<1x2x8x128xf32> to vector<4x2x8x128xf32>
    %58 = vector.broadcast %48 : vector<4x1x8x128xf32> to vector<4x2x8x128xf32>
    %59 = arith.mulf %57, %58 : vector<4x2x8x128xf32>
    %60 = vector.broadcast %40 : vector<1x2x8x128xf32> to vector<4x2x8x128xf32>
    %61 = vector.broadcast %44 : vector<4x1x8x128xf32> to vector<4x2x8x128xf32>
    %62 = arith.mulf %60, %61 : vector<4x2x8x128xf32>
    %63 = arith.addf %59, %62 : vector<4x2x8x128xf32>
    %64 = arith.addf %32, %63 : vector<4x2x8x128xf32>
    %c2_i32 = arith.constant 2 : i32
    %65 = arith.index_cast %c2_i32 : i32 to index
    %c0_23 = arith.constant 0 : index
    %c0_24 = arith.constant 0 : index
    %c0_25 = arith.constant 0 : index
    %66 = vector.load %arg2[%65, %c0_23, %c0_24, %c0_25] : memref<8x2x8x128xf32, #tpu.memory_space<vmem>>, vector<1x2x8x128xf32>
    %67 = vector.shape_cast %66 : vector<1x2x8x128xf32> to vector<2x8x128xf32>
    %68 = vector.shape_cast %67 : vector<2x8x128xf32> to vector<1x2x8x128xf32>
    %69 = arith.index_cast %c2_i32 : i32 to index
    %c0_26 = arith.constant 0 : index
    %c0_27 = arith.constant 0 : index
    %c0_28 = arith.constant 0 : index
    %70 = vector.load %arg3[%69, %c0_26, %c0_27, %c0_28] : memref<8x2x8x128xf32, #tpu.memory_space<vmem>>, vector<1x2x8x128xf32>
    %71 = vector.shape_cast %70 : vector<1x2x8x128xf32> to vector<2x8x128xf32>
    %72 = vector.shape_cast %71 : vector<2x8x128xf32> to vector<1x2x8x128xf32>
    %73 = arith.index_cast %c2_i32 : i32 to index
    %c0_29 = arith.constant 0 : index
    %c0_30 = arith.constant 0 : index
    %c0_31 = arith.constant 0 : index
    %74 = vector.load %arg4[%73, %c0_29, %c0_30, %c0_31] : memref<8x4x8x128xf32, #tpu.memory_space<vmem>>, vector<1x4x8x128xf32>
    %75 = vector.shape_cast %74 : vector<1x4x8x128xf32> to vector<4x8x128xf32>
    %76 = vector.shape_cast %75 : vector<4x8x128xf32> to vector<4x1x8x128xf32>
    %77 = arith.index_cast %c2_i32 : i32 to index
    %c0_32 = arith.constant 0 : index
    %c0_33 = arith.constant 0 : index
    %c0_34 = arith.constant 0 : index
    %78 = vector.load %arg5[%77, %c0_32, %c0_33, %c0_34] : memref<8x4x8x128xf32, #tpu.memory_space<vmem>>, vector<1x4x8x128xf32>
    %79 = vector.shape_cast %78 : vector<1x4x8x128xf32> to vector<4x8x128xf32>
    %80 = vector.shape_cast %79 : vector<4x8x128xf32> to vector<4x1x8x128xf32>
    %81 = vector.broadcast %68 : vector<1x2x8x128xf32> to vector<4x2x8x128xf32>
    %82 = vector.broadcast %76 : vector<4x1x8x128xf32> to vector<4x2x8x128xf32>
    %83 = arith.mulf %81, %82 : vector<4x2x8x128xf32>
    %84 = vector.broadcast %72 : vector<1x2x8x128xf32> to vector<4x2x8x128xf32>
    %85 = vector.broadcast %80 : vector<4x1x8x128xf32> to vector<4x2x8x128xf32>
    %86 = arith.mulf %84, %85 : vector<4x2x8x128xf32>
    %87 = arith.subf %83, %86 : vector<4x2x8x128xf32>
    %88 = arith.addf %56, %87 : vector<4x2x8x128xf32>
    %89 = vector.broadcast %68 : vector<1x2x8x128xf32> to vector<4x2x8x128xf32>
    %90 = vector.broadcast %80 : vector<4x1x8x128xf32> to vector<4x2x8x128xf32>
    %91 = arith.mulf %89, %90 : vector<4x2x8x128xf32>
    %92 = vector.broadcast %72 : vector<1x2x8x128xf32> to vector<4x2x8x128xf32>
    %93 = vector.broadcast %76 : vector<4x1x8x128xf32> to vector<4x2x8x128xf32>
    %94 = arith.mulf %92, %93 : vector<4x2x8x128xf32>
    %95 = arith.addf %91, %94 : vector<4x2x8x128xf32>
    %96 = arith.addf %64, %95 : vector<4x2x8x128xf32>
    %c3_i32 = arith.constant 3 : i32
    %97 = arith.index_cast %c3_i32 : i32 to index
    %c0_35 = arith.constant 0 : index
    %c0_36 = arith.constant 0 : index
    %c0_37 = arith.constant 0 : index
    %98 = vector.load %arg2[%97, %c0_35, %c0_36, %c0_37] : memref<8x2x8x128xf32, #tpu.memory_space<vmem>>, vector<1x2x8x128xf32>
    %99 = vector.shape_cast %98 : vector<1x2x8x128xf32> to vector<2x8x128xf32>
    %100 = vector.shape_cast %99 : vector<2x8x128xf32> to vector<1x2x8x128xf32>
    %101 = arith.index_cast %c3_i32 : i32 to index
    %c0_38 = arith.constant 0 : index
    %c0_39 = arith.constant 0 : index
    %c0_40 = arith.constant 0 : index
    %102 = vector.load %arg3[%101, %c0_38, %c0_39, %c0_40] : memref<8x2x8x128xf32, #tpu.memory_space<vmem>>, vector<1x2x8x128xf32>
    %103 = vector.shape_cast %102 : vector<1x2x8x128xf32> to vector<2x8x128xf32>
    %104 = vector.shape_cast %103 : vector<2x8x128xf32> to vector<1x2x8x128xf32>
    %105 = arith.index_cast %c3_i32 : i32 to index
    %c0_41 = arith.constant 0 : index
    %c0_42 = arith.constant 0 : index
    %c0_43 = arith.constant 0 : index
    %106 = vector.load %arg4[%105, %c0_41, %c0_42, %c0_43] : memref<8x4x8x128xf32, #tpu.memory_space<vmem>>, vector<1x4x8x128xf32>
    %107 = vector.shape_cast %106 : vector<1x4x8x128xf32> to vector<4x8x128xf32>
    %108 = vector.shape_cast %107 : vector<4x8x128xf32> to vector<4x1x8x128xf32>
    %109 = arith.index_cast %c3_i32 : i32 to index
    %c0_44 = arith.constant 0 : index
    %c0_45 = arith.constant 0 : index
    %c0_46 = arith.constant 0 : index
    %110 = vector.load %arg5[%109, %c0_44, %c0_45, %c0_46] : memref<8x4x8x128xf32, #tpu.memory_space<vmem>>, vector<1x4x8x128xf32>
    %111 = vector.shape_cast %110 : vector<1x4x8x128xf32> to vector<4x8x128xf32>
    %112 = vector.shape_cast %111 : vector<4x8x128xf32> to vector<4x1x8x128xf32>
    %113 = vector.broadcast %100 : vector<1x2x8x128xf32> to vector<4x2x8x128xf32>
    %114 = vector.broadcast %108 : vector<4x1x8x128xf32> to vector<4x2x8x128xf32>
    %115 = arith.mulf %113, %114 : vector<4x2x8x128xf32>
    %116 = vector.broadcast %104 : vector<1x2x8x128xf32> to vector<4x2x8x128xf32>
    %117 = vector.broadcast %112 : vector<4x1x8x128xf32> to vector<4x2x8x128xf32>
    %118 = arith.mulf %116, %117 : vector<4x2x8x128xf32>
    %119 = arith.subf %115, %118 : vector<4x2x8x128xf32>
    %120 = arith.addf %88, %119 : vector<4x2x8x128xf32>
    %121 = vector.broadcast %100 : vector<1x2x8x128xf32> to vector<4x2x8x128xf32>
    %122 = vector.broadcast %112 : vector<4x1x8x128xf32> to vector<4x2x8x128xf32>
    %123 = arith.mulf %121, %122 : vector<4x2x8x128xf32>
    %124 = vector.broadcast %104 : vector<1x2x8x128xf32> to vector<4x2x8x128xf32>
    %125 = vector.broadcast %108 : vector<4x1x8x128xf32> to vector<4x2x8x128xf32>
    %126 = arith.mulf %124, %125 : vector<4x2x8x128xf32>
    %127 = arith.addf %123, %126 : vector<4x2x8x128xf32>
    %128 = arith.addf %96, %127 : vector<4x2x8x128xf32>
    %c4_i32 = arith.constant 4 : i32
    %129 = arith.index_cast %c4_i32 : i32 to index
    %c0_47 = arith.constant 0 : index
    %c0_48 = arith.constant 0 : index
    %c0_49 = arith.constant 0 : index
    %130 = vector.load %arg2[%129, %c0_47, %c0_48, %c0_49] : memref<8x2x8x128xf32, #tpu.memory_space<vmem>>, vector<1x2x8x128xf32>
    %131 = vector.shape_cast %130 : vector<1x2x8x128xf32> to vector<2x8x128xf32>
    %132 = vector.shape_cast %131 : vector<2x8x128xf32> to vector<1x2x8x128xf32>
    %133 = arith.index_cast %c4_i32 : i32 to index
    %c0_50 = arith.constant 0 : index
    %c0_51 = arith.constant 0 : index
    %c0_52 = arith.constant 0 : index
    %134 = vector.load %arg3[%133, %c0_50, %c0_51, %c0_52] : memref<8x2x8x128xf32, #tpu.memory_space<vmem>>, vector<1x2x8x128xf32>
    %135 = vector.shape_cast %134 : vector<1x2x8x128xf32> to vector<2x8x128xf32>
    %136 = vector.shape_cast %135 : vector<2x8x128xf32> to vector<1x2x8x128xf32>
    %137 = arith.index_cast %c4_i32 : i32 to index
    %c0_53 = arith.constant 0 : index
    %c0_54 = arith.constant 0 : index
    %c0_55 = arith.constant 0 : index
    %138 = vector.load %arg4[%137, %c0_53, %c0_54, %c0_55] : memref<8x4x8x128xf32, #tpu.memory_space<vmem>>, vector<1x4x8x128xf32>
    %139 = vector.shape_cast %138 : vector<1x4x8x128xf32> to vector<4x8x128xf32>
    %140 = vector.shape_cast %139 : vector<4x8x128xf32> to vector<4x1x8x128xf32>
    %141 = arith.index_cast %c4_i32 : i32 to index
    %c0_56 = arith.constant 0 : index
    %c0_57 = arith.constant 0 : index
    %c0_58 = arith.constant 0 : index
    %142 = vector.load %arg5[%141, %c0_56, %c0_57, %c0_58] : memref<8x4x8x128xf32, #tpu.memory_space<vmem>>, vector<1x4x8x128xf32>
    %143 = vector.shape_cast %142 : vector<1x4x8x128xf32> to vector<4x8x128xf32>
    %144 = vector.shape_cast %143 : vector<4x8x128xf32> to vector<4x1x8x128xf32>
    %145 = vector.broadcast %132 : vector<1x2x8x128xf32> to vector<4x2x8x128xf32>
    %146 = vector.broadcast %140 : vector<4x1x8x128xf32> to vector<4x2x8x128xf32>
    %147 = arith.mulf %145, %146 : vector<4x2x8x128xf32>
    %148 = vector.broadcast %136 : vector<1x2x8x128xf32> to vector<4x2x8x128xf32>
    %149 = vector.broadcast %144 : vector<4x1x8x128xf32> to vector<4x2x8x128xf32>
    %150 = arith.mulf %148, %149 : vector<4x2x8x128xf32>
    %151 = arith.subf %147, %150 : vector<4x2x8x128xf32>
    %152 = arith.addf %120, %151 : vector<4x2x8x128xf32>
    %153 = vector.broadcast %132 : vector<1x2x8x128xf32> to vector<4x2x8x128xf32>
    %154 = vector.broadcast %144 : vector<4x1x8x128xf32> to vector<4x2x8x128xf32>
    %155 = arith.mulf %153, %154 : vector<4x2x8x128xf32>
    %156 = vector.broadcast %136 : vector<1x2x8x128xf32> to vector<4x2x8x128xf32>
    %157 = vector.broadcast %140 : vector<4x1x8x128xf32> to vector<4x2x8x128xf32>
    %158 = arith.mulf %156, %157 : vector<4x2x8x128xf32>
    %159 = arith.addf %155, %158 : vector<4x2x8x128xf32>
    %160 = arith.addf %128, %159 : vector<4x2x8x128xf32>
    %c5_i32 = arith.constant 5 : i32
    %161 = arith.index_cast %c5_i32 : i32 to index
    %c0_59 = arith.constant 0 : index
    %c0_60 = arith.constant 0 : index
    %c0_61 = arith.constant 0 : index
    %162 = vector.load %arg2[%161, %c0_59, %c0_60, %c0_61] : memref<8x2x8x128xf32, #tpu.memory_space<vmem>>, vector<1x2x8x128xf32>
    %163 = vector.shape_cast %162 : vector<1x2x8x128xf32> to vector<2x8x128xf32>
    %164 = vector.shape_cast %163 : vector<2x8x128xf32> to vector<1x2x8x128xf32>
    %165 = arith.index_cast %c5_i32 : i32 to index
    %c0_62 = arith.constant 0 : index
    %c0_63 = arith.constant 0 : index
    %c0_64 = arith.constant 0 : index
    %166 = vector.load %arg3[%165, %c0_62, %c0_63, %c0_64] : memref<8x2x8x128xf32, #tpu.memory_space<vmem>>, vector<1x2x8x128xf32>
    %167 = vector.shape_cast %166 : vector<1x2x8x128xf32> to vector<2x8x128xf32>
    %168 = vector.shape_cast %167 : vector<2x8x128xf32> to vector<1x2x8x128xf32>
    %169 = arith.index_cast %c5_i32 : i32 to index
    %c0_65 = arith.constant 0 : index
    %c0_66 = arith.constant 0 : index
    %c0_67 = arith.constant 0 : index
    %170 = vector.load %arg4[%169, %c0_65, %c0_66, %c0_67] : memref<8x4x8x128xf32, #tpu.memory_space<vmem>>, vector<1x4x8x128xf32>
    %171 = vector.shape_cast %170 : vector<1x4x8x128xf32> to vector<4x8x128xf32>
    %172 = vector.shape_cast %171 : vector<4x8x128xf32> to vector<4x1x8x128xf32>
    %173 = arith.index_cast %c5_i32 : i32 to index
    %c0_68 = arith.constant 0 : index
    %c0_69 = arith.constant 0 : index
    %c0_70 = arith.constant 0 : index
    %174 = vector.load %arg5[%173, %c0_68, %c0_69, %c0_70] : memref<8x4x8x128xf32, #tpu.memory_space<vmem>>, vector<1x4x8x128xf32>
    %175 = vector.shape_cast %174 : vector<1x4x8x128xf32> to vector<4x8x128xf32>
    %176 = vector.shape_cast %175 : vector<4x8x128xf32> to vector<4x1x8x128xf32>
    %177 = vector.broadcast %164 : vector<1x2x8x128xf32> to vector<4x2x8x128xf32>
    %178 = vector.broadcast %172 : vector<4x1x8x128xf32> to vector<4x2x8x128xf32>
    %179 = arith.mulf %177, %178 : vector<4x2x8x128xf32>
    %180 = vector.broadcast %168 : vector<1x2x8x128xf32> to vector<4x2x8x128xf32>
    %181 = vector.broadcast %176 : vector<4x1x8x128xf32> to vector<4x2x8x128xf32>
    %182 = arith.mulf %180, %181 : vector<4x2x8x128xf32>
    %183 = arith.subf %179, %182 : vector<4x2x8x128xf32>
    %184 = arith.addf %152, %183 : vector<4x2x8x128xf32>
    %185 = vector.broadcast %164 : vector<1x2x8x128xf32> to vector<4x2x8x128xf32>
    %186 = vector.broadcast %176 : vector<4x1x8x128xf32> to vector<4x2x8x128xf32>
    %187 = arith.mulf %185, %186 : vector<4x2x8x128xf32>
    %188 = vector.broadcast %168 : vector<1x2x8x128xf32> to vector<4x2x8x128xf32>
    %189 = vector.broadcast %172 : vector<4x1x8x128xf32> to vector<4x2x8x128xf32>
    %190 = arith.mulf %188, %189 : vector<4x2x8x128xf32>
    %191 = arith.addf %187, %190 : vector<4x2x8x128xf32>
    %192 = arith.addf %160, %191 : vector<4x2x8x128xf32>
    %c6_i32 = arith.constant 6 : i32
    %193 = arith.index_cast %c6_i32 : i32 to index
    %c0_71 = arith.constant 0 : index
    %c0_72 = arith.constant 0 : index
    %c0_73 = arith.constant 0 : index
    %194 = vector.load %arg2[%193, %c0_71, %c0_72, %c0_73] : memref<8x2x8x128xf32, #tpu.memory_space<vmem>>, vector<1x2x8x128xf32>
    %195 = vector.shape_cast %194 : vector<1x2x8x128xf32> to vector<2x8x128xf32>
    %196 = vector.shape_cast %195 : vector<2x8x128xf32> to vector<1x2x8x128xf32>
    %197 = arith.index_cast %c6_i32 : i32 to index
    %c0_74 = arith.constant 0 : index
    %c0_75 = arith.constant 0 : index
    %c0_76 = arith.constant 0 : index
    %198 = vector.load %arg3[%197, %c0_74, %c0_75, %c0_76] : memref<8x2x8x128xf32, #tpu.memory_space<vmem>>, vector<1x2x8x128xf32>
    %199 = vector.shape_cast %198 : vector<1x2x8x128xf32> to vector<2x8x128xf32>
    %200 = vector.shape_cast %199 : vector<2x8x128xf32> to vector<1x2x8x128xf32>
    %201 = arith.index_cast %c6_i32 : i32 to index
    %c0_77 = arith.constant 0 : index
    %c0_78 = arith.constant 0 : index
    %c0_79 = arith.constant 0 : index
    %202 = vector.load %arg4[%201, %c0_77, %c0_78, %c0_79] : memref<8x4x8x128xf32, #tpu.memory_space<vmem>>, vector<1x4x8x128xf32>
    %203 = vector.shape_cast %202 : vector<1x4x8x128xf32> to vector<4x8x128xf32>
    %204 = vector.shape_cast %203 : vector<4x8x128xf32> to vector<4x1x8x128xf32>
    %205 = arith.index_cast %c6_i32 : i32 to index
    %c0_80 = arith.constant 0 : index
    %c0_81 = arith.constant 0 : index
    %c0_82 = arith.constant 0 : index
    %206 = vector.load %arg5[%205, %c0_80, %c0_81, %c0_82] : memref<8x4x8x128xf32, #tpu.memory_space<vmem>>, vector<1x4x8x128xf32>
    %207 = vector.shape_cast %206 : vector<1x4x8x128xf32> to vector<4x8x128xf32>
    %208 = vector.shape_cast %207 : vector<4x8x128xf32> to vector<4x1x8x128xf32>
    %209 = vector.broadcast %196 : vector<1x2x8x128xf32> to vector<4x2x8x128xf32>
    %210 = vector.broadcast %204 : vector<4x1x8x128xf32> to vector<4x2x8x128xf32>
    %211 = arith.mulf %209, %210 : vector<4x2x8x128xf32>
    %212 = vector.broadcast %200 : vector<1x2x8x128xf32> to vector<4x2x8x128xf32>
    %213 = vector.broadcast %208 : vector<4x1x8x128xf32> to vector<4x2x8x128xf32>
    %214 = arith.mulf %212, %213 : vector<4x2x8x128xf32>
    %215 = arith.subf %211, %214 : vector<4x2x8x128xf32>
    %216 = arith.addf %184, %215 : vector<4x2x8x128xf32>
    %217 = vector.broadcast %196 : vector<1x2x8x128xf32> to vector<4x2x8x128xf32>
    %218 = vector.broadcast %208 : vector<4x1x8x128xf32> to vector<4x2x8x128xf32>
    %219 = arith.mulf %217, %218 : vector<4x2x8x128xf32>
    %220 = vector.broadcast %200 : vector<1x2x8x128xf32> to vector<4x2x8x128xf32>
    %221 = vector.broadcast %204 : vector<4x1x8x128xf32> to vector<4x2x8x128xf32>
    %222 = arith.mulf %220, %221 : vector<4x2x8x128xf32>
    %223 = arith.addf %219, %222 : vector<4x2x8x128xf32>
    %224 = arith.addf %192, %223 : vector<4x2x8x128xf32>
    %c7_i32 = arith.constant 7 : i32
    %225 = arith.index_cast %c7_i32 : i32 to index
    %c0_83 = arith.constant 0 : index
    %c0_84 = arith.constant 0 : index
    %c0_85 = arith.constant 0 : index
    %226 = vector.load %arg2[%225, %c0_83, %c0_84, %c0_85] : memref<8x2x8x128xf32, #tpu.memory_space<vmem>>, vector<1x2x8x128xf32>
    %227 = vector.shape_cast %226 : vector<1x2x8x128xf32> to vector<2x8x128xf32>
    %228 = vector.shape_cast %227 : vector<2x8x128xf32> to vector<1x2x8x128xf32>
    %229 = arith.index_cast %c7_i32 : i32 to index
    %c0_86 = arith.constant 0 : index
    %c0_87 = arith.constant 0 : index
    %c0_88 = arith.constant 0 : index
    %230 = vector.load %arg3[%229, %c0_86, %c0_87, %c0_88] : memref<8x2x8x128xf32, #tpu.memory_space<vmem>>, vector<1x2x8x128xf32>
    %231 = vector.shape_cast %230 : vector<1x2x8x128xf32> to vector<2x8x128xf32>
    %232 = vector.shape_cast %231 : vector<2x8x128xf32> to vector<1x2x8x128xf32>
    %233 = arith.index_cast %c7_i32 : i32 to index
    %c0_89 = arith.constant 0 : index
    %c0_90 = arith.constant 0 : index
    %c0_91 = arith.constant 0 : index
    %234 = vector.load %arg4[%233, %c0_89, %c0_90, %c0_91] : memref<8x4x8x128xf32, #tpu.memory_space<vmem>>, vector<1x4x8x128xf32>
    %235 = vector.shape_cast %234 : vector<1x4x8x128xf32> to vector<4x8x128xf32>
    %236 = vector.shape_cast %235 : vector<4x8x128xf32> to vector<4x1x8x128xf32>
    %237 = arith.index_cast %c7_i32 : i32 to index
    %c0_92 = arith.constant 0 : index
    %c0_93 = arith.constant 0 : index
    %c0_94 = arith.constant 0 : index
    %238 = vector.load %arg5[%237, %c0_92, %c0_93, %c0_94] : memref<8x4x8x128xf32, #tpu.memory_space<vmem>>, vector<1x4x8x128xf32>
    %239 = vector.shape_cast %238 : vector<1x4x8x128xf32> to vector<4x8x128xf32>
    %240 = vector.shape_cast %239 : vector<4x8x128xf32> to vector<4x1x8x128xf32>
    %241 = vector.broadcast %228 : vector<1x2x8x128xf32> to vector<4x2x8x128xf32>
    %242 = vector.broadcast %236 : vector<4x1x8x128xf32> to vector<4x2x8x128xf32>
    %243 = arith.mulf %241, %242 : vector<4x2x8x128xf32>
    %244 = vector.broadcast %232 : vector<1x2x8x128xf32> to vector<4x2x8x128xf32>
    %245 = vector.broadcast %240 : vector<4x1x8x128xf32> to vector<4x2x8x128xf32>
    %246 = arith.mulf %244, %245 : vector<4x2x8x128xf32>
    %247 = arith.subf %243, %246 : vector<4x2x8x128xf32>
    %248 = arith.addf %216, %247 : vector<4x2x8x128xf32>
    %249 = vector.broadcast %228 : vector<1x2x8x128xf32> to vector<4x2x8x128xf32>
    %250 = vector.broadcast %240 : vector<4x1x8x128xf32> to vector<4x2x8x128xf32>
    %251 = arith.mulf %249, %250 : vector<4x2x8x128xf32>
    %252 = vector.broadcast %232 : vector<1x2x8x128xf32> to vector<4x2x8x128xf32>
    %253 = vector.broadcast %236 : vector<4x1x8x128xf32> to vector<4x2x8x128xf32>
    %254 = arith.mulf %252, %253 : vector<4x2x8x128xf32>
    %255 = arith.addf %251, %254 : vector<4x2x8x128xf32>
    %256 = arith.addf %224, %255 : vector<4x2x8x128xf32>
    %c8_i32 = arith.constant 8 : i32
    %c0_95 = arith.constant 0 : index
    %c0_96 = arith.constant 0 : index
    %c0_97 = arith.constant 0 : index
    %c0_98 = arith.constant 0 : index
    %257 = vector.load %arg6[%c0_95, %c0_96, %c0_97, %c0_98] : memref<4x2x8x128xf32, #tpu.memory_space<vmem>>, vector<4x2x8x128xf32>
    tpu.vector_store %arg6[%c0_95, %c0_96, %c0_97, %c0_98], %248 {strides = array<i32>} : memref<4x2x8x128xf32, #tpu.memory_space<vmem>>, vector<4x2x8x128xf32>,
    %c0_99 = arith.constant 0 : index
    %c0_100 = arith.constant 0 : index
    %c0_101 = arith.constant 0 : index
    %c0_102 = arith.constant 0 : index
    %258 = vector.load %arg7[%c0_99, %c0_100, %c0_101, %c0_102] : memref<4x2x8x128xf32, #tpu.memory_space<vmem>>, vector<4x2x8x128xf32>
    tpu.vector_store %arg7[%c0_99, %c0_100, %c0_101, %c0_102], %256 {strides = array<i32>} : memref<4x2x8x128xf32, #tpu.memory_space<vmem>>, vector<4x2x8x128xf32>,
    return
  }
  func.func @transform_0(%arg0: i32, %arg1: i32) -> (i32, i32, i32, i32) {
    %c0_i32 = arith.constant 0 : i32
    %c0_i32_0 = arith.constant 0 : i32
    %c0_i32_1 = arith.constant 0 : i32
    %c0_i32_2 = arith.constant 0 : i32
    return %c0_i32, %c0_i32_0, %arg0, %c0_i32_1 : i32, i32, i32, i32
  }
  func.func @transform_1(%arg0: i32, %arg1: i32) -> (i32, i32, i32, i32) {
    %c0_i32 = arith.constant 0 : i32
    %c0_i32_0 = arith.constant 0 : i32
    %c0_i32_1 = arith.constant 0 : i32
    %c0_i32_2 = arith.constant 0 : i32
    return %c0_i32, %c0_i32_0, %arg0, %c0_i32_1 : i32, i32, i32, i32
  }
  func.func @transform_2(%arg0: i32, %arg1: i32) -> (i32, i32, i32, i32) {
    %c0_i32 = arith.constant 0 : i32
    %c0_i32_0 = arith.constant 0 : i32
    %c0_i32_1 = arith.constant 0 : i32
    return %c0_i32, %arg1, %arg0, %c0_i32_0 : i32, i32, i32, i32
  }
  func.func @transform_3(%arg0: i32, %arg1: i32) -> (i32, i32, i32, i32) {
    %c0_i32 = arith.constant 0 : i32
    %c0_i32_0 = arith.constant 0 : i32
    %c0_i32_1 = arith.constant 0 : i32
    return %c0_i32, %arg1, %arg0, %c0_i32_0 : i32, i32, i32, i32
  }
  func.func @transform_4(%arg0: i32, %arg1: i32) -> (i32, i32, i32, i32) {
    %c0_i32 = arith.constant 0 : i32
    %c0_i32_0 = arith.constant 0 : i32
    %c0_i32_1 = arith.constant 0 : i32
    return %arg1, %c0_i32, %arg0, %c0_i32_0 : i32, i32, i32, i32
  }
  func.func @transform_5(%arg0: i32, %arg1: i32) -> (i32, i32, i32, i32) {
    %c0_i32 = arith.constant 0 : i32
    %c0_i32_0 = arith.constant 0 : i32
    %c0_i32_1 = arith.constant 0 : i32
    return %arg1, %c0_i32, %arg0, %c0_i32_0 : i32, i32, i32, i32
  }
}

</mosaic_0001>

<llo_original>
// kernel: a_call__.1
$region0: #{a_call__.1}
  #allocation0 [shape = 'u32[]', space=smem, size = 0x4, offset = 0x4, fixed_abs, tag = 'smem constant byte address 0x4 - core index']
  #allocation1 [shape = 'u32[72,128]{1,0:T(1,128)}', space=vmem, size = 0x9000, scoped, tag = 'internal scratch']
  %s0 = inlined_call_operand.vmem [shape: f32[8,2,16,128], index: 0, kind: input, shape index: {}]
  %s1 = inlined_call_operand.vmem [shape: f32[8,2,16,128], index: 1, kind: input, shape index: {}]
  %s2 = inlined_call_operand.vmem [shape: f32[8,8,16,128], index: 2, kind: input, shape index: {}]
  %s3 = inlined_call_operand.vmem [shape: f32[8,8,16,128], index: 3, kind: input, shape index: {}]
  %s4 = inlined_call_operand.vmem [shape: f32[8,2,16,128], index: 4, kind: output, shape index: {0}]
  %s5 = inlined_call_operand.vmem [shape: f32[8,2,16,128], index: 5, kind: output, shape index: {1}]
  %6 = xla_tuple %s4, %s5
  %s7 = sld [smem:[#allocation0]]
  $region277: #{a_call__.1} parent=0
    _
  %s9 = ssub.s32 1, %s7
  %s10 = scalar_select 0, %s9, %s7
  $region1: #{a_call__.1} parent=0
    #allocation2 [shape = 'u8[131072]{0}', space=vmem, size = 0x20000, scoped, tag = 'input window, operand 0']
    #allocation3 [shape = 'u8[131072]{0}', space=vmem, size = 0x20000, scoped, tag = 'input window, operand 1']
    #allocation4 [shape = 'u8[262144]{0}', space=vmem, size = 0x40000, scoped, tag = 'input window, operand 2']
    #allocation5 [shape = 'u8[262144]{0}', space=vmem, size = 0x40000, scoped, tag = 'input window, operand 3']
    #allocation6 [shape = 'u8[65536]{0}', space=vmem, size = 0x10000, scoped, tag = 'output window, operand 0']
    #allocation7 [shape = 'u8[65536]{0}', space=vmem, size = 0x10000, scoped, tag = 'output window, operand 1']
    loop: start=0, step=1, limit=6
    $region2: #{a_call__.1} parent=1 // loop_pre_header
      _
    $region3: #{a_call__.1} parent=1 // loop_header
      %s12 = sphi 0, %s16
      %p13 = scmp.ge.s32.totalorder %s12, 6
      %s19 = sphi 0, %s31
      %s20 = sphi 0, %s27
      %s21 = sphi 0, %s19
      %s22 = sphi 0, %s20
      %s23 = sphi 0, %s21
      %s24 = sphi 0, %s22
      %s34 = sphi 0, %s36
      %s37 = sphi 0, %s34
      %s38 = sphi 0, %s37
      %s54 = sphi 0, %s38
      %s60 = sphi 0, %s62
      %s63 = sphi 0, %s60
      %s64 = sphi 0, %s63
      %s80 = sphi 0, %s64
      %s88 = sphi 0, %s90
      %s91 = sphi 0, %s88
      %s92 = sphi 0, %s91
      %s108 = sphi 0, %s92
      %s116 = sphi 0, %s118
      %s119 = sphi 0, %s116
      %s120 = sphi 0, %s119
      %s136 = sphi 0, %s120
      %s144 = sphi 0, %s146
      %s147 = sphi 0, %s144
      %s148 = sphi 0, %s147
      %s164 = sphi 0, %s148
      %s172 = sphi 0, %s174
      %s175 = sphi 0, %s172
      %s176 = sphi 0, %s175
      %s192 = sphi 0, %s176
    $region4: #{a_call__.1} parent=1 // loop_header_branch
      %15 = sbr.rel (%p13) target = $region8
    $region5: #{a_call__.1} parent=1 // loop_body
      %s17 = ssub.s32 %s12, 1
      %s18 = ssub.s32 %s12, 2
      %s25 = sadd.s32 1, %s20
      %p26 = scmp.ge.s32.totalorder %s25, 2
      %s27 = scalar_select %p26, 0, %s25
      %s28 = sadd.s32 1, %s19
      %s29 = scalar_select %p26, %s28, %s19
      %p30 = scmp.ge.s32.totalorder %s29, 2
      %s31 = scalar_select %p30, 0, %s29
      %s32 = ssub.s32 %s19, %s31
      %p33 = scmp.eq.s32.totalorder %s32, 0
      %s35 = sadd.s32 %s34, 1
      %s36 = scalar_select %p33, %s34, %s35
      %p39 = pneg %p33
      %p40 = scmp.eq.s32.totalorder %s12, 3
      %p41 = por %p39, %p40
      %p42 = scmp.ne.s32.totalorder %s34, %s37
      %p43 = scmp.eq.s32.totalorder %s12, 0
      %p44 = por %p42, %p43
      %p45 = scmp.ne.s32.totalorder %s34, %s37
      %p46 = scmp.eq.s32.totalorder %s17, 3
      %p47 = por %p45, %p46
      %p48 = scmp.ne.s32.totalorder %s37, %s38
      %p49 = scmp.eq.s32.totalorder %s17, 0
      %p50 = por %p48, %p49
      %p51 = scmp.ne.s32.totalorder %s37, %s38
      %p52 = scmp.eq.s32.totalorder %s18, 3
      %p53 = por %p51, %p52
      %p55 = scmp.ne.s32.totalorder %s38, %s54
      %p56 = scmp.eq.s32.totalorder %s18, 0
      %p57 = por %p55, %p56
      %s58 = ssub.s32 %s19, %s31
      %p59 = scmp.eq.s32.totalorder %s58, 0
      %s61 = sadd.s32 %s60, 1
      %s62 = scalar_select %p59, %s60, %s61
      %p65 = pneg %p59
      %p66 = scmp.eq.s32.totalorder %s12, 3
      %p67 = por %p65, %p66
      %p68 = scmp.ne.s32.totalorder %s60, %s63
      %p69 = scmp.eq.s32.totalorder %s12, 0
      %p70 = por %p68, %p69
      %p71 = scmp.ne.s32.totalorder %s60, %s63
      %p72 = scmp.eq.s32.totalorder %s17, 3
      %p73 = por %p71, %p72
      %p74 = scmp.ne.s32.totalorder %s63, %s64
      %p75 = scmp.eq.s32.totalorder %s17, 0
      %p76 = por %p74, %p75
      %p77 = scmp.ne.s32.totalorder %s63, %s64
      %p78 = scmp.eq.s32.totalorder %s18, 3
      %p79 = por %p77, %p78
      %p81 = scmp.ne.s32.totalorder %s64, %s80
      %p82 = scmp.eq.s32.totalorder %s18, 0
      %p83 = por %p81, %p82
      %s84 = ssub.s32 %s20, %s27
      %s85 = ssub.s32 %s19, %s31
      %s86 = sor.u32 %s84, %s85
      %p87 = scmp.eq.s32.totalorder %s86, 0
      %s89 = sadd.s32 %s88, 1
      %s90 = scalar_select %p87, %s88, %s89
      %p93 = pneg %p87
      %p94 = scmp.eq.s32.totalorder %s12, 3
      %p95 = por %p93, %p94
      %p96 = scmp.ne.s32.totalorder %s88, %s91
      %p97 = scmp.eq.s32.totalorder %s12, 0
      %p98 = por %p96, %p97
      %p99 = scmp.ne.s32.totalorder %s88, %s91
      %p100 = scmp.eq.s32.totalorder %s17, 3
      %p101 = por %p99, %p100
      %p102 = scmp.ne.s32.totalorder %s91, %s92
      %p103 = scmp.eq.s32.totalorder %s17, 0
      %p104 = por %p102, %p103
      %p105 = scmp.ne.s32.totalorder %s91, %s92
      %p106 = scmp.eq.s32.totalorder %s18, 3
      %p107 = por %p105, %p106
      %p109 = scmp.ne.s32.totalorder %s92, %s108
      %p110 = scmp.eq.s32.totalorder %s18, 0
      %p111 = por %p109, %p110
      %s112 = ssub.s32 %s20, %s27
      %s113 = ssub.s32 %s19, %s31
      %s114 = sor.u32 %s112, %s113
      %p115 = scmp.eq.s32.totalorder %s114, 0
      %s117 = sadd.s32 %s116, 1
      %s118 = scalar_select %p115, %s116, %s117
      %p121 = pneg %p115
      %p122 = scmp.eq.s32.totalorder %s12, 3
      %p123 = por %p121, %p122
      %p124 = scmp.ne.s32.totalorder %s116, %s119
      %p125 = scmp.eq.s32.totalorder %s12, 0
      %p126 = por %p124, %p125
      %p127 = scmp.ne.s32.totalorder %s116, %s119
      %p128 = scmp.eq.s32.totalorder %s17, 3
      %p129 = por %p127, %p128
      %p130 = scmp.ne.s32.totalorder %s119, %s120
      %p131 = scmp.eq.s32.totalorder %s17, 0
      %p132 = por %p130, %p131
      %p133 = scmp.ne.s32.totalorder %s119, %s120
      %p134 = scmp.eq.s32.totalorder %s18, 3
      %p135 = por %p133, %p134
      %p137 = scmp.ne.s32.totalorder %s120, %s136
      %p138 = scmp.eq.s32.totalorder %s18, 0
      %p139 = por %p137, %p138
      %s140 = ssub.s32 %s20, %s27
      %s141 = ssub.s32 %s19, %s31
      %s142 = sor.u32 %s140, %s141
      %p143 = scmp.eq.s32.totalorder %s142, 0
      %s145 = sadd.s32 %s144, 1
      %s146 = scalar_select %p143, %s144, %s145
      %p149 = pneg %p143
      %p150 = scmp.eq.s32.totalorder %s12, 3
      %p151 = por %p149, %p150
      %p152 = scmp.ne.s32.totalorder %s144, %s147
      %p153 = scmp.eq.s32.totalorder %s12, 0
      %p154 = por %p152, %p153
      %p155 = scmp.ne.s32.totalorder %s144, %s147
      %p156 = scmp.eq.s32.totalorder %s17, 3
      %p157 = por %p155, %p156
      %p158 = scmp.ne.s32.totalorder %s147, %s148
      %p159 = scmp.eq.s32.totalorder %s17, 0
      %p160 = por %p158, %p159
      %p161 = scmp.ne.s32.totalorder %s147, %s148
      %p162 = scmp.eq.s32.totalorder %s18, 3
      %p163 = por %p161, %p162
      %p165 = scmp.ne.s32.totalorder %s148, %s164
      %p166 = scmp.eq.s32.totalorder %s18, 0
      %p167 = por %p165, %p166
      %s168 = ssub.s32 %s20, %s27
      %s169 = ssub.s32 %s19, %s31
      %s170 = sor.u32 %s168, %s169
      %p171 = scmp.eq.s32.totalorder %s170, 0
      %s173 = sadd.s32 %s172, 1
      %s174 = scalar_select %p171, %s172, %s173
      %p177 = pneg %p171
      %p178 = scmp.eq.s32.totalorder %s12, 3
      %p179 = por %p177, %p178
      %p180 = scmp.ne.s32.totalorder %s172, %s175
      %p181 = scmp.eq.s32.totalorder %s12, 0
      %p182 = por %p180, %p181
      %p183 = scmp.ne.s32.totalorder %s172, %s175
      %p184 = scmp.eq.s32.totalorder %s17, 3
      %p185 = por %p183, %p184
      %p186 = scmp.ne.s32.totalorder %s175, %s176
      %p187 = scmp.eq.s32.totalorder %s17, 0
      %p188 = por %p186, %p187
      %p189 = scmp.ne.s32.totalorder %s175, %s176
      %p190 = scmp.eq.s32.totalorder %s18, 3
      %p191 = por %p189, %p190
      %p193 = scmp.ne.s32.totalorder %s176, %s192
      %p194 = scmp.eq.s32.totalorder %s18, 0
      %p195 = por %p193, %p194
      %p196 = scmp.le.s32.totalorder 1, %s12
      %p197 = scmp.lt.s32.totalorder %s12, 5
      %p198 = pnand %p196, %p197
      %p199 = pneg %p198
      // Predicated region
      $region9: #{a_call__.1} parent=5 // pred_check
        _
      $region10: #{a_call__.1} parent=5 // pred_check_branch
        %201 = sbr.rel (%p198) target = $region12
      $region11: #{a_call__.1} parent=5 // pred_region
        %s202 = ssub.s32 %s12, 1
      $region12: #{a_call__.1} parent=5 // pred_fallthru
        _
      %p203 = scmp.lt.s32.totalorder %s12, 4
      // Predicated region
      $region13: #{a_call__.1} parent=5 // pred_check
        %p204 = pneg %p203
      $region14: #{a_call__.1} parent=5 // pred_check_branch
        %206 = sbr.rel (%p204) target = $region16
      $region15: #{a_call__.1} parent=5 // pred_region
        // Predicated region
        $region17: #{a_call__.1} parent=15 // pred_check
          %p207 = pneg %p44
        $region18: #{a_call__.1} parent=15 // pred_check_branch
          %209 = sbr.rel (%p207) target = $region20
        $region19: #{a_call__.1} parent=15 // pred_region
          %s210 = sand.u32 %s34, 1
          %s211 = sand.u32 %s34, 1
          %s212 = smul.addr %s211, 128
          %s213 = scalar_lea.vmem [#allocation2], %s212
          %s214 = smul.addr %s19, 8
          %s215 = scalar_lea.vmem %s0, %s214
          // Predicated region
          $region21: #{a_call__.1} parent=19 // pred_check
            _
          $region22: #{a_call__.1} parent=19 // pred_check_branch
            %217 = sbr.rel (0) target = $region24
          $region23: #{a_call__.1} parent=19 // pred_region
            // Predicated region
            $region25: #{a_call__.1} parent=23 // pred_check
              _
            $region26: #{a_call__.1} parent=23 // pred_check_branch
              %219 = sbr.rel (0) target = $region28
            $region27: #{a_call__.1} parent=23 // pred_region
              // Predicated region
              $region40: #{a_call__.1} parent=27 // pred_check
                _
              $region41: #{a_call__.1} parent=27 // pred_check_branch
                %265 = sbr.rel (0) target = $region43
              $region42: #{a_call__.1} parent=27 // pred_region
                loop: start=0, step=1, limit=1
                $region44: #{a_call__.1} parent=42 // loop_pre_header
                  _
                $region45: #{a_call__.1} parent=42 // loop_header
                  %s267 = sphi 0, %s271
                  %p268 = scmp.ge.s32.totalorder %s267, 1
                  %s272 = sphi %s215, %s215
                  %s273 = sphi %s213, %s213
                $region46: #{a_call__.1} parent=42 // loop_header_branch
                  %270 = sbr.rel (%p268) target = $region50
                $region47: #{a_call__.1} parent=42 // loop_body
                  %v274 = vld [vmem:[%s272] sm:$0xff]
                  %275 = vst [vmem:[%s273] sm:$0xff] %v274
                  %v276 = vld [vmem:[%s272 + $0x10] sm:$0xff]
                  %277 = vst [vmem:[%s273 + $0x8] sm:$0xff] %v276
                  %v278 = vld [vmem:[%s272 + $0x20] sm:$0xff]
                  %279 = vst [vmem:[%s273 + $0x10] sm:$0xff] %v278
                  %v280 = vld [vmem:[%s272 + $0x30] sm:$0xff]
                  %281 = vst [vmem:[%s273 + $0x18] sm:$0xff] %v280
                  %v282 = vld [vmem:[%s272 + $0x40] sm:$0xff]
                  %283 = vst [vmem:[%s273 + $0x20] sm:$0xff] %v282
                  %v284 = vld [vmem:[%s272 + $0x50] sm:$0xff]
                  %285 = vst [vmem:[%s273 + $0x28] sm:$0xff] %v284
                  %v286 = vld [vmem:[%s272 + $0x60] sm:$0xff]
                  %287 = vst [vmem:[%s273 + $0x30] sm:$0xff] %v286
                  %v288 = vld [vmem:[%s272 + $0x70] sm:$0xff]
                  %289 = vst [vmem:[%s273 + $0x38] sm:$0xff] %v288
                  %v290 = vld [vmem:[%s272 + $0x80] sm:$0xff]
                  %291 = vst [vmem:[%s273 + $0x40] sm:$0xff] %v290
                  %v292 = vld [vmem:[%s272 + $0x90] sm:$0xff]
                  %293 = vst [vmem:[%s273 + $0x48] sm:$0xff] %v292
                  %v294 = vld [vmem:[%s272 + $0xa0] sm:$0xff]
                  %295 = vst [vmem:[%s273 + $0x50] sm:$0xff] %v294
                  %v296 = vld [vmem:[%s272 + $0xb0] sm:$0xff]
                  %297 = vst [vmem:[%s273 + $0x58] sm:$0xff] %v296
                  %v298 = vld [vmem:[%s272 + $0xc0] sm:$0xff]
                  %299 = vst [vmem:[%s273 + $0x60] sm:$0xff] %v298
                  %v300 = vld [vmem:[%s272 + $0xd0] sm:$0xff]
                  %301 = vst [vmem:[%s273 + $0x68] sm:$0xff] %v300
                  %v302 = vld [vmem:[%s272 + $0xe0] sm:$0xff]
                  %303 = vst [vmem:[%s273 + $0x70] sm:$0xff] %v302
                  %v304 = vld [vmem:[%s272 + $0xf0] sm:$0xff]
                  %305 = vst [vmem:[%s273 + $0x78] sm:$0xff] %v304
                $region48: #{a_call__.1} parent=42 // loop_footer
                  %s271 = sadd.s32 1, %s267
                $region49: #{a_call__.1} parent=42 // loop_footer_branch
                  %266 = sbr.rel target = $region45
                $region50: #{a_call__.1} parent=42 // loop_exit
                  _
              $region43: #{a_call__.1} parent=27 // pred_fallthru
                _
              // Predicated region
              $region51: #{a_call__.1} parent=27 // pred_check
                _
              $region52: #{a_call__.1} parent=27 // pred_check_branch
                %307 = sbr.rel target = $region54
              $region53: #{a_call__.1} parent=27 // pred_region
                _
              $region54: #{a_call__.1} parent=27 // pred_fallthru
                _
            $region28: #{a_call__.1} parent=23 // pred_fallthru
              _
            // Predicated region
            $region29: #{a_call__.1} parent=23 // pred_check
              _
            $region30: #{a_call__.1} parent=23 // pred_check_branch
              %221 = sbr.rel target = $region32
            $region31: #{a_call__.1} parent=23 // pred_region
              %s223 = ssub.s32 256, 1
              loop: start=0, step=1, limit=1
              $region33: #{a_call__.1} parent=31 // loop_pre_header
                _
              $region34: #{a_call__.1} parent=31 // loop_header
                %s225 = sphi 0, %s229
                %p226 = scmp.ge.s32.totalorder %s225, 1
                %s230 = sphi %s215, %s215
                %s231 = sphi %s213, %s213
              $region35: #{a_call__.1} parent=31 // loop_header_branch
                %228 = sbr.rel (%p226) target = $region39
              $region36: #{a_call__.1} parent=31 // loop_body
                %v232 = vld [vmem:[%s230] sm:%s223]
                %233 = vst [vmem:[%s231] sm:%s223] %v232
                %v234 = vld [vmem:[%s230 + $0x10] sm:%s223]
                %235 = vst [vmem:[%s231 + $0x8] sm:%s223] %v234
                %v236 = vld [vmem:[%s230 + $0x20] sm:%s223]
                %237 = vst [vmem:[%s231 + $0x10] sm:%s223] %v236
                %v238 = vld [vmem:[%s230 + $0x30] sm:%s223]
                %239 = vst [vmem:[%s231 + $0x18] sm:%s223] %v238
                %v240 = vld [vmem:[%s230 + $0x40] sm:%s223]
                %241 = vst [vmem:[%s231 + $0x20] sm:%s223] %v240
                %v242 = vld [vmem:[%s230 + $0x50] sm:%s223]
                %243 = vst [vmem:[%s231 + $0x28] sm:%s223] %v242
                %v244 = vld [vmem:[%s230 + $0x60] sm:%s223]
                %245 = vst [vmem:[%s231 + $0x30] sm:%s223] %v244
                %v246 = vld [vmem:[%s230 + $0x70] sm:%s223]
                %247 = vst [vmem:[%s231 + $0x38] sm:%s223] %v246
                %v248 = vld [vmem:[%s230 + $0x80] sm:%s223]
                %249 = vst [vmem:[%s231 + $0x40] sm:%s223] %v248
                %v250 = vld [vmem:[%s230 + $0x90] sm:%s223]
                %251 = vst [vmem:[%s231 + $0x48] sm:%s223] %v250
                %v252 = vld [vmem:[%s230 + $0xa0] sm:%s223]
                %253 = vst [vmem:[%s231 + $0x50] sm:%s223] %v252
                %v254 = vld [vmem:[%s230 + $0xb0] sm:%s223]
                %255 = vst [vmem:[%s231 + $0x58] sm:%s223] %v254
                %v256 = vld [vmem:[%s230 + $0xc0] sm:%s223]
                %257 = vst [vmem:[%s231 + $0x60] sm:%s223] %v256
                %v258 = vld [vmem:[%s230 + $0xd0] sm:%s223]
                %259 = vst [vmem:[%s231 + $0x68] sm:%s223] %v258
                %v260 = vld [vmem:[%s230 + $0xe0] sm:%s223]
                %261 = vst [vmem:[%s231 + $0x70] sm:%s223] %v260
                %v262 = vld [vmem:[%s230 + $0xf0] sm:%s223]
                %263 = vst [vmem:[%s231 + $0x78] sm:%s223] %v262
              $region37: #{a_call__.1} parent=31 // loop_footer
                %s229 = sadd.s32 1, %s225
              $region38: #{a_call__.1} parent=31 // loop_footer_branch
                %224 = sbr.rel target = $region34
              $region39: #{a_call__.1} parent=31 // loop_exit
                _
            $region32: #{a_call__.1} parent=23 // pred_fallthru
              _
          $region24: #{a_call__.1} parent=19 // pred_fallthru
            _
          %308 = vnop
        $region20: #{a_call__.1} parent=15 // pred_fallthru
          _
        // Predicated region
        $region55: #{a_call__.1} parent=15 // pred_check
          %p309 = pneg %p70
        $region56: #{a_call__.1} parent=15 // pred_check_branch
          %311 = sbr.rel (%p309) target = $region58
        $region57: #{a_call__.1} parent=15 // pred_region
          %s312 = sand.u32 %s60, 1
          %s313 = sand.u32 %s60, 1
          %s314 = smul.addr %s313, 128
          %s315 = scalar_lea.vmem [#allocation3], %s314
          %s316 = smul.addr %s19, 8
          %s317 = scalar_lea.vmem %s1, %s316
          // Predicated region
          $region59: #{a_call__.1} parent=57 // pred_check
            _
          $region60: #{a_call__.1} parent=57 // pred_check_branch
            %319 = sbr.rel (0) target = $region62
          $region61: #{a_call__.1} parent=57 // pred_region
            // Predicated region
            $region63: #{a_call__.1} parent=61 // pred_check
              _
            $region64: #{a_call__.1} parent=61 // pred_check_branch
              %321 = sbr.rel (0) target = $region66
            $region65: #{a_call__.1} parent=61 // pred_region
              // Predicated region
              $region78: #{a_call__.1} parent=65 // pred_check
                _
              $region79: #{a_call__.1} parent=65 // pred_check_branch
                %367 = sbr.rel (0) target = $region81
              $region80: #{a_call__.1} parent=65 // pred_region
                loop: start=0, step=1, limit=1
                $region82: #{a_call__.1} parent=80 // loop_pre_header
                  _
                $region83: #{a_call__.1} parent=80 // loop_header
                  %s369 = sphi 0, %s373
                  %p370 = scmp.ge.s32.totalorder %s369, 1
                  %s374 = sphi %s317, %s317
                  %s375 = sphi %s315, %s315
                $region84: #{a_call__.1} parent=80 // loop_header_branch
                  %372 = sbr.rel (%p370) target = $region88
                $region85: #{a_call__.1} parent=80 // loop_body
                  %v376 = vld [vmem:[%s374] sm:$0xff]
                  %377 = vst [vmem:[%s375] sm:$0xff] %v376
                  %v378 = vld [vmem:[%s374 + $0x10] sm:$0xff]
                  %379 = vst [vmem:[%s375 + $0x8] sm:$0xff] %v378
                  %v380 = vld [vmem:[%s374 + $0x20] sm:$0xff]
                  %381 = vst [vmem:[%s375 + $0x10] sm:$0xff] %v380
                  %v382 = vld [vmem:[%s374 + $0x30] sm:$0xff]
                  %383 = vst [vmem:[%s375 + $0x18] sm:$0xff] %v382
                  %v384 = vld [vmem:[%s374 + $0x40] sm:$0xff]
                  %385 = vst [vmem:[%s375 + $0x20] sm:$0xff] %v384
                  %v386 = vld [vmem:[%s374 + $0x50] sm:$0xff]
                  %387 = vst [vmem:[%s375 + $0x28] sm:$0xff] %v386
                  %v388 = vld [vmem:[%s374 + $0x60] sm:$0xff]
                  %389 = vst [vmem:[%s375 + $0x30] sm:$0xff] %v388
                  %v390 = vld [vmem:[%s374 + $0x70] sm:$0xff]
                  %391 = vst [vmem:[%s375 + $0x38] sm:$0xff] %v390
                  %v392 = vld [vmem:[%s374 + $0x80] sm:$0xff]
                  %393 = vst [vmem:[%s375 + $0x40] sm:$0xff] %v392
                  %v394 = vld [vmem:[%s374 + $0x90] sm:$0xff]
                  %395 = vst [vmem:[%s375 + $0x48] sm:$0xff] %v394
                  %v396 = vld [vmem:[%s374 + $0xa0] sm:$0xff]
                  %397 = vst [vmem:[%s375 + $0x50] sm:$0xff] %v396
                  %v398 = vld [vmem:[%s374 + $0xb0] sm:$0xff]
                  %399 = vst [vmem:[%s375 + $0x58] sm:$0xff] %v398
                  %v400 = vld [vmem:[%s374 + $0xc0] sm:$0xff]
                  %401 = vst [vmem:[%s375 + $0x60] sm:$0xff] %v400
                  %v402 = vld [vmem:[%s374 + $0xd0] sm:$0xff]
                  %403 = vst [vmem:[%s375 + $0x68] sm:$0xff] %v402
                  %v404 = vld [vmem:[%s374 + $0xe0] sm:$0xff]
                  %405 = vst [vmem:[%s375 + $0x70] sm:$0xff] %v404
                  %v406 = vld [vmem:[%s374 + $0xf0] sm:$0xff]
                  %407 = vst [vmem:[%s375 + $0x78] sm:$0xff] %v406
                $region86: #{a_call__.1} parent=80 // loop_footer
                  %s373 = sadd.s32 1, %s369
                $region87: #{a_call__.1} parent=80 // loop_footer_branch
                  %368 = sbr.rel target = $region83
                $region88: #{a_call__.1} parent=80 // loop_exit
                  _
              $region81: #{a_call__.1} parent=65 // pred_fallthru
                _
              // Predicated region
              $region89: #{a_call__.1} parent=65 // pred_check
                _
              $region90: #{a_call__.1} parent=65 // pred_check_branch
                %409 = sbr.rel target = $region92
              $region91: #{a_call__.1} parent=65 // pred_region
                _
              $region92: #{a_call__.1} parent=65 // pred_fallthru
                _
            $region66: #{a_call__.1} parent=61 // pred_fallthru
              _
            // Predicated region
            $region67: #{a_call__.1} parent=61 // pred_check
              _
            $region68: #{a_call__.1} parent=61 // pred_check_branch
              %323 = sbr.rel target = $region70
            $region69: #{a_call__.1} parent=61 // pred_region
              %s325 = ssub.s32 256, 1
              loop: start=0, step=1, limit=1
              $region71: #{a_call__.1} parent=69 // loop_pre_header
                _
              $region72: #{a_call__.1} parent=69 // loop_header
                %s327 = sphi 0, %s331
                %p328 = scmp.ge.s32.totalorder %s327, 1
                %s332 = sphi %s317, %s317
                %s333 = sphi %s315, %s315
              $region73: #{a_call__.1} parent=69 // loop_header_branch
                %330 = sbr.rel (%p328) target = $region77
              $region74: #{a_call__.1} parent=69 // loop_body
                %v334 = vld [vmem:[%s332] sm:%s325]
                %335 = vst [vmem:[%s333] sm:%s325] %v334
                %v336 = vld [vmem:[%s332 + $0x10] sm:%s325]
                %337 = vst [vmem:[%s333 + $0x8] sm:%s325] %v336
                %v338 = vld [vmem:[%s332 + $0x20] sm:%s325]
                %339 = vst [vmem:[%s333 + $0x10] sm:%s325] %v338
                %v340 = vld [vmem:[%s332 + $0x30] sm:%s325]
                %341 = vst [vmem:[%s333 + $0x18] sm:%s325] %v340
                %v342 = vld [vmem:[%s332 + $0x40] sm:%s325]
                %343 = vst [vmem:[%s333 + $0x20] sm:%s325] %v342
                %v344 = vld [vmem:[%s332 + $0x50] sm:%s325]
                %345 = vst [vmem:[%s333 + $0x28] sm:%s325] %v344
                %v346 = vld [vmem:[%s332 + $0x60] sm:%s325]
                %347 = vst [vmem:[%s333 + $0x30] sm:%s325] %v346
                %v348 = vld [vmem:[%s332 + $0x70] sm:%s325]
                %349 = vst [vmem:[%s333 + $0x38] sm:%s325] %v348
                %v350 = vld [vmem:[%s332 + $0x80] sm:%s325]
                %351 = vst [vmem:[%s333 + $0x40] sm:%s325] %v350
                %v352 = vld [vmem:[%s332 + $0x90] sm:%s325]
                %353 = vst [vmem:[%s333 + $0x48] sm:%s325] %v352
                %v354 = vld [vmem:[%s332 + $0xa0] sm:%s325]
                %355 = vst [vmem:[%s333 + $0x50] sm:%s325] %v354
                %v356 = vld [vmem:[%s332 + $0xb0] sm:%s325]
                %357 = vst [vmem:[%s333 + $0x58] sm:%s325] %v356
                %v358 = vld [vmem:[%s332 + $0xc0] sm:%s325]
                %359 = vst [vmem:[%s333 + $0x60] sm:%s325] %v358
                %v360 = vld [vmem:[%s332 + $0xd0] sm:%s325]
                %361 = vst [vmem:[%s333 + $0x68] sm:%s325] %v360
                %v362 = vld [vmem:[%s332 + $0xe0] sm:%s325]
                %363 = vst [vmem:[%s333 + $0x70] sm:%s325] %v362
                %v364 = vld [vmem:[%s332 + $0xf0] sm:%s325]
                %365 = vst [vmem:[%s333 + $0x78] sm:%s325] %v364
              $region75: #{a_call__.1} parent=69 // loop_footer
                %s331 = sadd.s32 1, %s327
              $region76: #{a_call__.1} parent=69 // loop_footer_branch
                %326 = sbr.rel target = $region72
              $region77: #{a_call__.1} parent=69 // loop_exit
                _
            $region70: #{a_call__.1} parent=61 // pred_fallthru
              _
          $region62: #{a_call__.1} parent=57 // pred_fallthru
            _
          %410 = vnop
        $region58: #{a_call__.1} parent=15 // pred_fallthru
          _
        // Predicated region
        $region93: #{a_call__.1} parent=15 // pred_check
          %p411 = pneg %p98
        $region94: #{a_call__.1} parent=15 // pred_check_branch
          %413 = sbr.rel (%p411) target = $region96
        $region95: #{a_call__.1} parent=15 // pred_region
          %s414 = sand.u32 %s88, 1
          %s415 = sand.u32 %s88, 1
          %s416 = smul.addr %s415, 256
          %s417 = scalar_lea.vmem [#allocation4], %s416
          %s418 = smul.u32 4, %s20
          %s419 = smul.addr %s418, 2
          %s420 = sadd.s32 %s19, %s419
          %s421 = smul.addr %s420, 8
          %s422 = scalar_lea.vmem %s2, %s421
          // Predicated region
          $region97: #{a_call__.1} parent=95 // pred_check
            _
          $region98: #{a_call__.1} parent=95 // pred_check_branch
            %424 = sbr.rel (0) target = $region100
          $region99: #{a_call__.1} parent=95 // pred_region
            // Predicated region
            $region101: #{a_call__.1} parent=99 // pred_check
              _
            $region102: #{a_call__.1} parent=99 // pred_check_branch
              %426 = sbr.rel (0) target = $region104
            $region103: #{a_call__.1} parent=99 // pred_region
              // Predicated region
              $region116: #{a_call__.1} parent=103 // pred_check
                _
              $region117: #{a_call__.1} parent=103 // pred_check_branch
                %504 = sbr.rel (0) target = $region119
              $region118: #{a_call__.1} parent=103 // pred_region
                loop: start=0, step=1, limit=1
                $region120: #{a_call__.1} parent=118 // loop_pre_header
                  _
                $region121: #{a_call__.1} parent=118 // loop_header
                  %s506 = sphi 0, %s510
                  %p507 = scmp.ge.s32.totalorder %s506, 1
                  %s511 = sphi %s422, %s422
                  %s512 = sphi %s417, %s417
                $region122: #{a_call__.1} parent=118 // loop_header_branch
                  %509 = sbr.rel (%p507) target = $region126
                $region123: #{a_call__.1} parent=118 // loop_body
                  %v513 = vld [vmem:[%s511] sm:$0xff]
                  %514 = vst [vmem:[%s512] sm:$0xff] %v513
                  %v515 = vld [vmem:[%s511 + $0x10] sm:$0xff]
                  %516 = vst [vmem:[%s512 + $0x8] sm:$0xff] %v515
                  %v517 = vld [vmem:[%s511 + $0x20] sm:$0xff]
                  %518 = vst [vmem:[%s512 + $0x10] sm:$0xff] %v517
                  %v519 = vld [vmem:[%s511 + $0x30] sm:$0xff]
                  %520 = vst [vmem:[%s512 + $0x18] sm:$0xff] %v519
                  %v521 = vld [vmem:[%s511 + $0x80] sm:$0xff]
                  %522 = vst [vmem:[%s512 + $0x20] sm:$0xff] %v521
                  %v523 = vld [vmem:[%s511 + $0x90] sm:$0xff]
                  %524 = vst [vmem:[%s512 + $0x28] sm:$0xff] %v523
                  %v525 = vld [vmem:[%s511 + $0xa0] sm:$0xff]
                  %526 = vst [vmem:[%s512 + $0x30] sm:$0xff] %v525
                  %v527 = vld [vmem:[%s511 + $0xb0] sm:$0xff]
                  %528 = vst [vmem:[%s512 + $0x38] sm:$0xff] %v527
                  %v529 = vld [vmem:[%s511 + $0x100] sm:$0xff]
                  %530 = vst [vmem:[%s512 + $0x40] sm:$0xff] %v529
                  %v531 = vld [vmem:[%s511 + $0x110] sm:$0xff]
                  %532 = vst [vmem:[%s512 + $0x48] sm:$0xff] %v531
                  %v533 = vld [vmem:[%s511 + $0x120] sm:$0xff]
                  %534 = vst [vmem:[%s512 + $0x50] sm:$0xff] %v533
                  %v535 = vld [vmem:[%s511 + $0x130] sm:$0xff]
                  %536 = vst [vmem:[%s512 + $0x58] sm:$0xff] %v535
                  %v537 = vld [vmem:[%s511 + $0x180] sm:$0xff]
                  %538 = vst [vmem:[%s512 + $0x60] sm:$0xff] %v537
                  %v539 = vld [vmem:[%s511 + $0x190] sm:$0xff]
                  %540 = vst [vmem:[%s512 + $0x68] sm:$0xff] %v539
                  %v541 = vld [vmem:[%s511 + $0x1a0] sm:$0xff]
                  %542 = vst [vmem:[%s512 + $0x70] sm:$0xff] %v541
                  %v543 = vld [vmem:[%s511 + $0x1b0] sm:$0xff]
                  %544 = vst [vmem:[%s512 + $0x78] sm:$0xff] %v543
                  %v545 = vld [vmem:[%s511 + $0x200] sm:$0xff]
                  %546 = vst [vmem:[%s512 + $0x80] sm:$0xff] %v545
                  %v547 = vld [vmem:[%s511 + $0x210] sm:$0xff]
                  %548 = vst [vmem:[%s512 + $0x88] sm:$0xff] %v547
                  %v549 = vld [vmem:[%s511 + $0x220] sm:$0xff]
                  %550 = vst [vmem:[%s512 + $0x90] sm:$0xff] %v549
                  %v551 = vld [vmem:[%s511 + $0x230] sm:$0xff]
                  %552 = vst [vmem:[%s512 + $0x98] sm:$0xff] %v551
                  %v553 = vld [vmem:[%s511 + $0x280] sm:$0xff]
                  %554 = vst [vmem:[%s512 + $0xa0] sm:$0xff] %v553
                  %v555 = vld [vmem:[%s511 + $0x290] sm:$0xff]
                  %556 = vst [vmem:[%s512 + $0xa8] sm:$0xff] %v555
                  %v557 = vld [vmem:[%s511 + $0x2a0] sm:$0xff]
                  %558 = vst [vmem:[%s512 + $0xb0] sm:$0xff] %v557
                  %v559 = vld [vmem:[%s511 + $0x2b0] sm:$0xff]
                  %560 = vst [vmem:[%s512 + $0xb8] sm:$0xff] %v559
                  %v561 = vld [vmem:[%s511 + $0x300] sm:$0xff]
                  %562 = vst [vmem:[%s512 + $0xc0] sm:$0xff] %v561
                  %v563 = vld [vmem:[%s511 + $0x310] sm:$0xff]
                  %564 = vst [vmem:[%s512 + $0xc8] sm:$0xff] %v563
                  %v565 = vld [vmem:[%s511 + $0x320] sm:$0xff]
                  %566 = vst [vmem:[%s512 + $0xd0] sm:$0xff] %v565
                  %v567 = vld [vmem:[%s511 + $0x330] sm:$0xff]
                  %568 = vst [vmem:[%s512 + $0xd8] sm:$0xff] %v567
                  %v569 = vld [vmem:[%s511 + $0x380] sm:$0xff]
                  %570 = vst [vmem:[%s512 + $0xe0] sm:$0xff] %v569
                  %v571 = vld [vmem:[%s511 + $0x390] sm:$0xff]
                  %572 = vst [vmem:[%s512 + $0xe8] sm:$0xff] %v571
                  %v573 = vld [vmem:[%s511 + $0x3a0] sm:$0xff]
                  %574 = vst [vmem:[%s512 + $0xf0] sm:$0xff] %v573
                  %v575 = vld [vmem:[%s511 + $0x3b0] sm:$0xff]
                  %576 = vst [vmem:[%s512 + $0xf8] sm:$0xff] %v575
                $region124: #{a_call__.1} parent=118 // loop_footer
                  %s510 = sadd.s32 1, %s506
                $region125: #{a_call__.1} parent=118 // loop_footer_branch
                  %505 = sbr.rel target = $region121
                $region126: #{a_call__.1} parent=118 // loop_exit
                  _
              $region119: #{a_call__.1} parent=103 // pred_fallthru
                _
              // Predicated region
              $region127: #{a_call__.1} parent=103 // pred_check
                _
              $region128: #{a_call__.1} parent=103 // pred_check_branch
                %578 = sbr.rel target = $region130
              $region129: #{a_call__.1} parent=103 // pred_region
                _
              $region130: #{a_call__.1} parent=103 // pred_fallthru
                _
            $region104: #{a_call__.1} parent=99 // pred_fallthru
              _
            // Predicated region
            $region105: #{a_call__.1} parent=99 // pred_check
              _
            $region106: #{a_call__.1} parent=99 // pred_check_branch
              %428 = sbr.rel target = $region108
            $region107: #{a_call__.1} parent=99 // pred_region
              %s430 = ssub.s32 256, 1
              loop: start=0, step=1, limit=1
              $region109: #{a_call__.1} parent=107 // loop_pre_header
                _
              $region110: #{a_call__.1} parent=107 // loop_header
                %s432 = sphi 0, %s436
                %p433 = scmp.ge.s32.totalorder %s432, 1
                %s437 = sphi %s422, %s422
                %s438 = sphi %s417, %s417
              $region111: #{a_call__.1} parent=107 // loop_header_branch
                %435 = sbr.rel (%p433) target = $region115
              $region112: #{a_call__.1} parent=107 // loop_body
                %v439 = vld [vmem:[%s437] sm:%s430]
                %440 = vst [vmem:[%s438] sm:%s430] %v439
                %v441 = vld [vmem:[%s437 + $0x10] sm:%s430]
                %442 = vst [vmem:[%s438 + $0x8] sm:%s430] %v441
                %v443 = vld [vmem:[%s437 + $0x20] sm:%s430]
                %444 = vst [vmem:[%s438 + $0x10] sm:%s430] %v443
                %v445 = vld [vmem:[%s437 + $0x30] sm:%s430]
                %446 = vst [vmem:[%s438 + $0x18] sm:%s430] %v445
                %v447 = vld [vmem:[%s437 + $0x80] sm:%s430]
                %448 = vst [vmem:[%s438 + $0x20] sm:%s430] %v447
                %v449 = vld [vmem:[%s437 + $0x90] sm:%s430]
                %450 = vst [vmem:[%s438 + $0x28] sm:%s430] %v449
                %v451 = vld [vmem:[%s437 + $0xa0] sm:%s430]
                %452 = vst [vmem:[%s438 + $0x30] sm:%s430] %v451
                %v453 = vld [vmem:[%s437 + $0xb0] sm:%s430]
                %454 = vst [vmem:[%s438 + $0x38] sm:%s430] %v453
                %v455 = vld [vmem:[%s437 + $0x100] sm:%s430]
                %456 = vst [vmem:[%s438 + $0x40] sm:%s430] %v455
                %v457 = vld [vmem:[%s437 + $0x110] sm:%s430]
                %458 = vst [vmem:[%s438 + $0x48] sm:%s430] %v457
                %v459 = vld [vmem:[%s437 + $0x120] sm:%s430]
                %460 = vst [vmem:[%s438 + $0x50] sm:%s430] %v459
                %v461 = vld [vmem:[%s437 + $0x130] sm:%s430]
                %462 = vst [vmem:[%s438 + $0x58] sm:%s430] %v461
                %v463 = vld [vmem:[%s437 + $0x180] sm:%s430]
                %464 = vst [vmem:[%s438 + $0x60] sm:%s430] %v463
                %v465 = vld [vmem:[%s437 + $0x190] sm:%s430]
                %466 = vst [vmem:[%s438 + $0x68] sm:%s430] %v465
                %v467 = vld [vmem:[%s437 + $0x1a0] sm:%s430]
                %468 = vst [vmem:[%s438 + $0x70] sm:%s430] %v467
                %v469 = vld [vmem:[%s437 + $0x1b0] sm:%s430]
                %470 = vst [vmem:[%s438 + $0x78] sm:%s430] %v469
                %v471 = vld [vmem:[%s437 + $0x200] sm:%s430]
                %472 = vst [vmem:[%s438 + $0x80] sm:%s430] %v471
                %v473 = vld [vmem:[%s437 + $0x210] sm:%s430]
                %474 = vst [vmem:[%s438 + $0x88] sm:%s430] %v473
                %v475 = vld [vmem:[%s437 + $0x220] sm:%s430]
                %476 = vst [vmem:[%s438 + $0x90] sm:%s430] %v475
                %v477 = vld [vmem:[%s437 + $0x230] sm:%s430]
                %478 = vst [vmem:[%s438 + $0x98] sm:%s430] %v477
                %v479 = vld [vmem:[%s437 + $0x280] sm:%s430]
                %480 = vst [vmem:[%s438 + $0xa0] sm:%s430] %v479
                %v481 = vld [vmem:[%s437 + $0x290] sm:%s430]
                %482 = vst [vmem:[%s438 + $0xa8] sm:%s430] %v481
                %v483 = vld [vmem:[%s437 + $0x2a0] sm:%s430]
                %484 = vst [vmem:[%s438 + $0xb0] sm:%s430] %v483
                %v485 = vld [vmem:[%s437 + $0x2b0] sm:%s430]
                %486 = vst [vmem:[%s438 + $0xb8] sm:%s430] %v485
                %v487 = vld [vmem:[%s437 + $0x300] sm:%s430]
                %488 = vst [vmem:[%s438 + $0xc0] sm:%s430] %v487
                %v489 = vld [vmem:[%s437 + $0x310] sm:%s430]
                %490 = vst [vmem:[%s438 + $0xc8] sm:%s430] %v489
                %v491 = vld [vmem:[%s437 + $0x320] sm:%s430]
                %492 = vst [vmem:[%s438 + $0xd0] sm:%s430] %v491
                %v493 = vld [vmem:[%s437 + $0x330] sm:%s430]
                %494 = vst [vmem:[%s438 + $0xd8] sm:%s430] %v493
                %v495 = vld [vmem:[%s437 + $0x380] sm:%s430]
                %496 = vst [vmem:[%s438 + $0xe0] sm:%s430] %v495
                %v497 = vld [vmem:[%s437 + $0x390] sm:%s430]
                %498 = vst [vmem:[%s438 + $0xe8] sm:%s430] %v497
                %v499 = vld [vmem:[%s437 + $0x3a0] sm:%s430]
                %500 = vst [vmem:[%s438 + $0xf0] sm:%s430] %v499
                %v501 = vld [vmem:[%s437 + $0x3b0] sm:%s430]
                %502 = vst [vmem:[%s438 + $0xf8] sm:%s430] %v501
              $region113: #{a_call__.1} parent=107 // loop_footer
                %s436 = sadd.s32 1, %s432
              $region114: #{a_call__.1} parent=107 // loop_footer_branch
                %431 = sbr.rel target = $region110
              $region115: #{a_call__.1} parent=107 // loop_exit
                _
            $region108: #{a_call__.1} parent=99 // pred_fallthru
              _
          $region100: #{a_call__.1} parent=95 // pred_fallthru
            _
          %579 = vnop
        $region96: #{a_call__.1} parent=15 // pred_fallthru
          _
        // Predicated region
        $region131: #{a_call__.1} parent=15 // pred_check
          %p580 = pneg %p126
        $region132: #{a_call__.1} parent=15 // pred_check_branch
          %582 = sbr.rel (%p580) target = $region134
        $region133: #{a_call__.1} parent=15 // pred_region
          %s583 = sand.u32 %s116, 1
          %s584 = sand.u32 %s116, 1
          %s585 = smul.addr %s584, 256
          %s586 = scalar_lea.vmem [#allocation5], %s585
          %s587 = smul.u32 4, %s20
          %s588 = smul.addr %s587, 2
          %s589 = sadd.s32 %s19, %s588
          %s590 = smul.addr %s589, 8
          %s591 = scalar_lea.vmem %s3, %s590
          // Predicated region
          $region135: #{a_call__.1} parent=133 // pred_check
            _
          $region136: #{a_call__.1} parent=133 // pred_check_branch
            %593 = sbr.rel (0) target = $region138
          $region137: #{a_call__.1} parent=133 // pred_region
            // Predicated region
            $region139: #{a_call__.1} parent=137 // pred_check
              _
            $region140: #{a_call__.1} parent=137 // pred_check_branch
              %595 = sbr.rel (0) target = $region142
            $region141: #{a_call__.1} parent=137 // pred_region
              // Predicated region
              $region154: #{a_call__.1} parent=141 // pred_check
                _
              $region155: #{a_call__.1} parent=141 // pred_check_branch
                %673 = sbr.rel (0) target = $region157
              $region156: #{a_call__.1} parent=141 // pred_region
                loop: start=0, step=1, limit=1
                $region158: #{a_call__.1} parent=156 // loop_pre_header
                  _
                $region159: #{a_call__.1} parent=156 // loop_header
                  %s675 = sphi 0, %s679
                  %p676 = scmp.ge.s32.totalorder %s675, 1
                  %s680 = sphi %s591, %s591
                  %s681 = sphi %s586, %s586
                $region160: #{a_call__.1} parent=156 // loop_header_branch
                  %678 = sbr.rel (%p676) target = $region164
                $region161: #{a_call__.1} parent=156 // loop_body
                  %v682 = vld [vmem:[%s680] sm:$0xff]
                  %683 = vst [vmem:[%s681] sm:$0xff] %v682
                  %v684 = vld [vmem:[%s680 + $0x10] sm:$0xff]
                  %685 = vst [vmem:[%s681 + $0x8] sm:$0xff] %v684
                  %v686 = vld [vmem:[%s680 + $0x20] sm:$0xff]
                  %687 = vst [vmem:[%s681 + $0x10] sm:$0xff] %v686
                  %v688 = vld [vmem:[%s680 + $0x30] sm:$0xff]
                  %689 = vst [vmem:[%s681 + $0x18] sm:$0xff] %v688
                  %v690 = vld [vmem:[%s680 + $0x80] sm:$0xff]
                  %691 = vst [vmem:[%s681 + $0x20] sm:$0xff] %v690
                  %v692 = vld [vmem:[%s680 + $0x90] sm:$0xff]
                  %693 = vst [vmem:[%s681 + $0x28] sm:$0xff] %v692
                  %v694 = vld [vmem:[%s680 + $0xa0] sm:$0xff]
                  %695 = vst [vmem:[%s681 + $0x30] sm:$0xff] %v694
                  %v696 = vld [vmem:[%s680 + $0xb0] sm:$0xff]
                  %697 = vst [vmem:[%s681 + $0x38] sm:$0xff] %v696
                  %v698 = vld [vmem:[%s680 + $0x100] sm:$0xff]
                  %699 = vst [vmem:[%s681 + $0x40] sm:$0xff] %v698
                  %v700 = vld [vmem:[%s680 + $0x110] sm:$0xff]
                  %701 = vst [vmem:[%s681 + $0x48] sm:$0xff] %v700
                  %v702 = vld [vmem:[%s680 + $0x120] sm:$0xff]
                  %703 = vst [vmem:[%s681 + $0x50] sm:$0xff] %v702
                  %v704 = vld [vmem:[%s680 + $0x130] sm:$0xff]
                  %705 = vst [vmem:[%s681 + $0x58] sm:$0xff] %v704
                  %v706 = vld [vmem:[%s680 + $0x180] sm:$0xff]
                  %707 = vst [vmem:[%s681 + $0x60] sm:$0xff] %v706
                  %v708 = vld [vmem:[%s680 + $0x190] sm:$0xff]
                  %709 = vst [vmem:[%s681 + $0x68] sm:$0xff] %v708
                  %v710 = vld [vmem:[%s680 + $0x1a0] sm:$0xff]
                  %711 = vst [vmem:[%s681 + $0x70] sm:$0xff] %v710
                  %v712 = vld [vmem:[%s680 + $0x1b0] sm:$0xff]
                  %713 = vst [vmem:[%s681 + $0x78] sm:$0xff] %v712
                  %v714 = vld [vmem:[%s680 + $0x200] sm:$0xff]
                  %715 = vst [vmem:[%s681 + $0x80] sm:$0xff] %v714
                  %v716 = vld [vmem:[%s680 + $0x210] sm:$0xff]
                  %717 = vst [vmem:[%s681 + $0x88] sm:$0xff] %v716
                  %v718 = vld [vmem:[%s680 + $0x220] sm:$0xff]
                  %719 = vst [vmem:[%s681 + $0x90] sm:$0xff] %v718
                  %v720 = vld [vmem:[%s680 + $0x230] sm:$0xff]
                  %721 = vst [vmem:[%s681 + $0x98] sm:$0xff] %v720
                  %v722 = vld [vmem:[%s680 + $0x280] sm:$0xff]
                  %723 = vst [vmem:[%s681 + $0xa0] sm:$0xff] %v722
                  %v724 = vld [vmem:[%s680 + $0x290] sm:$0xff]
                  %725 = vst [vmem:[%s681 + $0xa8] sm:$0xff] %v724
                  %v726 = vld [vmem:[%s680 + $0x2a0] sm:$0xff]
                  %727 = vst [vmem:[%s681 + $0xb0] sm:$0xff] %v726
                  %v728 = vld [vmem:[%s680 + $0x2b0] sm:$0xff]
                  %729 = vst [vmem:[%s681 + $0xb8] sm:$0xff] %v728
                  %v730 = vld [vmem:[%s680 + $0x300] sm:$0xff]
                  %731 = vst [vmem:[%s681 + $0xc0] sm:$0xff] %v730
                  %v732 = vld [vmem:[%s680 + $0x310] sm:$0xff]
                  %733 = vst [vmem:[%s681 + $0xc8] sm:$0xff] %v732
                  %v734 = vld [vmem:[%s680 + $0x320] sm:$0xff]
                  %735 = vst [vmem:[%s681 + $0xd0] sm:$0xff] %v734
                  %v736 = vld [vmem:[%s680 + $0x330] sm:$0xff]
                  %737 = vst [vmem:[%s681 + $0xd8] sm:$0xff] %v736
                  %v738 = vld [vmem:[%s680 + $0x380] sm:$0xff]
                  %739 = vst [vmem:[%s681 + $0xe0] sm:$0xff] %v738
                  %v740 = vld [vmem:[%s680 + $0x390] sm:$0xff]
                  %741 = vst [vmem:[%s681 + $0xe8] sm:$0xff] %v740
                  %v742 = vld [vmem:[%s680 + $0x3a0] sm:$0xff]
                  %743 = vst [vmem:[%s681 + $0xf0] sm:$0xff] %v742
                  %v744 = vld [vmem:[%s680 + $0x3b0] sm:$0xff]
                  %745 = vst [vmem:[%s681 + $0xf8] sm:$0xff] %v744
                $region162: #{a_call__.1} parent=156 // loop_footer
                  %s679 = sadd.s32 1, %s675
                $region163: #{a_call__.1} parent=156 // loop_footer_branch
                  %674 = sbr.rel target = $region159
                $region164: #{a_call__.1} parent=156 // loop_exit
                  _
              $region157: #{a_call__.1} parent=141 // pred_fallthru
                _
              // Predicated region
              $region165: #{a_call__.1} parent=141 // pred_check
                _
              $region166: #{a_call__.1} parent=141 // pred_check_branch
                %747 = sbr.rel target = $region168
              $region167: #{a_call__.1} parent=141 // pred_region
                _
              $region168: #{a_call__.1} parent=141 // pred_fallthru
                _
            $region142: #{a_call__.1} parent=137 // pred_fallthru
              _
            // Predicated region
            $region143: #{a_call__.1} parent=137 // pred_check
              _
            $region144: #{a_call__.1} parent=137 // pred_check_branch
              %597 = sbr.rel target = $region146
            $region145: #{a_call__.1} parent=137 // pred_region
              %s599 = ssub.s32 256, 1
              loop: start=0, step=1, limit=1
              $region147: #{a_call__.1} parent=145 // loop_pre_header
                _
              $region148: #{a_call__.1} parent=145 // loop_header
                %s601 = sphi 0, %s605
                %p602 = scmp.ge.s32.totalorder %s601, 1
                %s606 = sphi %s591, %s591
                %s607 = sphi %s586, %s586
              $region149: #{a_call__.1} parent=145 // loop_header_branch
                %604 = sbr.rel (%p602) target = $region153
              $region150: #{a_call__.1} parent=145 // loop_body
                %v608 = vld [vmem:[%s606] sm:%s599]
                %609 = vst [vmem:[%s607] sm:%s599] %v608
                %v610 = vld [vmem:[%s606 + $0x10] sm:%s599]
                %611 = vst [vmem:[%s607 + $0x8] sm:%s599] %v610
                %v612 = vld [vmem:[%s606 + $0x20] sm:%s599]
                %613 = vst [vmem:[%s607 + $0x10] sm:%s599] %v612
                %v614 = vld [vmem:[%s606 + $0x30] sm:%s599]
                %615 = vst [vmem:[%s607 + $0x18] sm:%s599] %v614
                %v616 = vld [vmem:[%s606 + $0x80] sm:%s599]
                %617 = vst [vmem:[%s607 + $0x20] sm:%s599] %v616
                %v618 = vld [vmem:[%s606 + $0x90] sm:%s599]
                %619 = vst [vmem:[%s607 + $0x28] sm:%s599] %v618
                %v620 = vld [vmem:[%s606 + $0xa0] sm:%s599]
                %621 = vst [vmem:[%s607 + $0x30] sm:%s599] %v620
                %v622 = vld [vmem:[%s606 + $0xb0] sm:%s599]
                %623 = vst [vmem:[%s607 + $0x38] sm:%s599] %v622
                %v624 = vld [vmem:[%s606 + $0x100] sm:%s599]
                %625 = vst [vmem:[%s607 + $0x40] sm:%s599] %v624
                %v626 = vld [vmem:[%s606 + $0x110] sm:%s599]
                %627 = vst [vmem:[%s607 + $0x48] sm:%s599] %v626
                %v628 = vld [vmem:[%s606 + $0x120] sm:%s599]
                %629 = vst [vmem:[%s607 + $0x50] sm:%s599] %v628
                %v630 = vld [vmem:[%s606 + $0x130] sm:%s599]
                %631 = vst [vmem:[%s607 + $0x58] sm:%s599] %v630
                %v632 = vld [vmem:[%s606 + $0x180] sm:%s599]
                %633 = vst [vmem:[%s607 + $0x60] sm:%s599] %v632
                %v634 = vld [vmem:[%s606 + $0x190] sm:%s599]
                %635 = vst [vmem:[%s607 + $0x68] sm:%s599] %v634
                %v636 = vld [vmem:[%s606 + $0x1a0] sm:%s599]
                %637 = vst [vmem:[%s607 + $0x70] sm:%s599] %v636
                %v638 = vld [vmem:[%s606 + $0x1b0] sm:%s599]
                %639 = vst [vmem:[%s607 + $0x78] sm:%s599] %v638
                %v640 = vld [vmem:[%s606 + $0x200] sm:%s599]
                %641 = vst [vmem:[%s607 + $0x80] sm:%s599] %v640
                %v642 = vld [vmem:[%s606 + $0x210] sm:%s599]
                %643 = vst [vmem:[%s607 + $0x88] sm:%s599] %v642
                %v644 = vld [vmem:[%s606 + $0x220] sm:%s599]
                %645 = vst [vmem:[%s607 + $0x90] sm:%s599] %v644
                %v646 = vld [vmem:[%s606 + $0x230] sm:%s599]
                %647 = vst [vmem:[%s607 + $0x98] sm:%s599] %v646
                %v648 = vld [vmem:[%s606 + $0x280] sm:%s599]
                %649 = vst [vmem:[%s607 + $0xa0] sm:%s599] %v648
                %v650 = vld [vmem:[%s606 + $0x290] sm:%s599]
                %651 = vst [vmem:[%s607 + $0xa8] sm:%s599] %v650
                %v652 = vld [vmem:[%s606 + $0x2a0] sm:%s599]
                %653 = vst [vmem:[%s607 + $0xb0] sm:%s599] %v652
                %v654 = vld [vmem:[%s606 + $0x2b0] sm:%s599]
                %655 = vst [vmem:[%s607 + $0xb8] sm:%s599] %v654
                %v656 = vld [vmem:[%s606 + $0x300] sm:%s599]
                %657 = vst [vmem:[%s607 + $0xc0] sm:%s599] %v656
                %v658 = vld [vmem:[%s606 + $0x310] sm:%s599]
                %659 = vst [vmem:[%s607 + $0xc8] sm:%s599] %v658
                %v660 = vld [vmem:[%s606 + $0x320] sm:%s599]
                %661 = vst [vmem:[%s607 + $0xd0] sm:%s599] %v660
                %v662 = vld [vmem:[%s606 + $0x330] sm:%s599]
                %663 = vst [vmem:[%s607 + $0xd8] sm:%s599] %v662
                %v664 = vld [vmem:[%s606 + $0x380] sm:%s599]
                %665 = vst [vmem:[%s607 + $0xe0] sm:%s599] %v664
                %v666 = vld [vmem:[%s606 + $0x390] sm:%s599]
                %667 = vst [vmem:[%s607 + $0xe8] sm:%s599] %v666
                %v668 = vld [vmem:[%s606 + $0x3a0] sm:%s599]
                %669 = vst [vmem:[%s607 + $0xf0] sm:%s599] %v668
                %v670 = vld [vmem:[%s606 + $0x3b0] sm:%s599]
                %671 = vst [vmem:[%s607 + $0xf8] sm:%s599] %v670
              $region151: #{a_call__.1} parent=145 // loop_footer
                %s605 = sadd.s32 1, %s601
              $region152: #{a_call__.1} parent=145 // loop_footer_branch
                %600 = sbr.rel target = $region148
              $region153: #{a_call__.1} parent=145 // loop_exit
                _
            $region146: #{a_call__.1} parent=137 // pred_fallthru
              _
          $region138: #{a_call__.1} parent=133 // pred_fallthru
            _
          %748 = vnop
        $region134: #{a_call__.1} parent=15 // pred_fallthru
          _
      $region16: #{a_call__.1} parent=5 // pred_fallthru
        _
      %p749 = scmp.le.s32.totalorder 1, %s12
      %p750 = scmp.lt.s32.totalorder %s12, 5
      %p751 = pnand %p749, %p750
      %p752 = pneg %p751
      // Predicated region
      $region169: #{a_call__.1} parent=5 // pred_check
        _
      $region170: #{a_call__.1} parent=5 // pred_check_branch
        %754 = sbr.rel (%p751) target = $region172
      $region171: #{a_call__.1} parent=5 // pred_region
        %s755 = ssub.s32 %s12, 1
        %s756 = sand.u32 %s37, 1
        %s757 = sand.u32 %s37, 1
        %s758 = smul.addr %s757, 128
        %s759 = scalar_lea.vmem [#allocation2], %s758
        // Predicated region
        $region173: #{a_call__.1} parent=171 // pred_check
          %p760 = pneg %p50
        $region174: #{a_call__.1} parent=171 // pred_check_branch
          %762 = sbr.rel (%p760) target = $region176
        $region175: #{a_call__.1} parent=171 // pred_region
          _
        $region176: #{a_call__.1} parent=171 // pred_fallthru
          _
        %s763 = sand.u32 %s63, 1
        %s764 = sand.u32 %s63, 1
        %s765 = smul.addr %s764, 128
        %s766 = scalar_lea.vmem [#allocation3], %s765
        // Predicated region
        $region177: #{a_call__.1} parent=171 // pred_check
          %p767 = pneg %p76
        $region178: #{a_call__.1} parent=171 // pred_check_branch
          %769 = sbr.rel (%p767) target = $region180
        $region179: #{a_call__.1} parent=171 // pred_region
          _
        $region180: #{a_call__.1} parent=171 // pred_fallthru
          _
        %s770 = sand.u32 %s91, 1
        %s771 = sand.u32 %s91, 1
        %s772 = smul.addr %s771, 256
        %s773 = scalar_lea.vmem [#allocation4], %s772
        // Predicated region
        $region181: #{a_call__.1} parent=171 // pred_check
          %p774 = pneg %p104
        $region182: #{a_call__.1} parent=171 // pred_check_branch
          %776 = sbr.rel (%p774) target = $region184
        $region183: #{a_call__.1} parent=171 // pred_region
          _
        $region184: #{a_call__.1} parent=171 // pred_fallthru
          _
        %s777 = sand.u32 %s119, 1
        %s778 = sand.u32 %s119, 1
        %s779 = smul.addr %s778, 256
        %s780 = scalar_lea.vmem [#allocation5], %s779
        // Predicated region
        $region185: #{a_call__.1} parent=171 // pred_check
          %p781 = pneg %p132
        $region186: #{a_call__.1} parent=171 // pred_check_branch
          %783 = sbr.rel (%p781) target = $region188
        $region187: #{a_call__.1} parent=171 // pred_region
          _
        $region188: #{a_call__.1} parent=171 // pred_fallthru
          _
        %s784 = sand.u32 %s37, 1
        %s785 = sand.u32 %s37, 1
        %s786 = smul.addr %s785, 128
        %s787 = scalar_lea.vmem [#allocation2], %s786
        %p788 = pneg %p50
        %p789 = pneg %p47
        %s790 = sand.u32 %s63, 1
        %s791 = sand.u32 %s63, 1
        %s792 = smul.addr %s791, 128
        %s793 = scalar_lea.vmem [#allocation3], %s792
        %p794 = pneg %p76
        %p795 = pneg %p73
        %s796 = sand.u32 %s91, 1
        %s797 = sand.u32 %s91, 1
        %s798 = smul.addr %s797, 256
        %s799 = scalar_lea.vmem [#allocation4], %s798
        %p800 = pneg %p104
        %p801 = pneg %p101
        %s802 = sand.u32 %s119, 1
        %s803 = sand.u32 %s119, 1
        %s804 = smul.addr %s803, 256
        %s805 = scalar_lea.vmem [#allocation5], %s804
        %p806 = pneg %p132
        %p807 = pneg %p129
        %p808 = pneg %p160
        %p809 = pneg %p157
        %s810 = sand.u32 %s147, 1
        %s811 = sand.u32 %s147, 1
        %s812 = smul.addr %s811, 64
        %s813 = scalar_lea.vmem [#allocation6], %s812
        %p814 = pneg %p188
        %p815 = pneg %p185
        %s816 = sand.u32 %s175, 1
        %s817 = sand.u32 %s175, 1
        %s818 = smul.addr %s817, 64
        %s819 = scalar_lea.vmem [#allocation7], %s818
        %s820 = smul.u32 4, %s22
        %s821 = smul.u32 4, %s22
        %s822 = smul.u32 4, %s22
        %s823 = smul.u32 4, %s22
        %v824 = vld [vmem:[%s759] sm:$0xff]
        %v825 = vld [vmem:[%s759 + $0x8] sm:$0xff]
        %v826 = vld [vmem:[%s766] sm:$0xff]
        %v827 = vld [vmem:[%s766 + $0x8] sm:$0xff]
        %v828 = vld [vmem:[%s773] sm:$0xff]
        %v829 = vld [vmem:[%s773 + $0x8] sm:$0xff]
        %v830 = vld [vmem:[%s773 + $0x10] sm:$0xff]
        %v831 = vld [vmem:[%s773 + $0x18] sm:$0xff]
        %v832 = vld [vmem:[%s780] sm:$0xff]
        %v833 = vld [vmem:[%s780 + $0x8] sm:$0xff]
        %v834 = vld [vmem:[%s780 + $0x10] sm:$0xff]
        %v835 = vld [vmem:[%s780 + $0x18] sm:$0xff]
        %v836 = vmul.f32 %v824, %v828
        %v837 = vmul.f32 %v825, %v828
        %v838 = vmul.f32 %v824, %v829
        %v839 = vmul.f32 %v825, %v829
        %v840 = vmul.f32 %v824, %v830
        %v841 = vmul.f32 %v825, %v830
        %v842 = vmul.f32 %v824, %v831
        %v843 = vmul.f32 %v825, %v831
        %v844 = vmul.f32 %v826, %v832
        %v845 = vmul.f32 %v827, %v832
        %v846 = vmul.f32 %v826, %v833
        %v847 = vmul.f32 %v827, %v833
        %v848 = vmul.f32 %v826, %v834
        %v849 = vmul.f32 %v827, %v834
        %v850 = vmul.f32 %v826, %v835
        %v851 = vmul.f32 %v827, %v835
        %v852 = vsub.f32 %v836, %v844
        %v853 = vsub.f32 %v837, %v845
        %v854 = vsub.f32 %v838, %v846
        %v855 = vsub.f32 %v839, %v847
        %v856 = vsub.f32 %v840, %v848
        %v857 = vsub.f32 %v841, %v849
        %v858 = vsub.f32 %v842, %v850
        %v859 = vsub.f32 %v843, %v851
        %v860 = vadd.f32 %v852, 0.0
        %v861 = vadd.f32 %v853, 0.0
        %v862 = vadd.f32 %v854, 0.0
        %v863 = vadd.f32 %v855, 0.0
        %v864 = vadd.f32 %v856, 0.0
        %v865 = vadd.f32 %v857, 0.0
        %v866 = vadd.f32 %v858, 0.0
        %v867 = vadd.f32 %v859, 0.0
        %v868 = vmul.f32 %v824, %v832
        %v869 = vmul.f32 %v825, %v832
        %v870 = vmul.f32 %v824, %v833
        %v871 = vmul.f32 %v825, %v833
        %v872 = vmul.f32 %v824, %v834
        %v873 = vmul.f32 %v825, %v834
        %v874 = vmul.f32 %v824, %v835
        %v875 = vmul.f32 %v825, %v835
        %v876 = vmul.f32 %v826, %v828
        %v877 = vmul.f32 %v827, %v828
        %v878 = vmul.f32 %v826, %v829
        %v879 = vmul.f32 %v827, %v829
        %v880 = vmul.f32 %v826, %v830
        %v881 = vmul.f32 %v827, %v830
        %v882 = vmul.f32 %v826, %v831
        %v883 = vmul.f32 %v827, %v831
        %v884 = vadd.f32 %v868, %v876
        %v885 = vadd.f32 %v869, %v877
        %v886 = vadd.f32 %v870, %v878
        %v887 = vadd.f32 %v871, %v879
        %v888 = vadd.f32 %v872, %v880
        %v889 = vadd.f32 %v873, %v881
        %v890 = vadd.f32 %v874, %v882
        %v891 = vadd.f32 %v875, %v883
        %v892 = vadd.f32 %v884, 0.0
        %v893 = vadd.f32 %v885, 0.0
        %v894 = vadd.f32 %v886, 0.0
        %v895 = vadd.f32 %v887, 0.0
        %v896 = vadd.f32 %v888, 0.0
        %v897 = vadd.f32 %v889, 0.0
        %v898 = vadd.f32 %v890, 0.0
        %v899 = vadd.f32 %v891, 0.0
        %s900 = scalar_lea.vmem %s759, 16 [#allocation2]
        %v901 = vld [vmem:[%s900] sm:$0xff]
        %v902 = vld [vmem:[%s900 + $0x8] sm:$0xff]
        %s903 = scalar_lea.vmem %s766, 16 [#allocation3]
        %v904 = vld [vmem:[%s903] sm:$0xff]
        %v905 = vld [vmem:[%s903 + $0x8] sm:$0xff]
        %s906 = scalar_lea.vmem %s773, 32 [#allocation4]
        %v907 = vld [vmem:[%s906] sm:$0xff]
        %v908 = vld [vmem:[%s906 + $0x8] sm:$0xff]
        %v909 = vld [vmem:[%s906 + $0x10] sm:$0xff]
        %v910 = vld [vmem:[%s906 + $0x18] sm:$0xff]
        %s911 = scalar_lea.vmem %s780, 32 [#allocation5]
        %v912 = vld [vmem:[%s911] sm:$0xff]
        %v913 = vld [vmem:[%s911 + $0x8] sm:$0xff]
        %v914 = vld [vmem:[%s911 + $0x10] sm:$0xff]
        %v915 = vld [vmem:[%s911 + $0x18] sm:$0xff]
        %v916 = vmul.f32 %v901, %v907
        %v917 = vmul.f32 %v902, %v907
        %v918 = vmul.f32 %v901, %v908
        %v919 = vmul.f32 %v902, %v908
        %v920 = vmul.f32 %v901, %v909
        %v921 = vmul.f32 %v902, %v909
        %v922 = vmul.f32 %v901, %v910
        %v923 = vmul.f32 %v902, %v910
        %v924 = vmul.f32 %v904, %v912
        %v925 = vmul.f32 %v905, %v912
        %v926 = vmul.f32 %v904, %v913
        %v927 = vmul.f32 %v905, %v913
        %v928 = vmul.f32 %v904, %v914
        %v929 = vmul.f32 %v905, %v914
        %v930 = vmul.f32 %v904, %v915
        %v931 = vmul.f32 %v905, %v915
        %v932 = vsub.f32 %v916, %v924
        %v933 = vsub.f32 %v917, %v925
        %v934 = vsub.f32 %v918, %v926
        %v935 = vsub.f32 %v919, %v927
        %v936 = vsub.f32 %v920, %v928
        %v937 = vsub.f32 %v921, %v929
        %v938 = vsub.f32 %v922, %v930
        %v939 = vsub.f32 %v923, %v931
        %v940 = vadd.f32 %v860, %v932
        %v941 = vadd.f32 %v861, %v933
        %v942 = vadd.f32 %v862, %v934
        %v943 = vadd.f32 %v863, %v935
        %v944 = vadd.f32 %v864, %v936
        %v945 = vadd.f32 %v865, %v937
        %v946 = vadd.f32 %v866, %v938
        %v947 = vadd.f32 %v867, %v939
        %v948 = vmul.f32 %v901, %v912
        %v949 = vmul.f32 %v902, %v912
        %v950 = vmul.f32 %v901, %v913
        %v951 = vmul.f32 %v902, %v913
        %v952 = vmul.f32 %v901, %v914
        %v953 = vmul.f32 %v902, %v914
        %v954 = vmul.f32 %v901, %v915
        %v955 = vmul.f32 %v902, %v915
        %v956 = vmul.f32 %v904, %v907
        %v957 = vmul.f32 %v905, %v907
        %v958 = vmul.f32 %v904, %v908
        %v959 = vmul.f32 %v905, %v908
        %v960 = vmul.f32 %v904, %v909
        %v961 = vmul.f32 %v905, %v909
        %v962 = vmul.f32 %v904, %v910
        %v963 = vmul.f32 %v905, %v910
        %v964 = vadd.f32 %v948, %v956
        %v965 = vadd.f32 %v949, %v957
        %v966 = vadd.f32 %v950, %v958
        %v967 = vadd.f32 %v951, %v959
        %v968 = vadd.f32 %v952, %v960
        %v969 = vadd.f32 %v953, %v961
        %v970 = vadd.f32 %v954, %v962
        %v971 = vadd.f32 %v955, %v963
        %v972 = vadd.f32 %v892, %v964
        %v973 = vadd.f32 %v893, %v965
        %v974 = vadd.f32 %v894, %v966
        %v975 = vadd.f32 %v895, %v967
        %v976 = vadd.f32 %v896, %v968
        %v977 = vadd.f32 %v897, %v969
        %v978 = vadd.f32 %v898, %v970
        %v979 = vadd.f32 %v899, %v971
        %s980 = scalar_lea.vmem %s759, 32 [#allocation2]
        %v981 = vld [vmem:[%s980] sm:$0xff]
        %v982 = vld [vmem:[%s980 + $0x8] sm:$0xff]
        %s983 = scalar_lea.vmem %s766, 32 [#allocation3]
        %v984 = vld [vmem:[%s983] sm:$0xff]
        %v985 = vld [vmem:[%s983 + $0x8] sm:$0xff]
        %s986 = scalar_lea.vmem %s773, 64 [#allocation4]
        %v987 = vld [vmem:[%s986] sm:$0xff]
        %v988 = vld [vmem:[%s986 + $0x8] sm:$0xff]
        %v989 = vld [vmem:[%s986 + $0x10] sm:$0xff]
        %v990 = vld [vmem:[%s986 + $0x18] sm:$0xff]
        %s991 = scalar_lea.vmem %s780, 64 [#allocation5]
        %v992 = vld [vmem:[%s991] sm:$0xff]
        %v993 = vld [vmem:[%s991 + $0x8] sm:$0xff]
        %v994 = vld [vmem:[%s991 + $0x10] sm:$0xff]
        %v995 = vld [vmem:[%s991 + $0x18] sm:$0xff]
        %v996 = vmul.f32 %v981, %v987
        %v997 = vmul.f32 %v982, %v987
        %v998 = vmul.f32 %v981, %v988
        %v999 = vmul.f32 %v982, %v988
        %v1000 = vmul.f32 %v981, %v989
        %v1001 = vmul.f32 %v982, %v989
        %v1002 = vmul.f32 %v981, %v990
        %v1003 = vmul.f32 %v982, %v990
        %v1004 = vmul.f32 %v984, %v992
        %v1005 = vmul.f32 %v985, %v992
        %v1006 = vmul.f32 %v984, %v993
        %v1007 = vmul.f32 %v985, %v993
        %v1008 = vmul.f32 %v984, %v994
        %v1009 = vmul.f32 %v985, %v994
        %v1010 = vmul.f32 %v984, %v995
        %v1011 = vmul.f32 %v985, %v995
        %v1012 = vsub.f32 %v996, %v1004
        %v1013 = vsub.f32 %v997, %v1005
        %v1014 = vsub.f32 %v998, %v1006
        %v1015 = vsub.f32 %v999, %v1007
        %v1016 = vsub.f32 %v1000, %v1008
        %v1017 = vsub.f32 %v1001, %v1009
        %v1018 = vsub.f32 %v1002, %v1010
        %v1019 = vsub.f32 %v1003, %v1011
        %v1020 = vadd.f32 %v940, %v1012
        %v1021 = vadd.f32 %v941, %v1013
        %v1022 = vadd.f32 %v942, %v1014
        %v1023 = vadd.f32 %v943, %v1015
        %v1024 = vadd.f32 %v944, %v1016
        %v1025 = vadd.f32 %v945, %v1017
        %v1026 = vadd.f32 %v946, %v1018
        %v1027 = vadd.f32 %v947, %v1019
        %v1028 = vmul.f32 %v981, %v992
        %v1029 = vmul.f32 %v982, %v992
        %v1030 = vmul.f32 %v981, %v993
        %v1031 = vmul.f32 %v982, %v993
        %v1032 = vmul.f32 %v981, %v994
        %v1033 = vmul.f32 %v982, %v994
        %v1034 = vmul.f32 %v981, %v995
        %v1035 = vmul.f32 %v982, %v995
        %v1036 = vmul.f32 %v984, %v987
        %v1037 = vmul.f32 %v985, %v987
        %v1038 = vmul.f32 %v984, %v988
        %v1039 = vmul.f32 %v985, %v988
        %v1040 = vmul.f32 %v984, %v989
        %v1041 = vmul.f32 %v985, %v989
        %v1042 = vmul.f32 %v984, %v990
        %v1043 = vmul.f32 %v985, %v990
        %v1044 = vadd.f32 %v1028, %v1036
        %v1045 = vadd.f32 %v1029, %v1037
        %v1046 = vadd.f32 %v1030, %v1038
        %v1047 = vadd.f32 %v1031, %v1039
        %v1048 = vadd.f32 %v1032, %v1040
        %v1049 = vadd.f32 %v1033, %v1041
        %v1050 = vadd.f32 %v1034, %v1042
        %v1051 = vadd.f32 %v1035, %v1043
        %v1052 = vadd.f32 %v972, %v1044
        %v1053 = vadd.f32 %v973, %v1045
        %v1054 = vadd.f32 %v974, %v1046
        %v1055 = vadd.f32 %v975, %v1047
        %v1056 = vadd.f32 %v976, %v1048
        %v1057 = vadd.f32 %v977, %v1049
        %v1058 = vadd.f32 %v978, %v1050
        %v1059 = vadd.f32 %v979, %v1051
        %s1060 = scalar_lea.vmem %s759, 48 [#allocation2]
        %v1061 = vld [vmem:[%s1060] sm:$0xff]
        %v1062 = vld [vmem:[%s1060 + $0x8] sm:$0xff]
        %s1063 = scalar_lea.vmem %s766, 48 [#allocation3]
        %v1064 = vld [vmem:[%s1063] sm:$0xff]
        %v1065 = vld [vmem:[%s1063 + $0x8] sm:$0xff]
        %s1066 = scalar_lea.vmem %s773, 96 [#allocation4]
        %v1067 = vld [vmem:[%s1066] sm:$0xff]
        %v1068 = vld [vmem:[%s1066 + $0x8] sm:$0xff]
        %v1069 = vld [vmem:[%s1066 + $0x10] sm:$0xff]
        %v1070 = vld [vmem:[%s1066 + $0x18] sm:$0xff]
        %s1071 = scalar_lea.vmem %s780, 96 [#allocation5]
        %v1072 = vld [vmem:[%s1071] sm:$0xff]
        %v1073 = vld [vmem:[%s1071 + $0x8] sm:$0xff]
        %v1074 = vld [vmem:[%s1071 + $0x10] sm:$0xff]
        %v1075 = vld [vmem:[%s1071 + $0x18] sm:$0xff]
        %v1076 = vmul.f32 %v1061, %v1067
        %v1077 = vmul.f32 %v1062, %v1067
        %v1078 = vmul.f32 %v1061, %v1068
        %v1079 = vmul.f32 %v1062, %v1068
        %v1080 = vmul.f32 %v1061, %v1069
        %v1081 = vmul.f32 %v1062, %v1069
        %v1082 = vmul.f32 %v1061, %v1070
        %v1083 = vmul.f32 %v1062, %v1070
        %v1084 = vmul.f32 %v1064, %v1072
        %v1085 = vmul.f32 %v1065, %v1072
        %v1086 = vmul.f32 %v1064, %v1073
        %v1087 = vmul.f32 %v1065, %v1073
        %v1088 = vmul.f32 %v1064, %v1074
        %v1089 = vmul.f32 %v1065, %v1074
        %v1090 = vmul.f32 %v1064, %v1075
        %v1091 = vmul.f32 %v1065, %v1075
        %v1092 = vsub.f32 %v1076, %v1084
        %v1093 = vsub.f32 %v1077, %v1085
        %v1094 = vsub.f32 %v1078, %v1086
        %v1095 = vsub.f32 %v1079, %v1087
        %v1096 = vsub.f32 %v1080, %v1088
        %v1097 = vsub.f32 %v1081, %v1089
        %v1098 = vsub.f32 %v1082, %v1090
        %v1099 = vsub.f32 %v1083, %v1091
        %v1100 = vadd.f32 %v1020, %v1092
        %v1101 = vadd.f32 %v1021, %v1093
        %v1102 = vadd.f32 %v1022, %v1094
        %v1103 = vadd.f32 %v1023, %v1095
        %v1104 = vadd.f32 %v1024, %v1096
        %v1105 = vadd.f32 %v1025, %v1097
        %v1106 = vadd.f32 %v1026, %v1098
        %v1107 = vadd.f32 %v1027, %v1099
        %v1108 = vmul.f32 %v1061, %v1072
        %v1109 = vmul.f32 %v1062, %v1072
        %v1110 = vmul.f32 %v1061, %v1073
        %v1111 = vmul.f32 %v1062, %v1073
        %v1112 = vmul.f32 %v1061, %v1074
        %v1113 = vmul.f32 %v1062, %v1074
        %v1114 = vmul.f32 %v1061, %v1075
        %v1115 = vmul.f32 %v1062, %v1075
        %v1116 = vmul.f32 %v1064, %v1067
        %v1117 = vmul.f32 %v1065, %v1067
        %v1118 = vmul.f32 %v1064, %v1068
        %v1119 = vmul.f32 %v1065, %v1068
        %v1120 = vmul.f32 %v1064, %v1069
        %v1121 = vmul.f32 %v1065, %v1069
        %v1122 = vmul.f32 %v1064, %v1070
        %v1123 = vmul.f32 %v1065, %v1070
        %v1124 = vadd.f32 %v1108, %v1116
        %v1125 = vadd.f32 %v1109, %v1117
        %v1126 = vadd.f32 %v1110, %v1118
        %v1127 = vadd.f32 %v1111, %v1119
        %v1128 = vadd.f32 %v1112, %v1120
        %v1129 = vadd.f32 %v1113, %v1121
        %v1130 = vadd.f32 %v1114, %v1122
        %v1131 = vadd.f32 %v1115, %v1123
        %v1132 = vadd.f32 %v1052, %v1124
        %v1133 = vadd.f32 %v1053, %v1125
        %v1134 = vadd.f32 %v1054, %v1126
        %v1135 = vadd.f32 %v1055, %v1127
        %v1136 = vadd.f32 %v1056, %v1128
        %v1137 = vadd.f32 %v1057, %v1129
        %v1138 = vadd.f32 %v1058, %v1130
        %v1139 = vadd.f32 %v1059, %v1131
        %s1140 = scalar_lea.vmem %s759, 64 [#allocation2]
        %v1141 = vld [vmem:[%s1140] sm:$0xff]
        %v1142 = vld [vmem:[%s1140 + $0x8] sm:$0xff]
        %s1143 = scalar_lea.vmem %s766, 64 [#allocation3]
        %v1144 = vld [vmem:[%s1143] sm:$0xff]
        %v1145 = vld [vmem:[%s1143 + $0x8] sm:$0xff]
        %s1146 = scalar_lea.vmem %s773, 128 [#allocation4]
        %v1147 = vld [vmem:[%s1146] sm:$0xff]
        %v1148 = vld [vmem:[%s1146 + $0x8] sm:$0xff]
        %v1149 = vld [vmem:[%s1146 + $0x10] sm:$0xff]
        %v1150 = vld [vmem:[%s1146 + $0x18] sm:$0xff]
        %s1151 = scalar_lea.vmem %s780, 128 [#allocation5]
        %v1152 = vld [vmem:[%s1151] sm:$0xff]
        %v1153 = vld [vmem:[%s1151 + $0x8] sm:$0xff]
        %v1154 = vld [vmem:[%s1151 + $0x10] sm:$0xff]
        %v1155 = vld [vmem:[%s1151 + $0x18] sm:$0xff]
        %v1156 = vmul.f32 %v1141, %v1147
        %v1157 = vmul.f32 %v1142, %v1147
        %v1158 = vmul.f32 %v1141, %v1148
        %v1159 = vmul.f32 %v1142, %v1148
        %v1160 = vmul.f32 %v1141, %v1149
        %v1161 = vmul.f32 %v1142, %v1149
        %v1162 = vmul.f32 %v1141, %v1150
        %v1163 = vmul.f32 %v1142, %v1150
        %v1164 = vmul.f32 %v1144, %v1152
        %v1165 = vmul.f32 %v1145, %v1152
        %v1166 = vmul.f32 %v1144, %v1153
        %v1167 = vmul.f32 %v1145, %v1153
        %v1168 = vmul.f32 %v1144, %v1154
        %v1169 = vmul.f32 %v1145, %v1154
        %v1170 = vmul.f32 %v1144, %v1155
        %v1171 = vmul.f32 %v1145, %v1155
        %v1172 = vsub.f32 %v1156, %v1164
        %v1173 = vsub.f32 %v1157, %v1165
        %v1174 = vsub.f32 %v1158, %v1166
        %v1175 = vsub.f32 %v1159, %v1167
        %v1176 = vsub.f32 %v1160, %v1168
        %v1177 = vsub.f32 %v1161, %v1169
        %v1178 = vsub.f32 %v1162, %v1170
        %v1179 = vsub.f32 %v1163, %v1171
        %v1180 = vadd.f32 %v1100, %v1172
        %v1181 = vadd.f32 %v1101, %v1173
        %v1182 = vadd.f32 %v1102, %v1174
        %v1183 = vadd.f32 %v1103, %v1175
        %v1184 = vadd.f32 %v1104, %v1176
        %v1185 = vadd.f32 %v1105, %v1177
        %v1186 = vadd.f32 %v1106, %v1178
        %v1187 = vadd.f32 %v1107, %v1179
        %v1188 = vmul.f32 %v1141, %v1152
        %v1189 = vmul.f32 %v1142, %v1152
        %v1190 = vmul.f32 %v1141, %v1153
        %v1191 = vmul.f32 %v1142, %v1153
        %v1192 = vmul.f32 %v1141, %v1154
        %v1193 = vmul.f32 %v1142, %v1154
        %v1194 = vmul.f32 %v1141, %v1155
        %v1195 = vmul.f32 %v1142, %v1155
        %v1196 = vmul.f32 %v1144, %v1147
        %v1197 = vmul.f32 %v1145, %v1147
        %v1198 = vmul.f32 %v1144, %v1148
        %v1199 = vmul.f32 %v1145, %v1148
        %v1200 = vmul.f32 %v1144, %v1149
        %v1201 = vmul.f32 %v1145, %v1149
        %v1202 = vmul.f32 %v1144, %v1150
        %v1203 = vmul.f32 %v1145, %v1150
        %v1204 = vadd.f32 %v1188, %v1196
        %v1205 = vadd.f32 %v1189, %v1197
        %v1206 = vadd.f32 %v1190, %v1198
        %v1207 = vadd.f32 %v1191, %v1199
        %v1208 = vadd.f32 %v1192, %v1200
        %v1209 = vadd.f32 %v1193, %v1201
        %v1210 = vadd.f32 %v1194, %v1202
        %v1211 = vadd.f32 %v1195, %v1203
        %v1212 = vadd.f32 %v1132, %v1204
        %v1213 = vadd.f32 %v1133, %v1205
        %v1214 = vadd.f32 %v1134, %v1206
        %v1215 = vadd.f32 %v1135, %v1207
        %v1216 = vadd.f32 %v1136, %v1208
        %v1217 = vadd.f32 %v1137, %v1209
        %v1218 = vadd.f32 %v1138, %v1210
        %v1219 = vadd.f32 %v1139, %v1211
        %s1220 = scalar_lea.vmem %s759, 80 [#allocation2]
        %v1221 = vld [vmem:[%s1220] sm:$0xff]
        %v1222 = vld [vmem:[%s1220 + $0x8] sm:$0xff]
        %s1223 = scalar_lea.vmem %s766, 80 [#allocation3]
        %v1224 = vld [vmem:[%s1223] sm:$0xff]
        %v1225 = vld [vmem:[%s1223 + $0x8] sm:$0xff]
        %s1226 = scalar_lea.vmem %s773, 160 [#allocation4]
        %v1227 = vld [vmem:[%s1226] sm:$0xff]
        %v1228 = vld [vmem:[%s1226 + $0x8] sm:$0xff]
        %v1229 = vld [vmem:[%s1226 + $0x10] sm:$0xff]
        %v1230 = vld [vmem:[%s1226 + $0x18] sm:$0xff]
        %s1231 = scalar_lea.vmem %s780, 160 [#allocation5]
        %v1232 = vld [vmem:[%s1231] sm:$0xff]
        %v1233 = vld [vmem:[%s1231 + $0x8] sm:$0xff]
        %v1234 = vld [vmem:[%s1231 + $0x10] sm:$0xff]
        %v1235 = vld [vmem:[%s1231 + $0x18] sm:$0xff]
        %v1236 = vmul.f32 %v1221, %v1227
        %v1237 = vmul.f32 %v1222, %v1227
        %v1238 = vmul.f32 %v1221, %v1228
        %v1239 = vmul.f32 %v1222, %v1228
        %v1240 = vmul.f32 %v1221, %v1229
        %v1241 = vmul.f32 %v1222, %v1229
        %v1242 = vmul.f32 %v1221, %v1230
        %v1243 = vmul.f32 %v1222, %v1230
        %v1244 = vmul.f32 %v1224, %v1232
        %v1245 = vmul.f32 %v1225, %v1232
        %v1246 = vmul.f32 %v1224, %v1233
        %v1247 = vmul.f32 %v1225, %v1233
        %v1248 = vmul.f32 %v1224, %v1234
        %v1249 = vmul.f32 %v1225, %v1234
        %v1250 = vmul.f32 %v1224, %v1235
        %v1251 = vmul.f32 %v1225, %v1235
        %v1252 = vsub.f32 %v1236, %v1244
        %v1253 = vsub.f32 %v1237, %v1245
        %v1254 = vsub.f32 %v1238, %v1246
        %v1255 = vsub.f32 %v1239, %v1247
        %v1256 = vsub.f32 %v1240, %v1248
        %v1257 = vsub.f32 %v1241, %v1249
        %v1258 = vsub.f32 %v1242, %v1250
        %v1259 = vsub.f32 %v1243, %v1251
        %v1260 = vadd.f32 %v1180, %v1252
        %v1261 = vadd.f32 %v1181, %v1253
        %v1262 = vadd.f32 %v1182, %v1254
        %v1263 = vadd.f32 %v1183, %v1255
        %v1264 = vadd.f32 %v1184, %v1256
        %v1265 = vadd.f32 %v1185, %v1257
        %v1266 = vadd.f32 %v1186, %v1258
        %v1267 = vadd.f32 %v1187, %v1259
        %v1268 = vmul.f32 %v1221, %v1232
        %v1269 = vmul.f32 %v1222, %v1232
        %v1270 = vmul.f32 %v1221, %v1233
        %v1271 = vmul.f32 %v1222, %v1233
        %v1272 = vmul.f32 %v1221, %v1234
        %v1273 = vmul.f32 %v1222, %v1234
        %v1274 = vmul.f32 %v1221, %v1235
        %v1275 = vmul.f32 %v1222, %v1235
        %v1276 = vmul.f32 %v1224, %v1227
        %v1277 = vmul.f32 %v1225, %v1227
        %v1278 = vmul.f32 %v1224, %v1228
        %v1279 = vmul.f32 %v1225, %v1228
        %v1280 = vmul.f32 %v1224, %v1229
        %v1281 = vmul.f32 %v1225, %v1229
        %v1282 = vmul.f32 %v1224, %v1230
        %v1283 = vmul.f32 %v1225, %v1230
        %v1284 = vadd.f32 %v1268, %v1276
        %v1285 = vadd.f32 %v1269, %v1277
        %v1286 = vadd.f32 %v1270, %v1278
        %v1287 = vadd.f32 %v1271, %v1279
        %v1288 = vadd.f32 %v1272, %v1280
        %v1289 = vadd.f32 %v1273, %v1281
        %v1290 = vadd.f32 %v1274, %v1282
        %v1291 = vadd.f32 %v1275, %v1283
        %v1292 = vadd.f32 %v1212, %v1284
        %v1293 = vadd.f32 %v1213, %v1285
        %v1294 = vadd.f32 %v1214, %v1286
        %v1295 = vadd.f32 %v1215, %v1287
        %v1296 = vadd.f32 %v1216, %v1288
        %v1297 = vadd.f32 %v1217, %v1289
        %v1298 = vadd.f32 %v1218, %v1290
        %v1299 = vadd.f32 %v1219, %v1291
        %s1300 = scalar_lea.vmem %s759, 96 [#allocation2]
        %v1301 = vld [vmem:[%s1300] sm:$0xff]
        %v1302 = vld [vmem:[%s1300 + $0x8] sm:$0xff]
        %s1303 = scalar_lea.vmem %s766, 96 [#allocation3]
        %v1304 = vld [vmem:[%s1303] sm:$0xff]
        %v1305 = vld [vmem:[%s1303 + $0x8] sm:$0xff]
        %s1306 = scalar_lea.vmem %s773, 192 [#allocation4]
        %v1307 = vld [vmem:[%s1306] sm:$0xff]
        %v1308 = vld [vmem:[%s1306 + $0x8] sm:$0xff]
        %v1309 = vld [vmem:[%s1306 + $0x10] sm:$0xff]
        %v1310 = vld [vmem:[%s1306 + $0x18] sm:$0xff]
        %s1311 = scalar_lea.vmem %s780, 192 [#allocation5]
        %v1312 = vld [vmem:[%s1311] sm:$0xff]
        %v1313 = vld [vmem:[%s1311 + $0x8] sm:$0xff]
        %v1314 = vld [vmem:[%s1311 + $0x10] sm:$0xff]
        %v1315 = vld [vmem:[%s1311 + $0x18] sm:$0xff]
        %v1316 = vmul.f32 %v1301, %v1307
        %v1317 = vmul.f32 %v1302, %v1307
        %v1318 = vmul.f32 %v1301, %v1308
        %v1319 = vmul.f32 %v1302, %v1308
        %v1320 = vmul.f32 %v1301, %v1309
        %v1321 = vmul.f32 %v1302, %v1309
        %v1322 = vmul.f32 %v1301, %v1310
        %v1323 = vmul.f32 %v1302, %v1310
        %v1324 = vmul.f32 %v1304, %v1312
        %v1325 = vmul.f32 %v1305, %v1312
        %v1326 = vmul.f32 %v1304, %v1313
        %v1327 = vmul.f32 %v1305, %v1313
        %v1328 = vmul.f32 %v1304, %v1314
        %v1329 = vmul.f32 %v1305, %v1314
        %v1330 = vmul.f32 %v1304, %v1315
        %v1331 = vmul.f32 %v1305, %v1315
        %v1332 = vsub.f32 %v1316, %v1324
        %v1333 = vsub.f32 %v1317, %v1325
        %v1334 = vsub.f32 %v1318, %v1326
        %v1335 = vsub.f32 %v1319, %v1327
        %v1336 = vsub.f32 %v1320, %v1328
        %v1337 = vsub.f32 %v1321, %v1329
        %v1338 = vsub.f32 %v1322, %v1330
        %v1339 = vsub.f32 %v1323, %v1331
        %v1340 = vadd.f32 %v1260, %v1332
        %v1341 = vadd.f32 %v1261, %v1333
        %v1342 = vadd.f32 %v1262, %v1334
        %v1343 = vadd.f32 %v1263, %v1335
        %v1344 = vadd.f32 %v1264, %v1336
        %v1345 = vadd.f32 %v1265, %v1337
        %v1346 = vadd.f32 %v1266, %v1338
        %v1347 = vadd.f32 %v1267, %v1339
        %v1348 = vmul.f32 %v1301, %v1312
        %v1349 = vmul.f32 %v1302, %v1312
        %v1350 = vmul.f32 %v1301, %v1313
        %v1351 = vmul.f32 %v1302, %v1313
        %v1352 = vmul.f32 %v1301, %v1314
        %v1353 = vmul.f32 %v1302, %v1314
        %v1354 = vmul.f32 %v1301, %v1315
        %v1355 = vmul.f32 %v1302, %v1315
        %v1356 = vmul.f32 %v1304, %v1307
        %v1357 = vmul.f32 %v1305, %v1307
        %v1358 = vmul.f32 %v1304, %v1308
        %v1359 = vmul.f32 %v1305, %v1308
        %v1360 = vmul.f32 %v1304, %v1309
        %v1361 = vmul.f32 %v1305, %v1309
        %v1362 = vmul.f32 %v1304, %v1310
        %v1363 = vmul.f32 %v1305, %v1310
        %v1364 = vadd.f32 %v1348, %v1356
        %v1365 = vadd.f32 %v1349, %v1357
        %v1366 = vadd.f32 %v1350, %v1358
        %v1367 = vadd.f32 %v1351, %v1359
        %v1368 = vadd.f32 %v1352, %v1360
        %v1369 = vadd.f32 %v1353, %v1361
        %v1370 = vadd.f32 %v1354, %v1362
        %v1371 = vadd.f32 %v1355, %v1363
        %v1372 = vadd.f32 %v1292, %v1364
        %v1373 = vadd.f32 %v1293, %v1365
        %v1374 = vadd.f32 %v1294, %v1366
        %v1375 = vadd.f32 %v1295, %v1367
        %v1376 = vadd.f32 %v1296, %v1368
        %v1377 = vadd.f32 %v1297, %v1369
        %v1378 = vadd.f32 %v1298, %v1370
        %v1379 = vadd.f32 %v1299, %v1371
        %s1380 = scalar_lea.vmem %s759, 112 [#allocation2]
        %v1381 = vld [vmem:[%s1380] sm:$0xff]
        %v1382 = vld [vmem:[%s1380 + $0x8] sm:$0xff]
        %s1383 = scalar_lea.vmem %s766, 112 [#allocation3]
        %v1384 = vld [vmem:[%s1383] sm:$0xff]
        %v1385 = vld [vmem:[%s1383 + $0x8] sm:$0xff]
        %s1386 = scalar_lea.vmem %s773, 224 [#allocation4]
        %v1387 = vld [vmem:[%s1386] sm:$0xff]
        %v1388 = vld [vmem:[%s1386 + $0x8] sm:$0xff]
        %v1389 = vld [vmem:[%s1386 + $0x10] sm:$0xff]
        %v1390 = vld [vmem:[%s1386 + $0x18] sm:$0xff]
        %s1391 = scalar_lea.vmem %s780, 224 [#allocation5]
        %v1392 = vld [vmem:[%s1391] sm:$0xff]
        %v1393 = vld [vmem:[%s1391 + $0x8] sm:$0xff]
        %v1394 = vld [vmem:[%s1391 + $0x10] sm:$0xff]
        %v1395 = vld [vmem:[%s1391 + $0x18] sm:$0xff]
        %v1396 = vmul.f32 %v1381, %v1387
        %v1397 = vmul.f32 %v1382, %v1387
        %v1398 = vmul.f32 %v1381, %v1388
        %v1399 = vmul.f32 %v1382, %v1388
        %v1400 = vmul.f32 %v1381, %v1389
        %v1401 = vmul.f32 %v1382, %v1389
        %v1402 = vmul.f32 %v1381, %v1390
        %v1403 = vmul.f32 %v1382, %v1390
        %v1404 = vmul.f32 %v1384, %v1392
        %v1405 = vmul.f32 %v1385, %v1392
        %v1406 = vmul.f32 %v1384, %v1393
        %v1407 = vmul.f32 %v1385, %v1393
        %v1408 = vmul.f32 %v1384, %v1394
        %v1409 = vmul.f32 %v1385, %v1394
        %v1410 = vmul.f32 %v1384, %v1395
        %v1411 = vmul.f32 %v1385, %v1395
        %v1412 = vsub.f32 %v1396, %v1404
        %v1413 = vsub.f32 %v1397, %v1405
        %v1414 = vsub.f32 %v1398, %v1406
        %v1415 = vsub.f32 %v1399, %v1407
        %v1416 = vsub.f32 %v1400, %v1408
        %v1417 = vsub.f32 %v1401, %v1409
        %v1418 = vsub.f32 %v1402, %v1410
        %v1419 = vsub.f32 %v1403, %v1411
        %v1420 = vadd.f32 %v1340, %v1412
        %v1421 = vadd.f32 %v1341, %v1413
        %v1422 = vadd.f32 %v1342, %v1414
        %v1423 = vadd.f32 %v1343, %v1415
        %v1424 = vadd.f32 %v1344, %v1416
        %v1425 = vadd.f32 %v1345, %v1417
        %v1426 = vadd.f32 %v1346, %v1418
        %v1427 = vadd.f32 %v1347, %v1419
        %v1428 = vmul.f32 %v1381, %v1392
        %v1429 = vmul.f32 %v1382, %v1392
        %v1430 = vmul.f32 %v1381, %v1393
        %v1431 = vmul.f32 %v1382, %v1393
        %v1432 = vmul.f32 %v1381, %v1394
        %v1433 = vmul.f32 %v1382, %v1394
        %v1434 = vmul.f32 %v1381, %v1395
        %v1435 = vmul.f32 %v1382, %v1395
        %v1436 = vmul.f32 %v1384, %v1387
        %v1437 = vmul.f32 %v1385, %v1387
        %v1438 = vmul.f32 %v1384, %v1388
        %v1439 = vmul.f32 %v1385, %v1388
        %v1440 = vmul.f32 %v1384, %v1389
        %v1441 = vmul.f32 %v1385, %v1389
        %v1442 = vmul.f32 %v1384, %v1390
        %v1443 = vmul.f32 %v1385, %v1390
        %v1444 = vadd.f32 %v1428, %v1436
        %v1445 = vadd.f32 %v1429, %v1437
        %v1446 = vadd.f32 %v1430, %v1438
        %v1447 = vadd.f32 %v1431, %v1439
        %v1448 = vadd.f32 %v1432, %v1440
        %v1449 = vadd.f32 %v1433, %v1441
        %v1450 = vadd.f32 %v1434, %v1442
        %v1451 = vadd.f32 %v1435, %v1443
        %v1452 = vadd.f32 %v1372, %v1444
        %v1453 = vadd.f32 %v1373, %v1445
        %v1454 = vadd.f32 %v1374, %v1446
        %v1455 = vadd.f32 %v1375, %v1447
        %v1456 = vadd.f32 %v1376, %v1448
        %v1457 = vadd.f32 %v1377, %v1449
        %v1458 = vadd.f32 %v1378, %v1450
        %v1459 = vadd.f32 %v1379, %v1451
        %1460 = vst [vmem:[%s813] sm:$0xff] %v1420
        %1461 = vst [vmem:[%s813 + $0x8] sm:$0xff] %v1421
        %1462 = vst [vmem:[%s813 + $0x10] sm:$0xff] %v1422
        %1463 = vst [vmem:[%s813 + $0x18] sm:$0xff] %v1423
        %1464 = vst [vmem:[%s813 + $0x20] sm:$0xff] %v1424
        %1465 = vst [vmem:[%s813 + $0x28] sm:$0xff] %v1425
        %1466 = vst [vmem:[%s813 + $0x30] sm:$0xff] %v1426
        %1467 = vst [vmem:[%s813 + $0x38] sm:$0xff] %v1427
        %1468 = vst [vmem:[%s819] sm:$0xff] %v1452
        %1469 = vst [vmem:[%s819 + $0x8] sm:$0xff] %v1453
        %1470 = vst [vmem:[%s819 + $0x10] sm:$0xff] %v1454
        %1471 = vst [vmem:[%s819 + $0x18] sm:$0xff] %v1455
        %1472 = vst [vmem:[%s819 + $0x20] sm:$0xff] %v1456
        %1473 = vst [vmem:[%s819 + $0x28] sm:$0xff] %v1457
        %1474 = vst [vmem:[%s819 + $0x30] sm:$0xff] %v1458
        %1475 = vst [vmem:[%s819 + $0x38] sm:$0xff] %v1459
        %s1476 = sand.u32 %s147, 1
        %s1477 = sand.u32 %s147, 1
        %s1478 = smul.addr %s1477, 64
        %s1479 = scalar_lea.vmem [#allocation6], %s1478
        %s1480 = sand.u32 %s175, 1
        %s1481 = sand.u32 %s175, 1
        %s1482 = smul.addr %s1481, 64
        %s1483 = scalar_lea.vmem [#allocation7], %s1482
        // Predicated region
        $region189: #{a_call__.1} parent=171 // pred_check
          %p1484 = pneg %p157
        $region190: #{a_call__.1} parent=171 // pred_check_branch
          %1486 = sbr.rel (%p1484) target = $region192
        $region191: #{a_call__.1} parent=171 // pred_region
          %s1487 = smul.u32 4, %s22
          %s1488 = smul.addr %s1487, 4
          %s1489 = sadd.s32 %s21, %s1488
          %s1490 = smul.addr %s1489, 8
          %s1491 = scalar_lea.vmem %s4, %s1490
          // Predicated region
          $region193: #{a_call__.1} parent=191 // pred_check
            _
          $region194: #{a_call__.1} parent=191 // pred_check_branch
            %1493 = sbr.rel (0) target = $region196
          $region195: #{a_call__.1} parent=191 // pred_region
            // Predicated region
            $region197: #{a_call__.1} parent=195 // pred_check
              _
            $region198: #{a_call__.1} parent=195 // pred_check_branch
              %1495 = sbr.rel (0) target = $region200
            $region199: #{a_call__.1} parent=195 // pred_region
              // Predicated region
              $region212: #{a_call__.1} parent=199 // pred_check
                _
              $region213: #{a_call__.1} parent=199 // pred_check_branch
                %1525 = sbr.rel (0) target = $region215
              $region214: #{a_call__.1} parent=199 // pred_region
                loop: start=0, step=1, limit=1
                $region216: #{a_call__.1} parent=214 // loop_pre_header
                  _
                $region217: #{a_call__.1} parent=214 // loop_header
                  %s1527 = sphi 0, %s1531
                  %p1528 = scmp.ge.s32.totalorder %s1527, 1
                  %s1532 = sphi %s1479, %s1479
                  %s1533 = sphi %s1491, %s1491
                $region218: #{a_call__.1} parent=214 // loop_header_branch
                  %1530 = sbr.rel (%p1528) target = $region222
                $region219: #{a_call__.1} parent=214 // loop_body
                  %v1534 = vld [vmem:[%s1532] sm:$0xff]
                  %1535 = vst [vmem:[%s1533] sm:$0xff] %v1534
                  %v1536 = vld [vmem:[%s1532 + $0x8] sm:$0xff]
                  %1537 = vst [vmem:[%s1533 + $0x10] sm:$0xff] %v1536
                  %v1538 = vld [vmem:[%s1532 + $0x10] sm:$0xff]
                  %1539 = vst [vmem:[%s1533 + $0x20] sm:$0xff] %v1538
                  %v1540 = vld [vmem:[%s1532 + $0x18] sm:$0xff]
                  %1541 = vst [vmem:[%s1533 + $0x30] sm:$0xff] %v1540
                  %v1542 = vld [vmem:[%s1532 + $0x20] sm:$0xff]
                  %1543 = vst [vmem:[%s1533 + $0x40] sm:$0xff] %v1542
                  %v1544 = vld [vmem:[%s1532 + $0x28] sm:$0xff]
                  %1545 = vst [vmem:[%s1533 + $0x50] sm:$0xff] %v1544
                  %v1546 = vld [vmem:[%s1532 + $0x30] sm:$0xff]
                  %1547 = vst [vmem:[%s1533 + $0x60] sm:$0xff] %v1546
                  %v1548 = vld [vmem:[%s1532 + $0x38] sm:$0xff]
                  %1549 = vst [vmem:[%s1533 + $0x70] sm:$0xff] %v1548
                $region220: #{a_call__.1} parent=214 // loop_footer
                  %s1531 = sadd.s32 1, %s1527
                $region221: #{a_call__.1} parent=214 // loop_footer_branch
                  %1526 = sbr.rel target = $region217
                $region222: #{a_call__.1} parent=214 // loop_exit
                  _
              $region215: #{a_call__.1} parent=199 // pred_fallthru
                _
              // Predicated region
              $region223: #{a_call__.1} parent=199 // pred_check
                _
              $region224: #{a_call__.1} parent=199 // pred_check_branch
                %1551 = sbr.rel target = $region226
              $region225: #{a_call__.1} parent=199 // pred_region
                _
              $region226: #{a_call__.1} parent=199 // pred_fallthru
                _
            $region200: #{a_call__.1} parent=195 // pred_fallthru
              _
            // Predicated region
            $region201: #{a_call__.1} parent=195 // pred_check
              _
            $region202: #{a_call__.1} parent=195 // pred_check_branch
              %1497 = sbr.rel target = $region204
            $region203: #{a_call__.1} parent=195 // pred_region
              %s1499 = ssub.s32 256, 1
              loop: start=0, step=1, limit=1
              $region205: #{a_call__.1} parent=203 // loop_pre_header
                _
              $region206: #{a_call__.1} parent=203 // loop_header
                %s1501 = sphi 0, %s1505
                %p1502 = scmp.ge.s32.totalorder %s1501, 1
                %s1506 = sphi %s1479, %s1479
                %s1507 = sphi %s1491, %s1491
              $region207: #{a_call__.1} parent=203 // loop_header_branch
                %1504 = sbr.rel (%p1502) target = $region211
              $region208: #{a_call__.1} parent=203 // loop_body
                %v1508 = vld [vmem:[%s1506] sm:%s1499]
                %1509 = vst [vmem:[%s1507] sm:%s1499] %v1508
                %v1510 = vld [vmem:[%s1506 + $0x8] sm:%s1499]
                %1511 = vst [vmem:[%s1507 + $0x10] sm:%s1499] %v1510
                %v1512 = vld [vmem:[%s1506 + $0x10] sm:%s1499]
                %1513 = vst [vmem:[%s1507 + $0x20] sm:%s1499] %v1512
                %v1514 = vld [vmem:[%s1506 + $0x18] sm:%s1499]
                %1515 = vst [vmem:[%s1507 + $0x30] sm:%s1499] %v1514
                %v1516 = vld [vmem:[%s1506 + $0x20] sm:%s1499]
                %1517 = vst [vmem:[%s1507 + $0x40] sm:%s1499] %v1516
                %v1518 = vld [vmem:[%s1506 + $0x28] sm:%s1499]
                %1519 = vst [vmem:[%s1507 + $0x50] sm:%s1499] %v1518
                %v1520 = vld [vmem:[%s1506 + $0x30] sm:%s1499]
                %1521 = vst [vmem:[%s1507 + $0x60] sm:%s1499] %v1520
                %v1522 = vld [vmem:[%s1506 + $0x38] sm:%s1499]
                %1523 = vst [vmem:[%s1507 + $0x70] sm:%s1499] %v1522
              $region209: #{a_call__.1} parent=203 // loop_footer
                %s1505 = sadd.s32 1, %s1501
              $region210: #{a_call__.1} parent=203 // loop_footer_branch
                %1500 = sbr.rel target = $region206
              $region211: #{a_call__.1} parent=203 // loop_exit
                _
            $region204: #{a_call__.1} parent=195 // pred_fallthru
              _
          $region196: #{a_call__.1} parent=191 // pred_fallthru
            _
          %1552 = vnop
        $region192: #{a_call__.1} parent=171 // pred_fallthru
          _
        // Predicated region
        $region227: #{a_call__.1} parent=171 // pred_check
          %p1553 = pneg %p185
        $region228: #{a_call__.1} parent=171 // pred_check_branch
          %1555 = sbr.rel (%p1553) target = $region230
        $region229: #{a_call__.1} parent=171 // pred_region
          %s1556 = smul.u32 4, %s22
          %s1557 = smul.addr %s1556, 4
          %s1558 = sadd.s32 %s21, %s1557
          %s1559 = smul.addr %s1558, 8
          %s1560 = scalar_lea.vmem %s5, %s1559
          // Predicated region
          $region231: #{a_call__.1} parent=229 // pred_check
            _
          $region232: #{a_call__.1} parent=229 // pred_check_branch
            %1562 = sbr.rel (0) target = $region234
          $region233: #{a_call__.1} parent=229 // pred_region
            // Predicated region
            $region235: #{a_call__.1} parent=233 // pred_check
              _
            $region236: #{a_call__.1} parent=233 // pred_check_branch
              %1564 = sbr.rel (0) target = $region238
            $region237: #{a_call__.1} parent=233 // pred_region
              // Predicated region
              $region250: #{a_call__.1} parent=237 // pred_check
                _
              $region251: #{a_call__.1} parent=237 // pred_check_branch
                %1594 = sbr.rel (0) target = $region253
              $region252: #{a_call__.1} parent=237 // pred_region
                loop: start=0, step=1, limit=1
                $region254: #{a_call__.1} parent=252 // loop_pre_header
                  _
                $region255: #{a_call__.1} parent=252 // loop_header
                  %s1596 = sphi 0, %s1600
                  %p1597 = scmp.ge.s32.totalorder %s1596, 1
                  %s1601 = sphi %s1483, %s1483
                  %s1602 = sphi %s1560, %s1560
                $region256: #{a_call__.1} parent=252 // loop_header_branch
                  %1599 = sbr.rel (%p1597) target = $region260
                $region257: #{a_call__.1} parent=252 // loop_body
                  %v1603 = vld [vmem:[%s1601] sm:$0xff]
                  %1604 = vst [vmem:[%s1602] sm:$0xff] %v1603
                  %v1605 = vld [vmem:[%s1601 + $0x8] sm:$0xff]
                  %1606 = vst [vmem:[%s1602 + $0x10] sm:$0xff] %v1605
                  %v1607 = vld [vmem:[%s1601 + $0x10] sm:$0xff]
                  %1608 = vst [vmem:[%s1602 + $0x20] sm:$0xff] %v1607
                  %v1609 = vld [vmem:[%s1601 + $0x18] sm:$0xff]
                  %1610 = vst [vmem:[%s1602 + $0x30] sm:$0xff] %v1609
                  %v1611 = vld [vmem:[%s1601 + $0x20] sm:$0xff]
                  %1612 = vst [vmem:[%s1602 + $0x40] sm:$0xff] %v1611
                  %v1613 = vld [vmem:[%s1601 + $0x28] sm:$0xff]
                  %1614 = vst [vmem:[%s1602 + $0x50] sm:$0xff] %v1613
                  %v1615 = vld [vmem:[%s1601 + $0x30] sm:$0xff]
                  %1616 = vst [vmem:[%s1602 + $0x60] sm:$0xff] %v1615
                  %v1617 = vld [vmem:[%s1601 + $0x38] sm:$0xff]
                  %1618 = vst [vmem:[%s1602 + $0x70] sm:$0xff] %v1617
                $region258: #{a_call__.1} parent=252 // loop_footer
                  %s1600 = sadd.s32 1, %s1596
                $region259: #{a_call__.1} parent=252 // loop_footer_branch
                  %1595 = sbr.rel target = $region255
                $region260: #{a_call__.1} parent=252 // loop_exit
                  _
              $region253: #{a_call__.1} parent=237 // pred_fallthru
                _
              // Predicated region
              $region261: #{a_call__.1} parent=237 // pred_check
                _
              $region262: #{a_call__.1} parent=237 // pred_check_branch
                %1620 = sbr.rel target = $region264
              $region263: #{a_call__.1} parent=237 // pred_region
                _
              $region264: #{a_call__.1} parent=237 // pred_fallthru
                _
            $region238: #{a_call__.1} parent=233 // pred_fallthru
              _
            // Predicated region
            $region239: #{a_call__.1} parent=233 // pred_check
              _
            $region240: #{a_call__.1} parent=233 // pred_check_branch
              %1566 = sbr.rel target = $region242
            $region241: #{a_call__.1} parent=233 // pred_region
              %s1568 = ssub.s32 256, 1
              loop: start=0, step=1, limit=1
              $region243: #{a_call__.1} parent=241 // loop_pre_header
                _
              $region244: #{a_call__.1} parent=241 // loop_header
                %s1570 = sphi 0, %s1574
                %p1571 = scmp.ge.s32.totalorder %s1570, 1
                %s1575 = sphi %s1483, %s1483
                %s1576 = sphi %s1560, %s1560
              $region245: #{a_call__.1} parent=241 // loop_header_branch
                %1573 = sbr.rel (%p1571) target = $region249
              $region246: #{a_call__.1} parent=241 // loop_body
                %v1577 = vld [vmem:[%s1575] sm:%s1568]
                %1578 = vst [vmem:[%s1576] sm:%s1568] %v1577
                %v1579 = vld [vmem:[%s1575 + $0x8] sm:%s1568]
                %1580 = vst [vmem:[%s1576 + $0x10] sm:%s1568] %v1579
                %v1581 = vld [vmem:[%s1575 + $0x10] sm:%s1568]
                %1582 = vst [vmem:[%s1576 + $0x20] sm:%s1568] %v1581
                %v1583 = vld [vmem:[%s1575 + $0x18] sm:%s1568]
                %1584 = vst [vmem:[%s1576 + $0x30] sm:%s1568] %v1583
                %v1585 = vld [vmem:[%s1575 + $0x20] sm:%s1568]
                %1586 = vst [vmem:[%s1576 + $0x40] sm:%s1568] %v1585
                %v1587 = vld [vmem:[%s1575 + $0x28] sm:%s1568]
                %1588 = vst [vmem:[%s1576 + $0x50] sm:%s1568] %v1587
                %v1589 = vld [vmem:[%s1575 + $0x30] sm:%s1568]
                %1590 = vst [vmem:[%s1576 + $0x60] sm:%s1568] %v1589
                %v1591 = vld [vmem:[%s1575 + $0x38] sm:%s1568]
                %1592 = vst [vmem:[%s1576 + $0x70] sm:%s1568] %v1591
              $region247: #{a_call__.1} parent=241 // loop_footer
                %s1574 = sadd.s32 1, %s1570
              $region248: #{a_call__.1} parent=241 // loop_footer_branch
                %1569 = sbr.rel target = $region244
              $region249: #{a_call__.1} parent=241 // loop_exit
                _
            $region242: #{a_call__.1} parent=233 // pred_fallthru
              _
          $region234: #{a_call__.1} parent=229 // pred_fallthru
            _
          %1621 = vnop
        $region230: #{a_call__.1} parent=171 // pred_fallthru
          _
      $region172: #{a_call__.1} parent=5 // pred_fallthru
        _
      %p1622 = scmp.le.s32.totalorder 2, %s12
      // Predicated region
      $region265: #{a_call__.1} parent=5 // pred_check
        %p1623 = pneg %p1622
      $region266: #{a_call__.1} parent=5 // pred_check_branch
        %1625 = sbr.rel (%p1623) target = $region268
      $region267: #{a_call__.1} parent=5 // pred_region
        %s1626 = ssub.s32 %s12, 2
        // Predicated region
        $region269: #{a_call__.1} parent=267 // pred_check
          %p1627 = pneg %p163
        $region270: #{a_call__.1} parent=267 // pred_check_branch
          %1629 = sbr.rel (%p1627) target = $region272
        $region271: #{a_call__.1} parent=267 // pred_region
          %s1630 = sand.u32 %s148, 1
          %s1631 = sand.u32 %s148, 1
          %s1632 = smul.addr %s1631, 64
          %s1633 = scalar_lea.vmem [#allocation6], %s1632
        $region272: #{a_call__.1} parent=267 // pred_fallthru
          _
        // Predicated region
        $region273: #{a_call__.1} parent=267 // pred_check
          %p1634 = pneg %p191
        $region274: #{a_call__.1} parent=267 // pred_check_branch
          %1636 = sbr.rel (%p1634) target = $region276
        $region275: #{a_call__.1} parent=267 // pred_region
          %s1637 = sand.u32 %s176, 1
          %s1638 = sand.u32 %s176, 1
          %s1639 = smul.addr %s1638, 64
          %s1640 = scalar_lea.vmem [#allocation7], %s1639
        $region276: #{a_call__.1} parent=267 // pred_fallthru
          _
      $region268: #{a_call__.1} parent=5 // pred_fallthru
        _
    $region6: #{a_call__.1} parent=1 // loop_footer
      %s16 = sadd.s32 1, %s12
    $region7: #{a_call__.1} parent=1 // loop_footer_branch
      %11 = sbr.rel target = $region3
    $region8: #{a_call__.1} parent=1 // loop_exit
      _

// kernel: reverse.1
$region0: #{reverse.1}
  #allocation0 [shape = 's32[1]{0}', space=sflag, size = 0x4, scoped, tag = 'scoped memory for reverse.1']
  %s0 = inlined_call_operand.vmem [shape: f32[2,8,32,32,7], index: 0, kind: input, shape index: {}]
  %s1 = inlined_call_operand.vmem [shape: f32[2,8,32,32,7], index: 1, kind: output, shape index: {}]
  %s2 = scalar_lea.vmem %s0, 192
  %v3 = vld [vmem:[%s2] sm:$0xff]
  %4 = vst [vmem:[%s1] sm:$0xff] %v3
  %s5 = scalar_lea.vmem %s0, 1984
  %v6 = vld [vmem:[%s5] sm:$0xff]
  %s7 = scalar_lea.vmem %s1, 1792
  %8 = vst [vmem:[%s7] sm:$0xff] %v6
  %s9 = scalar_lea.vmem %s0, 416
  %v10 = vld [vmem:[%s9] sm:$0xff]
  %s11 = scalar_lea.vmem %s1, 224
  %12 = vst [vmem:[%s11] sm:$0xff] %v10
  %s13 = scalar_lea.vmem %s0, 2208
  %v14 = vld [vmem:[%s13] sm:$0xff]
  %s15 = scalar_lea.vmem %s1, 2016
  %16 = vst [vmem:[%s15] sm:$0xff] %v14
  %s17 = scalar_lea.vmem %s0, 640
  %v18 = vld [vmem:[%s17] sm:$0xff]
  %s19 = scalar_lea.vmem %s1, 448
  %20 = vst [vmem:[%s19] sm:$0xff] %v18
  %s21 = scalar_lea.vmem %s0, 2432
  %v22 = vld [vmem:[%s21] sm:$0xff]
  %s23 = scalar_lea.vmem %s1, 2240
  %24 = vst [vmem:[%s23] sm:$0xff] %v22
  %s25 = scalar_lea.vmem %s0, 864
  %v26 = vld [vmem:[%s25] sm:$0xff]
  %s27 = scalar_lea.vmem %s1, 672
  %28 = vst [vmem:[%s27] sm:$0xff] %v26
  %s29 = scalar_lea.vmem %s0, 2656
  %v30 = vld [vmem:[%s29] sm:$0xff]
  %s31 = scalar_lea.vmem %s1, 2464
  %32 = vst [vmem:[%s31] sm:$0xff] %v30
  %s33 = scalar_lea.vmem %s0, 1088
  %v34 = vld [vmem:[%s33] sm:$0xff]
  %s35 = scalar_lea.vmem %s1, 896
  %36 = vst [vmem:[%s35] sm:$0xff] %v34
  %s37 = scalar_lea.vmem %s0, 2880
  %v38 = vld [vmem:[%s37] sm:$0xff]
  %s39 = scalar_lea.vmem %s1, 2688
  %40 = vst [vmem:[%s39] sm:$0xff] %v38
  %s41 = scalar_lea.vmem %s0, 1312
  %v42 = vld [vmem:[%s41] sm:$0xff]
  %s43 = scalar_lea.vmem %s1, 1120
  %44 = vst [vmem:[%s43] sm:$0xff] %v42
  %s45 = scalar_lea.vmem %s0, 3104
  %v46 = vld [vmem:[%s45] sm:$0xff]
  %s47 = scalar_lea.vmem %s1, 2912
  %48 = vst [vmem:[%s47] sm:$0xff] %v46
  %s49 = scalar_lea.vmem %s0, 1536
  %v50 = vld [vmem:[%s49] sm:$0xff]
  %s51 = scalar_lea.vmem %s1, 1344
  %52 = vst [vmem:[%s51] sm:$0xff] %v50
  %s53 = scalar_lea.vmem %s0, 3328
  %v54 = vld [vmem:[%s53] sm:$0xff]
  %s55 = scalar_lea.vmem %s1, 3136
  %56 = vst [vmem:[%s55] sm:$0xff] %v54
  %s57 = scalar_lea.vmem %s0, 1760
  %v58 = vld [vmem:[%s57] sm:$0xff]
  %s59 = scalar_lea.vmem %s1, 1568
  %60 = vst [vmem:[%s59] sm:$0xff] %v58
  %s61 = scalar_lea.vmem %s0, 3552
  %v62 = vld [vmem:[%s61] sm:$0xff]
  %s63 = scalar_lea.vmem %s1, 3360
  %64 = vst [vmem:[%s63] sm:$0xff] %v62
  %s65 = scalar_lea.vmem %s0, 160
  %v66 = vld [vmem:[%s65] sm:$0xff]
  %s67 = scalar_lea.vmem %s1, 32
  %68 = vst [vmem:[%s67] sm:$0xff] %v66
  %s69 = scalar_lea.vmem %s0, 1952
  %v70 = vld [vmem:[%s69] sm:$0xff]
  %s71 = scalar_lea.vmem %s1, 1824
  %72 = vst [vmem:[%s71] sm:$0xff] %v70
  %s73 = scalar_lea.vmem %s0, 384
  %v74 = vld [vmem:[%s73] sm:$0xff]
  %s75 = scalar_lea.vmem %s1, 256
  %76 = vst [vmem:[%s75] sm:$0xff] %v74
  %s77 = scalar_lea.vmem %s0, 2176
  %v78 = vld [vmem:[%s77] sm:$0xff]
  %s79 = scalar_lea.vmem %s1, 2048
  %80 = vst [vmem:[%s79] sm:$0xff] %v78
  %s81 = scalar_lea.vmem %s0, 608
  %v82 = vld [vmem:[%s81] sm:$0xff]
  %s83 = scalar_lea.vmem %s1, 480
  %84 = vst [vmem:[%s83] sm:$0xff] %v82
  %s85 = scalar_lea.vmem %s0, 2400
  %v86 = vld [vmem:[%s85] sm:$0xff]
  %s87 = scalar_lea.vmem %s1, 2272
  %88 = vst [vmem:[%s87] sm:$0xff] %v86
  %s89 = scalar_lea.vmem %s0, 832
  %v90 = vld [vmem:[%s89] sm:$0xff]
  %s91 = scalar_lea.vmem %s1, 704
  %92 = vst [vmem:[%s91] sm:$0xff] %v90
  %s93 = scalar_lea.vmem %s0, 2624
  %v94 = vld [vmem:[%s93] sm:$0xff]
  %s95 = scalar_lea.vmem %s1, 2496
  %96 = vst [vmem:[%s95] sm:$0xff] %v94
  %s97 = scalar_lea.vmem %s0, 1056
  %v98 = vld [vmem:[%s97] sm:$0xff]
  %s99 = scalar_lea.vmem %s1, 928
  %100 = vst [vmem:[%s99] sm:$0xff] %v98
  %s101 = scalar_lea.vmem %s0, 2848
  %v102 = vld [vmem:[%s101] sm:$0xff]
  %s103 = scalar_lea.vmem %s1, 2720
  %104 = vst [vmem:[%s103] sm:$0xff] %v102
  %s105 = scalar_lea.vmem %s0, 1280
  %v106 = vld [vmem:[%s105] sm:$0xff]
  %s107 = scalar_lea.vmem %s1, 1152
  %108 = vst [vmem:[%s107] sm:$0xff] %v106
  %s109 = scalar_lea.vmem %s0, 3072
  %v110 = vld [vmem:[%s109] sm:$0xff]
  %s111 = scalar_lea.vmem %s1, 2944
  %112 = vst [vmem:[%s111] sm:$0xff] %v110
  %s113 = scalar_lea.vmem %s0, 1504
  %v114 = vld [vmem:[%s113] sm:$0xff]
  %s115 = scalar_lea.vmem %s1, 1376
  %116 = vst [vmem:[%s115] sm:$0xff] %v114
  %s117 = scalar_lea.vmem %s0, 3296
  %v118 = vld [vmem:[%s117] sm:$0xff]
  %s119 = scalar_lea.vmem %s1, 3168
  %120 = vst [vmem:[%s119] sm:$0xff] %v118
  %s121 = scalar_lea.vmem %s0, 1728
  %v122 = vld [vmem:[%s121] sm:$0xff]
  %s123 = scalar_lea.vmem %s1, 1600
  %124 = vst [vmem:[%s123] sm:$0xff] %v122
  %s125 = scalar_lea.vmem %s0, 3520
  %v126 = vld [vmem:[%s125] sm:$0xff]
  %s127 = scalar_lea.vmem %s1, 3392
  %128 = vst [vmem:[%s127] sm:$0xff] %v126
  %s129 = scalar_lea.vmem %s0, 128
  %v130 = vld [vmem:[%s129] sm:$0xff]
  %s131 = scalar_lea.vmem %s1, 64
  %132 = vst [vmem:[%s131] sm:$0xff] %v130
  %s133 = scalar_lea.vmem %s0, 1920
  %v134 = vld [vmem:[%s133] sm:$0xff]
  %s135 = scalar_lea.vmem %s1, 1856
  %136 = vst [vmem:[%s135] sm:$0xff] %v134
  %s137 = scalar_lea.vmem %s0, 352
  %v138 = vld [vmem:[%s137] sm:$0xff]
  %s139 = scalar_lea.vmem %s1, 288
  %140 = vst [vmem:[%s139] sm:$0xff] %v138
  %s141 = scalar_lea.vmem %s0, 2144
  %v142 = vld [vmem:[%s141] sm:$0xff]
  %s143 = scalar_lea.vmem %s1, 2080
  %144 = vst [vmem:[%s143] sm:$0xff] %v142
  %s145 = scalar_lea.vmem %s0, 576
  %v146 = vld [vmem:[%s145] sm:$0xff]
  %s147 = scalar_lea.vmem %s1, 512
  %148 = vst [vmem:[%s147] sm:$0xff] %v146
  %s149 = scalar_lea.vmem %s0, 2368
  %v150 = vld [vmem:[%s149] sm:$0xff]
  %s151 = scalar_lea.vmem %s1, 2304
  %152 = vst [vmem:[%s151] sm:$0xff] %v150
  %s153 = scalar_lea.vmem %s0, 800
  %v154 = vld [vmem:[%s153] sm:$0xff]
  %s155 = scalar_lea.vmem %s1, 736
  %156 = vst [vmem:[%s155] sm:$0xff] %v154
  %s157 = scalar_lea.vmem %s0, 2592
  %v158 = vld [vmem:[%s157] sm:$0xff]
  %s159 = scalar_lea.vmem %s1, 2528
  %160 = vst [vmem:[%s159] sm:$0xff] %v158
  %s161 = scalar_lea.vmem %s0, 1024
  %v162 = vld [vmem:[%s161] sm:$0xff]
  %s163 = scalar_lea.vmem %s1, 960
  %164 = vst [vmem:[%s163] sm:$0xff] %v162
  %s165 = scalar_lea.vmem %s0, 2816
  %v166 = vld [vmem:[%s165] sm:$0xff]
  %s167 = scalar_lea.vmem %s1, 2752
  %168 = vst [vmem:[%s167] sm:$0xff] %v166
  %s169 = scalar_lea.vmem %s0, 1248
  %v170 = vld [vmem:[%s169] sm:$0xff]
  %s171 = scalar_lea.vmem %s1, 1184
  %172 = vst [vmem:[%s171] sm:$0xff] %v170
  %s173 = scalar_lea.vmem %s0, 3040
  %v174 = vld [vmem:[%s173] sm:$0xff]
  %s175 = scalar_lea.vmem %s1, 2976
  %176 = vst [vmem:[%s175] sm:$0xff] %v174
  %s177 = scalar_lea.vmem %s0, 1472
  %v178 = vld [vmem:[%s177] sm:$0xff]
  %s179 = scalar_lea.vmem %s1, 1408
  %180 = vst [vmem:[%s179] sm:$0xff] %v178
  %s181 = scalar_lea.vmem %s0, 3264
  %v182 = vld [vmem:[%s181] sm:$0xff]
  %s183 = scalar_lea.vmem %s1, 3200
  %184 = vst [vmem:[%s183] sm:$0xff] %v182
  %s185 = scalar_lea.vmem %s0, 1696
  %v186 = vld [vmem:[%s185] sm:$0xff]
  %s187 = scalar_lea.vmem %s1, 1632
  %188 = vst [vmem:[%s187] sm:$0xff] %v186
  %s189 = scalar_lea.vmem %s0, 3488
  %v190 = vld [vmem:[%s189] sm:$0xff]
  %s191 = scalar_lea.vmem %s1, 3424
  %192 = vst [vmem:[%s191] sm:$0xff] %v190
  %s193 = scalar_lea.vmem %s0, 96
  %v194 = vld [vmem:[%s193] sm:$0xff]
  %s195 = scalar_lea.vmem %s1, 96
  %196 = vst [vmem:[%s195] sm:$0xff] %v194
  %s197 = scalar_lea.vmem %s0, 1888
  %v198 = vld [vmem:[%s197] sm:$0xff]
  %s199 = scalar_lea.vmem %s1, 1888
  %200 = vst [vmem:[%s199] sm:$0xff] %v198
  %s201 = scalar_lea.vmem %s0, 320
  %v202 = vld [vmem:[%s201] sm:$0xff]
  %s203 = scalar_lea.vmem %s1, 320
  %204 = vst [vmem:[%s203] sm:$0xff] %v202
  %s205 = scalar_lea.vmem %s0, 2112
  %v206 = vld [vmem:[%s205] sm:$0xff]
  %s207 = scalar_lea.vmem %s1, 2112
  %208 = vst [vmem:[%s207] sm:$0xff] %v206
  %s209 = scalar_lea.vmem %s0, 544
  %v210 = vld [vmem:[%s209] sm:$0xff]
  %s211 = scalar_lea.vmem %s1, 544
  %212 = vst [vmem:[%s211] sm:$0xff] %v210
  %s213 = scalar_lea.vmem %s0, 2336
  %v214 = vld [vmem:[%s213] sm:$0xff]
  %s215 = scalar_lea.vmem %s1, 2336
  %216 = vst [vmem:[%s215] sm:$0xff] %v214
  %s217 = scalar_lea.vmem %s0, 768
  %v218 = vld [vmem:[%s217] sm:$0xff]
  %s219 = scalar_lea.vmem %s1, 768
  %220 = vst [vmem:[%s219] sm:$0xff] %v218
  %s221 = scalar_lea.vmem %s0, 2560
  %v222 = vld [vmem:[%s221] sm:$0xff]
  %s223 = scalar_lea.vmem %s1, 2560
  %224 = vst [vmem:[%s223] sm:$0xff] %v222
  %s225 = scalar_lea.vmem %s0, 992
  %v226 = vld [vmem:[%s225] sm:$0xff]
  %s227 = scalar_lea.vmem %s1, 992
  %228 = vst [vmem:[%s227] sm:$0xff] %v226
  %s229 = scalar_lea.vmem %s0, 2784
  %v230 = vld [vmem:[%s229] sm:$0xff]
  %s231 = scalar_lea.vmem %s1, 2784
  %232 = vst [vmem:[%s231] sm:$0xff] %v230
  %s233 = scalar_lea.vmem %s0, 1216
  %v234 = vld [vmem:[%s233] sm:$0xff]
  %s235 = scalar_lea.vmem %s1, 1216
  %236 = vst [vmem:[%s235] sm:$0xff] %v234
  %s237 = scalar_lea.vmem %s0, 3008
  %v238 = vld [vmem:[%s237] sm:$0xff]
  %s239 = scalar_lea.vmem %s1, 3008
  %240 = vst [vmem:[%s239] sm:$0xff] %v238
  %s241 = scalar_lea.vmem %s0, 1440
  %v242 = vld [vmem:[%s241] sm:$0xff]
  %s243 = scalar_lea.vmem %s1, 1440
  %244 = vst [vmem:[%s243] sm:$0xff] %v242
  %s245 = scalar_lea.vmem %s0, 3232
  %v246 = vld [vmem:[%s245] sm:$0xff]
  %s247 = scalar_lea.vmem %s1, 3232
  %248 = vst [vmem:[%s247] sm:$0xff] %v246
  %s249 = scalar_lea.vmem %s0, 1664
  %v250 = vld [vmem:[%s249] sm:$0xff]
  %s251 = scalar_lea.vmem %s1, 1664
  %252 = vst [vmem:[%s251] sm:$0xff] %v250
  %s253 = scalar_lea.vmem %s0, 3456
  %v254 = vld [vmem:[%s253] sm:$0xff]
  %s255 = scalar_lea.vmem %s1, 3456
  %256 = vst [vmem:[%s255] sm:$0xff] %v254
  %s257 = scalar_lea.vmem %s0, 64
  %v258 = vld [vmem:[%s257] sm:$0xff]
  %s259 = scalar_lea.vmem %s1, 128
  %260 = vst [vmem:[%s259] sm:$0xff] %v258
  %s261 = scalar_lea.vmem %s0, 1856
  %v262 = vld [vmem:[%s261] sm:$0xff]
  %s263 = scalar_lea.vmem %s1, 1920
  %264 = vst [vmem:[%s263] sm:$0xff] %v262
  %s265 = scalar_lea.vmem %s0, 288
  %v266 = vld [vmem:[%s265] sm:$0xff]
  %s267 = scalar_lea.vmem %s1, 352
  %268 = vst [vmem:[%s267] sm:$0xff] %v266
  %s269 = scalar_lea.vmem %s0, 2080
  %v270 = vld [vmem:[%s269] sm:$0xff]
  %s271 = scalar_lea.vmem %s1, 2144
  %272 = vst [vmem:[%s271] sm:$0xff] %v270
  %s273 = scalar_lea.vmem %s0, 512
  %v274 = vld [vmem:[%s273] sm:$0xff]
  %s275 = scalar_lea.vmem %s1, 576
  %276 = vst [vmem:[%s275] sm:$0xff] %v274
  %s277 = scalar_lea.vmem %s0, 2304
  %v278 = vld [vmem:[%s277] sm:$0xff]
  %s279 = scalar_lea.vmem %s1, 2368
  %280 = vst [vmem:[%s279] sm:$0xff] %v278
  %s281 = scalar_lea.vmem %s0, 736
  %v282 = vld [vmem:[%s281] sm:$0xff]
  %s283 = scalar_lea.vmem %s1, 800
  %284 = vst [vmem:[%s283] sm:$0xff] %v282
  %s285 = scalar_lea.vmem %s0, 2528
  %v286 = vld [vmem:[%s285] sm:$0xff]
  %s287 = scalar_lea.vmem %s1, 2592
  %288 = vst [vmem:[%s287] sm:$0xff] %v286
  %s289 = scalar_lea.vmem %s0, 960
  %v290 = vld [vmem:[%s289] sm:$0xff]
  %s291 = scalar_lea.vmem %s1, 1024
  %292 = vst [vmem:[%s291] sm:$0xff] %v290
  %s293 = scalar_lea.vmem %s0, 2752
  %v294 = vld [vmem:[%s293] sm:$0xff]
  %s295 = scalar_lea.vmem %s1, 2816
  %296 = vst [vmem:[%s295] sm:$0xff] %v294
  %s297 = scalar_lea.vmem %s0, 1184
  %v298 = vld [vmem:[%s297] sm:$0xff]
  %s299 = scalar_lea.vmem %s1, 1248
  %300 = vst [vmem:[%s299] sm:$0xff] %v298
  %s301 = scalar_lea.vmem %s0, 2976
  %v302 = vld [vmem:[%s301] sm:$0xff]
  %s303 = scalar_lea.vmem %s1, 3040
  %304 = vst [vmem:[%s303] sm:$0xff] %v302
  %s305 = scalar_lea.vmem %s0, 1408
  %v306 = vld [vmem:[%s305] sm:$0xff]
  %s307 = scalar_lea.vmem %s1, 1472
  %308 = vst [vmem:[%s307] sm:$0xff] %v306
  %s309 = scalar_lea.vmem %s0, 3200
  %v310 = vld [vmem:[%s309] sm:$0xff]
  %s311 = scalar_lea.vmem %s1, 3264
  %312 = vst [vmem:[%s311] sm:$0xff] %v310
  %s313 = scalar_lea.vmem %s0, 1632
  %v314 = vld [vmem:[%s313] sm:$0xff]
  %s315 = scalar_lea.vmem %s1, 1696
  %316 = vst [vmem:[%s315] sm:$0xff] %v314
  %s317 = scalar_lea.vmem %s0, 3424
  %v318 = vld [vmem:[%s317] sm:$0xff]
  %s319 = scalar_lea.vmem %s1, 3488
  %320 = vst [vmem:[%s319] sm:$0xff] %v318
  %s321 = scalar_lea.vmem %s0, 32
  %v322 = vld [vmem:[%s321] sm:$0xff]
  %s323 = scalar_lea.vmem %s1, 160
  %324 = vst [vmem:[%s323] sm:$0xff] %v322
  %s325 = scalar_lea.vmem %s0, 1824
  %v326 = vld [vmem:[%s325] sm:$0xff]
  %s327 = scalar_lea.vmem %s1, 1952
  %328 = vst [vmem:[%s327] sm:$0xff] %v326
  %s329 = scalar_lea.vmem %s0, 256
  %v330 = vld [vmem:[%s329] sm:$0xff]
  %s331 = scalar_lea.vmem %s1, 384
  %332 = vst [vmem:[%s331] sm:$0xff] %v330
  %s333 = scalar_lea.vmem %s0, 2048
  %v334 = vld [vmem:[%s333] sm:$0xff]
  %s335 = scalar_lea.vmem %s1, 2176
  %336 = vst [vmem:[%s335] sm:$0xff] %v334
  %s337 = scalar_lea.vmem %s0, 480
  %v338 = vld [vmem:[%s337] sm:$0xff]
  %s339 = scalar_lea.vmem %s1, 608
  %340 = vst [vmem:[%s339] sm:$0xff] %v338
  %s341 = scalar_lea.vmem %s0, 2272
  %v342 = vld [vmem:[%s341] sm:$0xff]
  %s343 = scalar_lea.vmem %s1, 2400
  %344 = vst [vmem:[%s343] sm:$0xff] %v342
  %s345 = scalar_lea.vmem %s0, 704
  %v346 = vld [vmem:[%s345] sm:$0xff]
  %s347 = scalar_lea.vmem %s1, 832
  %348 = vst [vmem:[%s347] sm:$0xff] %v346
  %s349 = scalar_lea.vmem %s0, 2496
  %v350 = vld [vmem:[%s349] sm:$0xff]
  %s351 = scalar_lea.vmem %s1, 2624
  %352 = vst [vmem:[%s351] sm:$0xff] %v350
  %s353 = scalar_lea.vmem %s0, 928
  %v354 = vld [vmem:[%s353] sm:$0xff]
  %s355 = scalar_lea.vmem %s1, 1056
  %356 = vst [vmem:[%s355] sm:$0xff] %v354
  %s357 = scalar_lea.vmem %s0, 2720
  %v358 = vld [vmem:[%s357] sm:$0xff]
  %s359 = scalar_lea.vmem %s1, 2848
  %360 = vst [vmem:[%s359] sm:$0xff] %v358
  %s361 = scalar_lea.vmem %s0, 1152
  %v362 = vld [vmem:[%s361] sm:$0xff]
  %s363 = scalar_lea.vmem %s1, 1280
  %364 = vst [vmem:[%s363] sm:$0xff] %v362
  %s365 = scalar_lea.vmem %s0, 2944
  %v366 = vld [vmem:[%s365] sm:$0xff]
  %s367 = scalar_lea.vmem %s1, 3072
  %368 = vst [vmem:[%s367] sm:$0xff] %v366
  %s369 = scalar_lea.vmem %s0, 1376
  %v370 = vld [vmem:[%s369] sm:$0xff]
  %s371 = scalar_lea.vmem %s1, 1504
  %372 = vst [vmem:[%s371] sm:$0xff] %v370
  %s373 = scalar_lea.vmem %s0, 3168
  %v374 = vld [vmem:[%s373] sm:$0xff]
  %s375 = scalar_lea.vmem %s1, 3296
  %376 = vst [vmem:[%s375] sm:$0xff] %v374
  %s377 = scalar_lea.vmem %s0, 1600
  %v378 = vld [vmem:[%s377] sm:$0xff]
  %s379 = scalar_lea.vmem %s1, 1728
  %380 = vst [vmem:[%s379] sm:$0xff] %v378
  %s381 = scalar_lea.vmem %s0, 3392
  %v382 = vld [vmem:[%s381] sm:$0xff]
  %s383 = scalar_lea.vmem %s1, 3520
  %384 = vst [vmem:[%s383] sm:$0xff] %v382
  %v385 = vld [vmem:[%s0] sm:$0xff]
  %s386 = scalar_lea.vmem %s1, 192
  %387 = vst [vmem:[%s386] sm:$0xff] %v385
  %s388 = scalar_lea.vmem %s0, 1792
  %v389 = vld [vmem:[%s388] sm:$0xff]
  %s390 = scalar_lea.vmem %s1, 1984
  %391 = vst [vmem:[%s390] sm:$0xff] %v389
  %s392 = scalar_lea.vmem %s0, 224
  %v393 = vld [vmem:[%s392] sm:$0xff]
  %s394 = scalar_lea.vmem %s1, 416
  %395 = vst [vmem:[%s394] sm:$0xff] %v393
  %s396 = scalar_lea.vmem %s0, 2016
  %v397 = vld [vmem:[%s396] sm:$0xff]
  %s398 = scalar_lea.vmem %s1, 2208
  %399 = vst [vmem:[%s398] sm:$0xff] %v397
  %s400 = scalar_lea.vmem %s0, 448
  %v401 = vld [vmem:[%s400] sm:$0xff]
  %s402 = scalar_lea.vmem %s1, 640
  %403 = vst [vmem:[%s402] sm:$0xff] %v401
  %s404 = scalar_lea.vmem %s0, 2240
  %v405 = vld [vmem:[%s404] sm:$0xff]
  %s406 = scalar_lea.vmem %s1, 2432
  %407 = vst [vmem:[%s406] sm:$0xff] %v405
  %s408 = scalar_lea.vmem %s0, 672
  %v409 = vld [vmem:[%s408] sm:$0xff]
  %s410 = scalar_lea.vmem %s1, 864
  %411 = vst [vmem:[%s410] sm:$0xff] %v409
  %s412 = scalar_lea.vmem %s0, 2464
  %v413 = vld [vmem:[%s412] sm:$0xff]
  %s414 = scalar_lea.vmem %s1, 2656
  %415 = vst [vmem:[%s414] sm:$0xff] %v413
  %s416 = scalar_lea.vmem %s0, 896
  %v417 = vld [vmem:[%s416] sm:$0xff]
  %s418 = scalar_lea.vmem %s1, 1088
  %419 = vst [vmem:[%s418] sm:$0xff] %v417
  %s420 = scalar_lea.vmem %s0, 2688
  %v421 = vld [vmem:[%s420] sm:$0xff]
  %s422 = scalar_lea.vmem %s1, 2880
  %423 = vst [vmem:[%s422] sm:$0xff] %v421
  %s424 = scalar_lea.vmem %s0, 1120
  %v425 = vld [vmem:[%s424] sm:$0xff]
  %s426 = scalar_lea.vmem %s1, 1312
  %427 = vst [vmem:[%s426] sm:$0xff] %v425
  %s428 = scalar_lea.vmem %s0, 2912
  %v429 = vld [vmem:[%s428] sm:$0xff]
  %s430 = scalar_lea.vmem %s1, 3104
  %431 = vst [vmem:[%s430] sm:$0xff] %v429
  %s432 = scalar_lea.vmem %s0, 1344
  %v433 = vld [vmem:[%s432] sm:$0xff]
  %s434 = scalar_lea.vmem %s1, 1536
  %435 = vst [vmem:[%s434] sm:$0xff] %v433
  %s436 = scalar_lea.vmem %s0, 3136
  %v437 = vld [vmem:[%s436] sm:$0xff]
  %s438 = scalar_lea.vmem %s1, 3328
  %439 = vst [vmem:[%s438] sm:$0xff] %v437
  %s440 = scalar_lea.vmem %s0, 1568
  %v441 = vld [vmem:[%s440] sm:$0xff]
  %s442 = scalar_lea.vmem %s1, 1760
  %443 = vst [vmem:[%s442] sm:$0xff] %v441
  %s444 = scalar_lea.vmem %s0, 3360
  %v445 = vld [vmem:[%s444] sm:$0xff]
  %s446 = scalar_lea.vmem %s1, 3552
  %447 = vst [vmem:[%s446] sm:$0xff] %v445
  %s448 = scalar_lea.vmem %s0, 200
  %v449 = vld [vmem:[%s448] sm:$0xff]
  %s450 = scalar_lea.vmem %s1, 8
  %451 = vst [vmem:[%s450] sm:$0xff] %v449
  %s452 = scalar_lea.vmem %s0, 1992
  %v453 = vld [vmem:[%s452] sm:$0xff]
  %s454 = scalar_lea.vmem %s1, 1800
  %455 = vst [vmem:[%s454] sm:$0xff] %v453
  %s456 = scalar_lea.vmem %s0, 424
  %v457 = vld [vmem:[%s456] sm:$0xff]
  %s458 = scalar_lea.vmem %s1, 232
  %459 = vst [vmem:[%s458] sm:$0xff] %v457
  %s460 = scalar_lea.vmem %s0, 2216
  %v461 = vld [vmem:[%s460] sm:$0xff]
  %s462 = scalar_lea.vmem %s1, 2024
  %463 = vst [vmem:[%s462] sm:$0xff] %v461
  %s464 = scalar_lea.vmem %s0, 648
  %v465 = vld [vmem:[%s464] sm:$0xff]
  %s466 = scalar_lea.vmem %s1, 456
  %467 = vst [vmem:[%s466] sm:$0xff] %v465
  %s468 = scalar_lea.vmem %s0, 2440
  %v469 = vld [vmem:[%s468] sm:$0xff]
  %s470 = scalar_lea.vmem %s1, 2248
  %471 = vst [vmem:[%s470] sm:$0xff] %v469
  %s472 = scalar_lea.vmem %s0, 872
  %v473 = vld [vmem:[%s472] sm:$0xff]
  %s474 = scalar_lea.vmem %s1, 680
  %475 = vst [vmem:[%s474] sm:$0xff] %v473
  %s476 = scalar_lea.vmem %s0, 2664
  %v477 = vld [vmem:[%s476] sm:$0xff]
  %s478 = scalar_lea.vmem %s1, 2472
  %479 = vst [vmem:[%s478] sm:$0xff] %v477
  %s480 = scalar_lea.vmem %s0, 1096
  %v481 = vld [vmem:[%s480] sm:$0xff]
  %s482 = scalar_lea.vmem %s1, 904
  %483 = vst [vmem:[%s482] sm:$0xff] %v481
  %s484 = scalar_lea.vmem %s0, 2888
  %v485 = vld [vmem:[%s484] sm:$0xff]
  %s486 = scalar_lea.vmem %s1, 2696
  %487 = vst [vmem:[%s486] sm:$0xff] %v485
  %s488 = scalar_lea.vmem %s0, 1320
  %v489 = vld [vmem:[%s488] sm:$0xff]
  %s490 = scalar_lea.vmem %s1, 1128
  %491 = vst [vmem:[%s490] sm:$0xff] %v489
  %s492 = scalar_lea.vmem %s0, 3112
  %v493 = vld [vmem:[%s492] sm:$0xff]
  %s494 = scalar_lea.vmem %s1, 2920
  %495 = vst [vmem:[%s494] sm:$0xff] %v493
  %s496 = scalar_lea.vmem %s0, 1544
  %v497 = vld [vmem:[%s496] sm:$0xff]
  %s498 = scalar_lea.vmem %s1, 1352
  %499 = vst [vmem:[%s498] sm:$0xff] %v497
  %s500 = scalar_lea.vmem %s0, 3336
  %v501 = vld [vmem:[%s500] sm:$0xff]
  %s502 = scalar_lea.vmem %s1, 3144
  %503 = vst [vmem:[%s502] sm:$0xff] %v501
  %s504 = scalar_lea.vmem %s0, 1768
  %v505 = vld [vmem:[%s504] sm:$0xff]
  %s506 = scalar_lea.vmem %s1, 1576
  %507 = vst [vmem:[%s506] sm:$0xff] %v505
  %s508 = scalar_lea.vmem %s0, 3560
  %v509 = vld [vmem:[%s508] sm:$0xff]
  %s510 = scalar_lea.vmem %s1, 3368
  %511 = vst [vmem:[%s510] sm:$0xff] %v509
  %s512 = scalar_lea.vmem %s0, 168
  %v513 = vld [vmem:[%s512] sm:$0xff]
  %s514 = scalar_lea.vmem %s1, 40
  %515 = vst [vmem:[%s514] sm:$0xff] %v513
  %s516 = scalar_lea.vmem %s0, 1960
  %v517 = vld [vmem:[%s516] sm:$0xff]
  %s518 = scalar_lea.vmem %s1, 1832
  %519 = vst [vmem:[%s518] sm:$0xff] %v517
  %s520 = scalar_lea.vmem %s0, 392
  %v521 = vld [vmem:[%s520] sm:$0xff]
  %s522 = scalar_lea.vmem %s1, 264
  %523 = vst [vmem:[%s522] sm:$0xff] %v521
  %s524 = scalar_lea.vmem %s0, 2184
  %v525 = vld [vmem:[%s524] sm:$0xff]
  %s526 = scalar_lea.vmem %s1, 2056
  %527 = vst [vmem:[%s526] sm:$0xff] %v525
  %s528 = scalar_lea.vmem %s0, 616
  %v529 = vld [vmem:[%s528] sm:$0xff]
  %s530 = scalar_lea.vmem %s1, 488
  %531 = vst [vmem:[%s530] sm:$0xff] %v529
  %s532 = scalar_lea.vmem %s0, 2408
  %v533 = vld [vmem:[%s532] sm:$0xff]
  %s534 = scalar_lea.vmem %s1, 2280
  %535 = vst [vmem:[%s534] sm:$0xff] %v533
  %s536 = scalar_lea.vmem %s0, 840
  %v537 = vld [vmem:[%s536] sm:$0xff]
  %s538 = scalar_lea.vmem %s1, 712
  %539 = vst [vmem:[%s538] sm:$0xff] %v537
  %s540 = scalar_lea.vmem %s0, 2632
  %v541 = vld [vmem:[%s540] sm:$0xff]
  %s542 = scalar_lea.vmem %s1, 2504
  %543 = vst [vmem:[%s542] sm:$0xff] %v541
  %s544 = scalar_lea.vmem %s0, 1064
  %v545 = vld [vmem:[%s544] sm:$0xff]
  %s546 = scalar_lea.vmem %s1, 936
  %547 = vst [vmem:[%s546] sm:$0xff] %v545
  %s548 = scalar_lea.vmem %s0, 2856
  %v549 = vld [vmem:[%s548] sm:$0xff]
  %s550 = scalar_lea.vmem %s1, 2728
  %551 = vst [vmem:[%s550] sm:$0xff] %v549
  %s552 = scalar_lea.vmem %s0, 1288
  %v553 = vld [vmem:[%s552] sm:$0xff]
  %s554 = scalar_lea.vmem %s1, 1160
  %555 = vst [vmem:[%s554] sm:$0xff] %v553
  %s556 = scalar_lea.vmem %s0, 3080
  %v557 = vld [vmem:[%s556] sm:$0xff]
  %s558 = scalar_lea.vmem %s1, 2952
  %559 = vst [vmem:[%s558] sm:$0xff] %v557
  %s560 = scalar_lea.vmem %s0, 1512
  %v561 = vld [vmem:[%s560] sm:$0xff]
  %s562 = scalar_lea.vmem %s1, 1384
  %563 = vst [vmem:[%s562] sm:$0xff] %v561
  %s564 = scalar_lea.vmem %s0, 3304
  %v565 = vld [vmem:[%s564] sm:$0xff]
  %s566 = scalar_lea.vmem %s1, 3176
  %567 = vst [vmem:[%s566] sm:$0xff] %v565
  %s568 = scalar_lea.vmem %s0, 1736
  %v569 = vld [vmem:[%s568] sm:$0xff]
  %s570 = scalar_lea.vmem %s1, 1608
  %571 = vst [vmem:[%s570] sm:$0xff] %v569
  %s572 = scalar_lea.vmem %s0, 3528
  %v573 = vld [vmem:[%s572] sm:$0xff]
  %s574 = scalar_lea.vmem %s1, 3400
  %575 = vst [vmem:[%s574] sm:$0xff] %v573
  %s576 = scalar_lea.vmem %s0, 136
  %v577 = vld [vmem:[%s576] sm:$0xff]
  %s578 = scalar_lea.vmem %s1, 72
  %579 = vst [vmem:[%s578] sm:$0xff] %v577
  %s580 = scalar_lea.vmem %s0, 1928
  %v581 = vld [vmem:[%s580] sm:$0xff]
  %s582 = scalar_lea.vmem %s1, 1864
  %583 = vst [vmem:[%s582] sm:$0xff] %v581
  %s584 = scalar_lea.vmem %s0, 360
  %v585 = vld [vmem:[%s584] sm:$0xff]
  %s586 = scalar_lea.vmem %s1, 296
  %587 = vst [vmem:[%s586] sm:$0xff] %v585
  %s588 = scalar_lea.vmem %s0, 2152
  %v589 = vld [vmem:[%s588] sm:$0xff]
  %s590 = scalar_lea.vmem %s1, 2088
  %591 = vst [vmem:[%s590] sm:$0xff] %v589
  %s592 = scalar_lea.vmem %s0, 584
  %v593 = vld [vmem:[%s592] sm:$0xff]
  %s594 = scalar_lea.vmem %s1, 520
  %595 = vst [vmem:[%s594] sm:$0xff] %v593
  %s596 = scalar_lea.vmem %s0, 2376
  %v597 = vld [vmem:[%s596] sm:$0xff]
  %s598 = scalar_lea.vmem %s1, 2312
  %599 = vst [vmem:[%s598] sm:$0xff] %v597
  %s600 = scalar_lea.vmem %s0, 808
  %v601 = vld [vmem:[%s600] sm:$0xff]
  %s602 = scalar_lea.vmem %s1, 744
  %603 = vst [vmem:[%s602] sm:$0xff] %v601
  %s604 = scalar_lea.vmem %s0, 2600
  %v605 = vld [vmem:[%s604] sm:$0xff]
  %s606 = scalar_lea.vmem %s1, 2536
  %607 = vst [vmem:[%s606] sm:$0xff] %v605
  %s608 = scalar_lea.vmem %s0, 1032
  %v609 = vld [vmem:[%s608] sm:$0xff]
  %s610 = scalar_lea.vmem %s1, 968
  %611 = vst [vmem:[%s610] sm:$0xff] %v609
  %s612 = scalar_lea.vmem %s0, 2824
  %v613 = vld [vmem:[%s612] sm:$0xff]
  %s614 = scalar_lea.vmem %s1, 2760
  %615 = vst [vmem:[%s614] sm:$0xff] %v613
  %s616 = scalar_lea.vmem %s0, 1256
  %v617 = vld [vmem:[%s616] sm:$0xff]
  %s618 = scalar_lea.vmem %s1, 1192
  %619 = vst [vmem:[%s618] sm:$0xff] %v617
  %s620 = scalar_lea.vmem %s0, 3048
  %v621 = vld [vmem:[%s620] sm:$0xff]
  %s622 = scalar_lea.vmem %s1, 2984
  %623 = vst [vmem:[%s622] sm:$0xff] %v621
  %s624 = scalar_lea.vmem %s0, 1480
  %v625 = vld [vmem:[%s624] sm:$0xff]
  %s626 = scalar_lea.vmem %s1, 1416
  %627 = vst [vmem:[%s626] sm:$0xff] %v625
  %s628 = scalar_lea.vmem %s0, 3272
  %v629 = vld [vmem:[%s628] sm:$0xff]
  %s630 = scalar_lea.vmem %s1, 3208
  %631 = vst [vmem:[%s630] sm:$0xff] %v629
  %s632 = scalar_lea.vmem %s0, 1704
  %v633 = vld [vmem:[%s632] sm:$0xff]
  %s634 = scalar_lea.vmem %s1, 1640
  %635 = vst [vmem:[%s634] sm:$0xff] %v633
  %s636 = scalar_lea.vmem %s0, 3496
  %v637 = vld [vmem:[%s636] sm:$0xff]
  %s638 = scalar_lea.vmem %s1, 3432
  %639 = vst [vmem:[%s638] sm:$0xff] %v637
  %s640 = scalar_lea.vmem %s0, 104
  %v641 = vld [vmem:[%s640] sm:$0xff]
  %s642 = scalar_lea.vmem %s1, 104
  %643 = vst [vmem:[%s642] sm:$0xff] %v641
  %s644 = scalar_lea.vmem %s0, 1896
  %v645 = vld [vmem:[%s644] sm:$0xff]
  %s646 = scalar_lea.vmem %s1, 1896
  %647 = vst [vmem:[%s646] sm:$0xff] %v645
  %s648 = scalar_lea.vmem %s0, 328
  %v649 = vld [vmem:[%s648] sm:$0xff]
  %s650 = scalar_lea.vmem %s1, 328
  %651 = vst [vmem:[%s650] sm:$0xff] %v649
  %s652 = scalar_lea.vmem %s0, 2120
  %v653 = vld [vmem:[%s652] sm:$0xff]
  %s654 = scalar_lea.vmem %s1, 2120
  %655 = vst [vmem:[%s654] sm:$0xff] %v653
  %s656 = scalar_lea.vmem %s0, 552
  %v657 = vld [vmem:[%s656] sm:$0xff]
  %s658 = scalar_lea.vmem %s1, 552
  %659 = vst [vmem:[%s658] sm:$0xff] %v657
  %s660 = scalar_lea.vmem %s0, 2344
  %v661 = vld [vmem:[%s660] sm:$0xff]
  %s662 = scalar_lea.vmem %s1, 2344
  %663 = vst [vmem:[%s662] sm:$0xff] %v661
  %s664 = scalar_lea.vmem %s0, 776
  %v665 = vld [vmem:[%s664] sm:$0xff]
  %s666 = scalar_lea.vmem %s1, 776
  %667 = vst [vmem:[%s666] sm:$0xff] %v665
  %s668 = scalar_lea.vmem %s0, 2568
  %v669 = vld [vmem:[%s668] sm:$0xff]
  %s670 = scalar_lea.vmem %s1, 2568
  %671 = vst [vmem:[%s670] sm:$0xff] %v669
  %s672 = scalar_lea.vmem %s0, 1000
  %v673 = vld [vmem:[%s672] sm:$0xff]
  %s674 = scalar_lea.vmem %s1, 1000
  %675 = vst [vmem:[%s674] sm:$0xff] %v673
  %s676 = scalar_lea.vmem %s0, 2792
  %v677 = vld [vmem:[%s676] sm:$0xff]
  %s678 = scalar_lea.vmem %s1, 2792
  %679 = vst [vmem:[%s678] sm:$0xff] %v677
  %s680 = scalar_lea.vmem %s0, 1224
  %v681 = vld [vmem:[%s680] sm:$0xff]
  %s682 = scalar_lea.vmem %s1, 1224
  %683 = vst [vmem:[%s682] sm:$0xff] %v681
  %s684 = scalar_lea.vmem %s0, 3016
  %v685 = vld [vmem:[%s684] sm:$0xff]
  %s686 = scalar_lea.vmem %s1, 3016
  %687 = vst [vmem:[%s686] sm:$0xff] %v685
  %s688 = scalar_lea.vmem %s0, 1448
  %v689 = vld [vmem:[%s688] sm:$0xff]
  %s690 = scalar_lea.vmem %s1, 1448
  %691 = vst [vmem:[%s690] sm:$0xff] %v689
  %s692 = scalar_lea.vmem %s0, 3240
  %v693 = vld [vmem:[%s692] sm:$0xff]
  %s694 = scalar_lea.vmem %s1, 3240
  %695 = vst [vmem:[%s694] sm:$0xff] %v693
  %s696 = scalar_lea.vmem %s0, 1672
  %v697 = vld [vmem:[%s696] sm:$0xff]
  %s698 = scalar_lea.vmem %s1, 1672
  %699 = vst [vmem:[%s698] sm:$0xff] %v697
  %s700 = scalar_lea.vmem %s0, 3464
  %v701 = vld [vmem:[%s700] sm:$0xff]
  %s702 = scalar_lea.vmem %s1, 3464
  %703 = vst [vmem:[%s702] sm:$0xff] %v701
  %s704 = scalar_lea.vmem %s0, 72
  %v705 = vld [vmem:[%s704] sm:$0xff]
  %s706 = scalar_lea.vmem %s1, 136
  %707 = vst [vmem:[%s706] sm:$0xff] %v705
  %s708 = scalar_lea.vmem %s0, 1864
  %v709 = vld [vmem:[%s708] sm:$0xff]
  %s710 = scalar_lea.vmem %s1, 1928
  %711 = vst [vmem:[%s710] sm:$0xff] %v709
  %s712 = scalar_lea.vmem %s0, 296
  %v713 = vld [vmem:[%s712] sm:$0xff]
  %s714 = scalar_lea.vmem %s1, 360
  %715 = vst [vmem:[%s714] sm:$0xff] %v713
  %s716 = scalar_lea.vmem %s0, 2088
  %v717 = vld [vmem:[%s716] sm:$0xff]
  %s718 = scalar_lea.vmem %s1, 2152
  %719 = vst [vmem:[%s718] sm:$0xff] %v717
  %s720 = scalar_lea.vmem %s0, 520
  %v721 = vld [vmem:[%s720] sm:$0xff]
  %s722 = scalar_lea.vmem %s1, 584
  %723 = vst [vmem:[%s722] sm:$0xff] %v721
  %s724 = scalar_lea.vmem %s0, 2312
  %v725 = vld [vmem:[%s724] sm:$0xff]
  %s726 = scalar_lea.vmem %s1, 2376
  %727 = vst [vmem:[%s726] sm:$0xff] %v725
  %s728 = scalar_lea.vmem %s0, 744
  %v729 = vld [vmem:[%s728] sm:$0xff]
  %s730 = scalar_lea.vmem %s1, 808
  %731 = vst [vmem:[%s730] sm:$0xff] %v729
  %s732 = scalar_lea.vmem %s0, 2536
  %v733 = vld [vmem:[%s732] sm:$0xff]
  %s734 = scalar_lea.vmem %s1, 2600
  %735 = vst [vmem:[%s734] sm:$0xff] %v733
  %s736 = scalar_lea.vmem %s0, 968
  %v737 = vld [vmem:[%s736] sm:$0xff]
  %s738 = scalar_lea.vmem %s1, 1032
  %739 = vst [vmem:[%s738] sm:$0xff] %v737
  %s740 = scalar_lea.vmem %s0, 2760
  %v741 = vld [vmem:[%s740] sm:$0xff]
  %s742 = scalar_lea.vmem %s1, 2824
  %743 = vst [vmem:[%s742] sm:$0xff] %v741
  %s744 = scalar_lea.vmem %s0, 1192
  %v745 = vld [vmem:[%s744] sm:$0xff]
  %s746 = scalar_lea.vmem %s1, 1256
  %747 = vst [vmem:[%s746] sm:$0xff] %v745
  %s748 = scalar_lea.vmem %s0, 2984
  %v749 = vld [vmem:[%s748] sm:$0xff]
  %s750 = scalar_lea.vmem %s1, 3048
  %751 = vst [vmem:[%s750] sm:$0xff] %v749
  %s752 = scalar_lea.vmem %s0, 1416
  %v753 = vld [vmem:[%s752] sm:$0xff]
  %s754 = scalar_lea.vmem %s1, 1480
  %755 = vst [vmem:[%s754] sm:$0xff] %v753
  %s756 = scalar_lea.vmem %s0, 3208
  %v757 = vld [vmem:[%s756] sm:$0xff]
  %s758 = scalar_lea.vmem %s1, 3272
  %759 = vst [vmem:[%s758] sm:$0xff] %v757
  %s760 = scalar_lea.vmem %s0, 1640
  %v761 = vld [vmem:[%s760] sm:$0xff]
  %s762 = scalar_lea.vmem %s1, 1704
  %763 = vst [vmem:[%s762] sm:$0xff] %v761
  %s764 = scalar_lea.vmem %s0, 3432
  %v765 = vld [vmem:[%s764] sm:$0xff]
  %s766 = scalar_lea.vmem %s1, 3496
  %767 = vst [vmem:[%s766] sm:$0xff] %v765
  %s768 = scalar_lea.vmem %s0, 40
  %v769 = vld [vmem:[%s768] sm:$0xff]
  %s770 = scalar_lea.vmem %s1, 168
  %771 = vst [vmem:[%s770] sm:$0xff] %v769
  %s772 = scalar_lea.vmem %s0, 1832
  %v773 = vld [vmem:[%s772] sm:$0xff]
  %s774 = scalar_lea.vmem %s1, 1960
  %775 = vst [vmem:[%s774] sm:$0xff] %v773
  %s776 = scalar_lea.vmem %s0, 264
  %v777 = vld [vmem:[%s776] sm:$0xff]
  %s778 = scalar_lea.vmem %s1, 392
  %779 = vst [vmem:[%s778] sm:$0xff] %v777
  %s780 = scalar_lea.vmem %s0, 2056
  %v781 = vld [vmem:[%s780] sm:$0xff]
  %s782 = scalar_lea.vmem %s1, 2184
  %783 = vst [vmem:[%s782] sm:$0xff] %v781
  %s784 = scalar_lea.vmem %s0, 488
  %v785 = vld [vmem:[%s784] sm:$0xff]
  %s786 = scalar_lea.vmem %s1, 616
  %787 = vst [vmem:[%s786] sm:$0xff] %v785
  %s788 = scalar_lea.vmem %s0, 2280
  %v789 = vld [vmem:[%s788] sm:$0xff]
  %s790 = scalar_lea.vmem %s1, 2408
  %791 = vst [vmem:[%s790] sm:$0xff] %v789
  %s792 = scalar_lea.vmem %s0, 712
  %v793 = vld [vmem:[%s792] sm:$0xff]
  %s794 = scalar_lea.vmem %s1, 840
  %795 = vst [vmem:[%s794] sm:$0xff] %v793
  %s796 = scalar_lea.vmem %s0, 2504
  %v797 = vld [vmem:[%s796] sm:$0xff]
  %s798 = scalar_lea.vmem %s1, 2632
  %799 = vst [vmem:[%s798] sm:$0xff] %v797
  %s800 = scalar_lea.vmem %s0, 936
  %v801 = vld [vmem:[%s800] sm:$0xff]
  %s802 = scalar_lea.vmem %s1, 1064
  %803 = vst [vmem:[%s802] sm:$0xff] %v801
  %s804 = scalar_lea.vmem %s0, 2728
  %v805 = vld [vmem:[%s804] sm:$0xff]
  %s806 = scalar_lea.vmem %s1, 2856
  %807 = vst [vmem:[%s806] sm:$0xff] %v805
  %s808 = scalar_lea.vmem %s0, 1160
  %v809 = vld [vmem:[%s808] sm:$0xff]
  %s810 = scalar_lea.vmem %s1, 1288
  %811 = vst [vmem:[%s810] sm:$0xff] %v809
  %s812 = scalar_lea.vmem %s0, 2952
  %v813 = vld [vmem:[%s812] sm:$0xff]
  %s814 = scalar_lea.vmem %s1, 3080
  %815 = vst [vmem:[%s814] sm:$0xff] %v813
  %s816 = scalar_lea.vmem %s0, 1384
  %v817 = vld [vmem:[%s816] sm:$0xff]
  %s818 = scalar_lea.vmem %s1, 1512
  %819 = vst [vmem:[%s818] sm:$0xff] %v817
  %s820 = scalar_lea.vmem %s0, 3176
  %v821 = vld [vmem:[%s820] sm:$0xff]
  %s822 = scalar_lea.vmem %s1, 3304
  %823 = vst [vmem:[%s822] sm:$0xff] %v821
  %s824 = scalar_lea.vmem %s0, 1608
  %v825 = vld [vmem:[%s824] sm:$0xff]
  %s826 = scalar_lea.vmem %s1, 1736
  %827 = vst [vmem:[%s826] sm:$0xff] %v825
  %s828 = scalar_lea.vmem %s0, 3400
  %v829 = vld [vmem:[%s828] sm:$0xff]
  %s830 = scalar_lea.vmem %s1, 3528
  %831 = vst [vmem:[%s830] sm:$0xff] %v829
  %s832 = scalar_lea.vmem %s0, 8
  %v833 = vld [vmem:[%s832] sm:$0xff]
  %s834 = scalar_lea.vmem %s1, 200
  %835 = vst [vmem:[%s834] sm:$0xff] %v833
  %s836 = scalar_lea.vmem %s0, 1800
  %v837 = vld [vmem:[%s836] sm:$0xff]
  %s838 = scalar_lea.vmem %s1, 1992
  %839 = vst [vmem:[%s838] sm:$0xff] %v837
  %s840 = scalar_lea.vmem %s0, 232
  %v841 = vld [vmem:[%s840] sm:$0xff]
  %s842 = scalar_lea.vmem %s1, 424
  %843 = vst [vmem:[%s842] sm:$0xff] %v841
  %s844 = scalar_lea.vmem %s0, 2024
  %v845 = vld [vmem:[%s844] sm:$0xff]
  %s846 = scalar_lea.vmem %s1, 2216
  %847 = vst [vmem:[%s846] sm:$0xff] %v845
  %s848 = scalar_lea.vmem %s0, 456
  %v849 = vld [vmem:[%s848] sm:$0xff]
  %s850 = scalar_lea.vmem %s1, 648
  %851 = vst [vmem:[%s850] sm:$0xff] %v849
  %s852 = scalar_lea.vmem %s0, 2248
  %v853 = vld [vmem:[%s852] sm:$0xff]
  %s854 = scalar_lea.vmem %s1, 2440
  %855 = vst [vmem:[%s854] sm:$0xff] %v853
  %s856 = scalar_lea.vmem %s0, 680
  %v857 = vld [vmem:[%s856] sm:$0xff]
  %s858 = scalar_lea.vmem %s1, 872
  %859 = vst [vmem:[%s858] sm:$0xff] %v857
  %s860 = scalar_lea.vmem %s0, 2472
  %v861 = vld [vmem:[%s860] sm:$0xff]
  %s862 = scalar_lea.vmem %s1, 2664
  %863 = vst [vmem:[%s862] sm:$0xff] %v861
  %s864 = scalar_lea.vmem %s0, 904
  %v865 = vld [vmem:[%s864] sm:$0xff]
  %s866 = scalar_lea.vmem %s1, 1096
  %867 = vst [vmem:[%s866] sm:$0xff] %v865
  %s868 = scalar_lea.vmem %s0, 2696
  %v869 = vld [vmem:[%s868] sm:$0xff]
  %s870 = scalar_lea.vmem %s1, 2888
  %871 = vst [vmem:[%s870] sm:$0xff] %v869
  %s872 = scalar_lea.vmem %s0, 1128
  %v873 = vld [vmem:[%s872] sm:$0xff]
  %s874 = scalar_lea.vmem %s1, 1320
  %875 = vst [vmem:[%s874] sm:$0xff] %v873
  %s876 = scalar_lea.vmem %s0, 2920
  %v877 = vld [vmem:[%s876] sm:$0xff]
  %s878 = scalar_lea.vmem %s1, 3112
  %879 = vst [vmem:[%s878] sm:$0xff] %v877
  %s880 = scalar_lea.vmem %s0, 1352
  %v881 = vld [vmem:[%s880] sm:$0xff]
  %s882 = scalar_lea.vmem %s1, 1544
  %883 = vst [vmem:[%s882] sm:$0xff] %v881
  %s884 = scalar_lea.vmem %s0, 3144
  %v885 = vld [vmem:[%s884] sm:$0xff]
  %s886 = scalar_lea.vmem %s1, 3336
  %887 = vst [vmem:[%s886] sm:$0xff] %v885
  %s888 = scalar_lea.vmem %s0, 1576
  %v889 = vld [vmem:[%s888] sm:$0xff]
  %s890 = scalar_lea.vmem %s1, 1768
  %891 = vst [vmem:[%s890] sm:$0xff] %v889
  %s892 = scalar_lea.vmem %s0, 3368
  %v893 = vld [vmem:[%s892] sm:$0xff]
  %s894 = scalar_lea.vmem %s1, 3560
  %895 = vst [vmem:[%s894] sm:$0xff] %v893
  %s896 = scalar_lea.vmem %s0, 208
  %v897 = vld [vmem:[%s896] sm:$0xff]
  %s898 = scalar_lea.vmem %s1, 16
  %899 = vst [vmem:[%s898] sm:$0xff] %v897
  %s900 = scalar_lea.vmem %s0, 2000
  %v901 = vld [vmem:[%s900] sm:$0xff]
  %s902 = scalar_lea.vmem %s1, 1808
  %903 = vst [vmem:[%s902] sm:$0xff] %v901
  %s904 = scalar_lea.vmem %s0, 432
  %v905 = vld [vmem:[%s904] sm:$0xff]
  %s906 = scalar_lea.vmem %s1, 240
  %907 = vst [vmem:[%s906] sm:$0xff] %v905
  %s908 = scalar_lea.vmem %s0, 2224
  %v909 = vld [vmem:[%s908] sm:$0xff]
  %s910 = scalar_lea.vmem %s1, 2032
  %911 = vst [vmem:[%s910] sm:$0xff] %v909
  %s912 = scalar_lea.vmem %s0, 656
  %v913 = vld [vmem:[%s912] sm:$0xff]
  %s914 = scalar_lea.vmem %s1, 464
  %915 = vst [vmem:[%s914] sm:$0xff] %v913
  %s916 = scalar_lea.vmem %s0, 2448
  %v917 = vld [vmem:[%s916] sm:$0xff]
  %s918 = scalar_lea.vmem %s1, 2256
  %919 = vst [vmem:[%s918] sm:$0xff] %v917
  %s920 = scalar_lea.vmem %s0, 880
  %v921 = vld [vmem:[%s920] sm:$0xff]
  %s922 = scalar_lea.vmem %s1, 688
  %923 = vst [vmem:[%s922] sm:$0xff] %v921
  %s924 = scalar_lea.vmem %s0, 2672
  %v925 = vld [vmem:[%s924] sm:$0xff]
  %s926 = scalar_lea.vmem %s1, 2480
  %927 = vst [vmem:[%s926] sm:$0xff] %v925
  %s928 = scalar_lea.vmem %s0, 1104
  %v929 = vld [vmem:[%s928] sm:$0xff]
  %s930 = scalar_lea.vmem %s1, 912
  %931 = vst [vmem:[%s930] sm:$0xff] %v929
  %s932 = scalar_lea.vmem %s0, 2896
  %v933 = vld [vmem:[%s932] sm:$0xff]
  %s934 = scalar_lea.vmem %s1, 2704
  %935 = vst [vmem:[%s934] sm:$0xff] %v933
  %s936 = scalar_lea.vmem %s0, 1328
  %v937 = vld [vmem:[%s936] sm:$0xff]
  %s938 = scalar_lea.vmem %s1, 1136
  %939 = vst [vmem:[%s938] sm:$0xff] %v937
  %s940 = scalar_lea.vmem %s0, 3120
  %v941 = vld [vmem:[%s940] sm:$0xff]
  %s942 = scalar_lea.vmem %s1, 2928
  %943 = vst [vmem:[%s942] sm:$0xff] %v941
  %s944 = scalar_lea.vmem %s0, 1552
  %v945 = vld [vmem:[%s944] sm:$0xff]
  %s946 = scalar_lea.vmem %s1, 1360
  %947 = vst [vmem:[%s946] sm:$0xff] %v945
  %s948 = scalar_lea.vmem %s0, 3344
  %v949 = vld [vmem:[%s948] sm:$0xff]
  %s950 = scalar_lea.vmem %s1, 3152
  %951 = vst [vmem:[%s950] sm:$0xff] %v949
  %s952 = scalar_lea.vmem %s0, 1776
  %v953 = vld [vmem:[%s952] sm:$0xff]
  %s954 = scalar_lea.vmem %s1, 1584
  %955 = vst [vmem:[%s954] sm:$0xff] %v953
  %s956 = scalar_lea.vmem %s0, 3568
  %v957 = vld [vmem:[%s956] sm:$0xff]
  %s958 = scalar_lea.vmem %s1, 3376
  %959 = vst [vmem:[%s958] sm:$0xff] %v957
  %s960 = scalar_lea.vmem %s0, 176
  %v961 = vld [vmem:[%s960] sm:$0xff]
  %s962 = scalar_lea.vmem %s1, 48
  %963 = vst [vmem:[%s962] sm:$0xff] %v961
  %s964 = scalar_lea.vmem %s0, 1968
  %v965 = vld [vmem:[%s964] sm:$0xff]
  %s966 = scalar_lea.vmem %s1, 1840
  %967 = vst [vmem:[%s966] sm:$0xff] %v965
  %s968 = scalar_lea.vmem %s0, 400
  %v969 = vld [vmem:[%s968] sm:$0xff]
  %s970 = scalar_lea.vmem %s1, 272
  %971 = vst [vmem:[%s970] sm:$0xff] %v969
  %s972 = scalar_lea.vmem %s0, 2192
  %v973 = vld [vmem:[%s972] sm:$0xff]
  %s974 = scalar_lea.vmem %s1, 2064
  %975 = vst [vmem:[%s974] sm:$0xff] %v973
  %s976 = scalar_lea.vmem %s0, 624
  %v977 = vld [vmem:[%s976] sm:$0xff]
  %s978 = scalar_lea.vmem %s1, 496
  %979 = vst [vmem:[%s978] sm:$0xff] %v977
  %s980 = scalar_lea.vmem %s0, 2416
  %v981 = vld [vmem:[%s980] sm:$0xff]
  %s982 = scalar_lea.vmem %s1, 2288
  %983 = vst [vmem:[%s982] sm:$0xff] %v981
  %s984 = scalar_lea.vmem %s0, 848
  %v985 = vld [vmem:[%s984] sm:$0xff]
  %s986 = scalar_lea.vmem %s1, 720
  %987 = vst [vmem:[%s986] sm:$0xff] %v985
  %s988 = scalar_lea.vmem %s0, 2640
  %v989 = vld [vmem:[%s988] sm:$0xff]
  %s990 = scalar_lea.vmem %s1, 2512
  %991 = vst [vmem:[%s990] sm:$0xff] %v989
  %s992 = scalar_lea.vmem %s0, 1072
  %v993 = vld [vmem:[%s992] sm:$0xff]
  %s994 = scalar_lea.vmem %s1, 944
  %995 = vst [vmem:[%s994] sm:$0xff] %v993
  %s996 = scalar_lea.vmem %s0, 2864
  %v997 = vld [vmem:[%s996] sm:$0xff]
  %s998 = scalar_lea.vmem %s1, 2736
  %999 = vst [vmem:[%s998] sm:$0xff] %v997
  %s1000 = scalar_lea.vmem %s0, 1296
  %v1001 = vld [vmem:[%s1000] sm:$0xff]
  %s1002 = scalar_lea.vmem %s1, 1168
  %1003 = vst [vmem:[%s1002] sm:$0xff] %v1001
  %s1004 = scalar_lea.vmem %s0, 3088
  %v1005 = vld [vmem:[%s1004] sm:$0xff]
  %s1006 = scalar_lea.vmem %s1, 2960
  %1007 = vst [vmem:[%s1006] sm:$0xff] %v1005
  %s1008 = scalar_lea.vmem %s0, 1520
  %v1009 = vld [vmem:[%s1008] sm:$0xff]
  %s1010 = scalar_lea.vmem %s1, 1392
  %1011 = vst [vmem:[%s1010] sm:$0xff] %v1009
  %s1012 = scalar_lea.vmem %s0, 3312
  %v1013 = vld [vmem:[%s1012] sm:$0xff]
  %s1014 = scalar_lea.vmem %s1, 3184
  %1015 = vst [vmem:[%s1014] sm:$0xff] %v1013
  %s1016 = scalar_lea.vmem %s0, 1744
  %v1017 = vld [vmem:[%s1016] sm:$0xff]
  %s1018 = scalar_lea.vmem %s1, 1616
  %1019 = vst [vmem:[%s1018] sm:$0xff] %v1017
  %s1020 = scalar_lea.vmem %s0, 3536
  %v1021 = vld [vmem:[%s1020] sm:$0xff]
  %s1022 = scalar_lea.vmem %s1, 3408
  %1023 = vst [vmem:[%s1022] sm:$0xff] %v1021
  %s1024 = scalar_lea.vmem %s0, 144
  %v1025 = vld [vmem:[%s1024] sm:$0xff]
  %s1026 = scalar_lea.vmem %s1, 80
  %1027 = vst [vmem:[%s1026] sm:$0xff] %v1025
  %s1028 = scalar_lea.vmem %s0, 1936
  %v1029 = vld [vmem:[%s1028] sm:$0xff]
  %s1030 = scalar_lea.vmem %s1, 1872
  %1031 = vst [vmem:[%s1030] sm:$0xff] %v1029
  %s1032 = scalar_lea.vmem %s0, 368
  %v1033 = vld [vmem:[%s1032] sm:$0xff]
  %s1034 = scalar_lea.vmem %s1, 304
  %1035 = vst [vmem:[%s1034] sm:$0xff] %v1033
  %s1036 = scalar_lea.vmem %s0, 2160
  %v1037 = vld [vmem:[%s1036] sm:$0xff]
  %s1038 = scalar_lea.vmem %s1, 2096
  %1039 = vst [vmem:[%s1038] sm:$0xff] %v1037
  %s1040 = scalar_lea.vmem %s0, 592
  %v1041 = vld [vmem:[%s1040] sm:$0xff]
  %s1042 = scalar_lea.vmem %s1, 528
  %1043 = vst [vmem:[%s1042] sm:$0xff] %v1041
  %s1044 = scalar_lea.vmem %s0, 2384
  %v1045 = vld [vmem:[%s1044] sm:$0xff]
  %s1046 = scalar_lea.vmem %s1, 2320
  %1047 = vst [vmem:[%s1046] sm:$0xff] %v1045
  %s1048 = scalar_lea.vmem %s0, 816
  %v1049 = vld [vmem:[%s1048] sm:$0xff]
  %s1050 = scalar_lea.vmem %s1, 752
  %1051 = vst [vmem:[%s1050] sm:$0xff] %v1049
  %s1052 = scalar_lea.vmem %s0, 2608
  %v1053 = vld [vmem:[%s1052] sm:$0xff]
  %s1054 = scalar_lea.vmem %s1, 2544
  %1055 = vst [vmem:[%s1054] sm:$0xff] %v1053
  %s1056 = scalar_lea.vmem %s0, 1040
  %v1057 = vld [vmem:[%s1056] sm:$0xff]
  %s1058 = scalar_lea.vmem %s1, 976
  %1059 = vst [vmem:[%s1058] sm:$0xff] %v1057
  %s1060 = scalar_lea.vmem %s0, 2832
  %v1061 = vld [vmem:[%s1060] sm:$0xff]
  %s1062 = scalar_lea.vmem %s1, 2768
  %1063 = vst [vmem:[%s1062] sm:$0xff] %v1061
  %s1064 = scalar_lea.vmem %s0, 1264
  %v1065 = vld [vmem:[%s1064] sm:$0xff]
  %s1066 = scalar_lea.vmem %s1, 1200
  %1067 = vst [vmem:[%s1066] sm:$0xff] %v1065
  %s1068 = scalar_lea.vmem %s0, 3056
  %v1069 = vld [vmem:[%s1068] sm:$0xff]
  %s1070 = scalar_lea.vmem %s1, 2992
  %1071 = vst [vmem:[%s1070] sm:$0xff] %v1069
  %s1072 = scalar_lea.vmem %s0, 1488
  %v1073 = vld [vmem:[%s1072] sm:$0xff]
  %s1074 = scalar_lea.vmem %s1, 1424
  %1075 = vst [vmem:[%s1074] sm:$0xff] %v1073
  %s1076 = scalar_lea.vmem %s0, 3280
  %v1077 = vld [vmem:[%s1076] sm:$0xff]
  %s1078 = scalar_lea.vmem %s1, 3216
  %1079 = vst [vmem:[%s1078] sm:$0xff] %v1077
  %s1080 = scalar_lea.vmem %s0, 1712
  %v1081 = vld [vmem:[%s1080] sm:$0xff]
  %s1082 = scalar_lea.vmem %s1, 1648
  %1083 = vst [vmem:[%s1082] sm:$0xff] %v1081
  %s1084 = scalar_lea.vmem %s0, 3504
  %v1085 = vld [vmem:[%s1084] sm:$0xff]
  %s1086 = scalar_lea.vmem %s1, 3440
  %1087 = vst [vmem:[%s1086] sm:$0xff] %v1085
  %s1088 = scalar_lea.vmem %s0, 112
  %v1089 = vld [vmem:[%s1088] sm:$0xff]
  %s1090 = scalar_lea.vmem %s1, 112
  %1091 = vst [vmem:[%s1090] sm:$0xff] %v1089
  %s1092 = scalar_lea.vmem %s0, 1904
  %v1093 = vld [vmem:[%s1092] sm:$0xff]
  %s1094 = scalar_lea.vmem %s1, 1904
  %1095 = vst [vmem:[%s1094] sm:$0xff] %v1093
  %s1096 = scalar_lea.vmem %s0, 336
  %v1097 = vld [vmem:[%s1096] sm:$0xff]
  %s1098 = scalar_lea.vmem %s1, 336
  %1099 = vst [vmem:[%s1098] sm:$0xff] %v1097
  %s1100 = scalar_lea.vmem %s0, 2128
  %v1101 = vld [vmem:[%s1100] sm:$0xff]
  %s1102 = scalar_lea.vmem %s1, 2128
  %1103 = vst [vmem:[%s1102] sm:$0xff] %v1101
  %s1104 = scalar_lea.vmem %s0, 560
  %v1105 = vld [vmem:[%s1104] sm:$0xff]
  %s1106 = scalar_lea.vmem %s1, 560
  %1107 = vst [vmem:[%s1106] sm:$0xff] %v1105
  %s1108 = scalar_lea.vmem %s0, 2352
  %v1109 = vld [vmem:[%s1108] sm:$0xff]
  %s1110 = scalar_lea.vmem %s1, 2352
  %1111 = vst [vmem:[%s1110] sm:$0xff] %v1109
  %s1112 = scalar_lea.vmem %s0, 784
  %v1113 = vld [vmem:[%s1112] sm:$0xff]
  %s1114 = scalar_lea.vmem %s1, 784
  %1115 = vst [vmem:[%s1114] sm:$0xff] %v1113
  %s1116 = scalar_lea.vmem %s0, 2576
  %v1117 = vld [vmem:[%s1116] sm:$0xff]
  %s1118 = scalar_lea.vmem %s1, 2576
  %1119 = vst [vmem:[%s1118] sm:$0xff] %v1117
  %s1120 = scalar_lea.vmem %s0, 1008
  %v1121 = vld [vmem:[%s1120] sm:$0xff]
  %s1122 = scalar_lea.vmem %s1, 1008
  %1123 = vst [vmem:[%s1122] sm:$0xff] %v1121
  %s1124 = scalar_lea.vmem %s0, 2800
  %v1125 = vld [vmem:[%s1124] sm:$0xff]
  %s1126 = scalar_lea.vmem %s1, 2800
  %1127 = vst [vmem:[%s1126] sm:$0xff] %v1125
  %s1128 = scalar_lea.vmem %s0, 1232
  %v1129 = vld [vmem:[%s1128] sm:$0xff]
  %s1130 = scalar_lea.vmem %s1, 1232
  %1131 = vst [vmem:[%s1130] sm:$0xff] %v1129
  %s1132 = scalar_lea.vmem %s0, 3024
  %v1133 = vld [vmem:[%s1132] sm:$0xff]
  %s1134 = scalar_lea.vmem %s1, 3024
  %1135 = vst [vmem:[%s1134] sm:$0xff] %v1133
  %s1136 = scalar_lea.vmem %s0, 1456
  %v1137 = vld [vmem:[%s1136] sm:$0xff]
  %s1138 = scalar_lea.vmem %s1, 1456
  %1139 = vst [vmem:[%s1138] sm:$0xff] %v1137
  %s1140 = scalar_lea.vmem %s0, 3248
  %v1141 = vld [vmem:[%s1140] sm:$0xff]
  %s1142 = scalar_lea.vmem %s1, 3248
  %1143 = vst [vmem:[%s1142] sm:$0xff] %v1141
  %s1144 = scalar_lea.vmem %s0, 1680
  %v1145 = vld [vmem:[%s1144] sm:$0xff]
  %s1146 = scalar_lea.vmem %s1, 1680
  %1147 = vst [vmem:[%s1146] sm:$0xff] %v1145
  %s1148 = scalar_lea.vmem %s0, 3472
  %v1149 = vld [vmem:[%s1148] sm:$0xff]
  %s1150 = scalar_lea.vmem %s1, 3472
  %1151 = vst [vmem:[%s1150] sm:$0xff] %v1149
  %s1152 = scalar_lea.vmem %s0, 80
  %v1153 = vld [vmem:[%s1152] sm:$0xff]
  %s1154 = scalar_lea.vmem %s1, 144
  %1155 = vst [vmem:[%s1154] sm:$0xff] %v1153
  %s1156 = scalar_lea.vmem %s0, 1872
  %v1157 = vld [vmem:[%s1156] sm:$0xff]
  %s1158 = scalar_lea.vmem %s1, 1936
  %1159 = vst [vmem:[%s1158] sm:$0xff] %v1157
  %s1160 = scalar_lea.vmem %s0, 304
  %v1161 = vld [vmem:[%s1160] sm:$0xff]
  %s1162 = scalar_lea.vmem %s1, 368
  %1163 = vst [vmem:[%s1162] sm:$0xff] %v1161
  %s1164 = scalar_lea.vmem %s0, 2096
  %v1165 = vld [vmem:[%s1164] sm:$0xff]
  %s1166 = scalar_lea.vmem %s1, 2160
  %1167 = vst [vmem:[%s1166] sm:$0xff] %v1165
  %s1168 = scalar_lea.vmem %s0, 528
  %v1169 = vld [vmem:[%s1168] sm:$0xff]
  %s1170 = scalar_lea.vmem %s1, 592
  %1171 = vst [vmem:[%s1170] sm:$0xff] %v1169
  %s1172 = scalar_lea.vmem %s0, 2320
  %v1173 = vld [vmem:[%s1172] sm:$0xff]
  %s1174 = scalar_lea.vmem %s1, 2384
  %1175 = vst [vmem:[%s1174] sm:$0xff] %v1173
  %s1176 = scalar_lea.vmem %s0, 752
  %v1177 = vld [vmem:[%s1176] sm:$0xff]
  %s1178 = scalar_lea.vmem %s1, 816
  %1179 = vst [vmem:[%s1178] sm:$0xff] %v1177
  %s1180 = scalar_lea.vmem %s0, 2544
  %v1181 = vld [vmem:[%s1180] sm:$0xff]
  %s1182 = scalar_lea.vmem %s1, 2608
  %1183 = vst [vmem:[%s1182] sm:$0xff] %v1181
  %s1184 = scalar_lea.vmem %s0, 976
  %v1185 = vld [vmem:[%s1184] sm:$0xff]
  %s1186 = scalar_lea.vmem %s1, 1040
  %1187 = vst [vmem:[%s1186] sm:$0xff] %v1185
  %s1188 = scalar_lea.vmem %s0, 2768
  %v1189 = vld [vmem:[%s1188] sm:$0xff]
  %s1190 = scalar_lea.vmem %s1, 2832
  %1191 = vst [vmem:[%s1190] sm:$0xff] %v1189
  %s1192 = scalar_lea.vmem %s0, 1200
  %v1193 = vld [vmem:[%s1192] sm:$0xff]
  %s1194 = scalar_lea.vmem %s1, 1264
  %1195 = vst [vmem:[%s1194] sm:$0xff] %v1193
  %s1196 = scalar_lea.vmem %s0, 2992
  %v1197 = vld [vmem:[%s1196] sm:$0xff]
  %s1198 = scalar_lea.vmem %s1, 3056
  %1199 = vst [vmem:[%s1198] sm:$0xff] %v1197
  %s1200 = scalar_lea.vmem %s0, 1424
  %v1201 = vld [vmem:[%s1200] sm:$0xff]
  %s1202 = scalar_lea.vmem %s1, 1488
  %1203 = vst [vmem:[%s1202] sm:$0xff] %v1201
  %s1204 = scalar_lea.vmem %s0, 3216
  %v1205 = vld [vmem:[%s1204] sm:$0xff]
  %s1206 = scalar_lea.vmem %s1, 3280
  %1207 = vst [vmem:[%s1206] sm:$0xff] %v1205
  %s1208 = scalar_lea.vmem %s0, 1648
  %v1209 = vld [vmem:[%s1208] sm:$0xff]
  %s1210 = scalar_lea.vmem %s1, 1712
  %1211 = vst [vmem:[%s1210] sm:$0xff] %v1209
  %s1212 = scalar_lea.vmem %s0, 3440
  %v1213 = vld [vmem:[%s1212] sm:$0xff]
  %s1214 = scalar_lea.vmem %s1, 3504
  %1215 = vst [vmem:[%s1214] sm:$0xff] %v1213
  %s1216 = scalar_lea.vmem %s0, 48
  %v1217 = vld [vmem:[%s1216] sm:$0xff]
  %s1218 = scalar_lea.vmem %s1, 176
  %1219 = vst [vmem:[%s1218] sm:$0xff] %v1217
  %s1220 = scalar_lea.vmem %s0, 1840
  %v1221 = vld [vmem:[%s1220] sm:$0xff]
  %s1222 = scalar_lea.vmem %s1, 1968
  %1223 = vst [vmem:[%s1222] sm:$0xff] %v1221
  %s1224 = scalar_lea.vmem %s0, 272
  %v1225 = vld [vmem:[%s1224] sm:$0xff]
  %s1226 = scalar_lea.vmem %s1, 400
  %1227 = vst [vmem:[%s1226] sm:$0xff] %v1225
  %s1228 = scalar_lea.vmem %s0, 2064
  %v1229 = vld [vmem:[%s1228] sm:$0xff]
  %s1230 = scalar_lea.vmem %s1, 2192
  %1231 = vst [vmem:[%s1230] sm:$0xff] %v1229
  %s1232 = scalar_lea.vmem %s0, 496
  %v1233 = vld [vmem:[%s1232] sm:$0xff]
  %s1234 = scalar_lea.vmem %s1, 624
  %1235 = vst [vmem:[%s1234] sm:$0xff] %v1233
  %s1236 = scalar_lea.vmem %s0, 2288
  %v1237 = vld [vmem:[%s1236] sm:$0xff]
  %s1238 = scalar_lea.vmem %s1, 2416
  %1239 = vst [vmem:[%s1238] sm:$0xff] %v1237
  %s1240 = scalar_lea.vmem %s0, 720
  %v1241 = vld [vmem:[%s1240] sm:$0xff]
  %s1242 = scalar_lea.vmem %s1, 848
  %1243 = vst [vmem:[%s1242] sm:$0xff] %v1241
  %s1244 = scalar_lea.vmem %s0, 2512
  %v1245 = vld [vmem:[%s1244] sm:$0xff]
  %s1246 = scalar_lea.vmem %s1, 2640
  %1247 = vst [vmem:[%s1246] sm:$0xff] %v1245
  %s1248 = scalar_lea.vmem %s0, 944
  %v1249 = vld [vmem:[%s1248] sm:$0xff]
  %s1250 = scalar_lea.vmem %s1, 1072
  %1251 = vst [vmem:[%s1250] sm:$0xff] %v1249
  %s1252 = scalar_lea.vmem %s0, 2736
  %v1253 = vld [vmem:[%s1252] sm:$0xff]
  %s1254 = scalar_lea.vmem %s1, 2864
  %1255 = vst [vmem:[%s1254] sm:$0xff] %v1253
  %s1256 = scalar_lea.vmem %s0, 1168
  %v1257 = vld [vmem:[%s1256] sm:$0xff]
  %s1258 = scalar_lea.vmem %s1, 1296
  %1259 = vst [vmem:[%s1258] sm:$0xff] %v1257
  %s1260 = scalar_lea.vmem %s0, 2960
  %v1261 = vld [vmem:[%s1260] sm:$0xff]
  %s1262 = scalar_lea.vmem %s1, 3088
  %1263 = vst [vmem:[%s1262] sm:$0xff] %v1261
  %s1264 = scalar_lea.vmem %s0, 1392
  %v1265 = vld [vmem:[%s1264] sm:$0xff]
  %s1266 = scalar_lea.vmem %s1, 1520
  %1267 = vst [vmem:[%s1266] sm:$0xff] %v1265
  %s1268 = scalar_lea.vmem %s0, 3184
  %v1269 = vld [vmem:[%s1268] sm:$0xff]
  %s1270 = scalar_lea.vmem %s1, 3312
  %1271 = vst [vmem:[%s1270] sm:$0xff] %v1269
  %s1272 = scalar_lea.vmem %s0, 1616
  %v1273 = vld [vmem:[%s1272] sm:$0xff]
  %s1274 = scalar_lea.vmem %s1, 1744
  %1275 = vst [vmem:[%s1274] sm:$0xff] %v1273
  %s1276 = scalar_lea.vmem %s0, 3408
  %v1277 = vld [vmem:[%s1276] sm:$0xff]
  %s1278 = scalar_lea.vmem %s1, 3536
  %1279 = vst [vmem:[%s1278] sm:$0xff] %v1277
  %s1280 = scalar_lea.vmem %s0, 16
  %v1281 = vld [vmem:[%s1280] sm:$0xff]
  %s1282 = scalar_lea.vmem %s1, 208
  %1283 = vst [vmem:[%s1282] sm:$0xff] %v1281
  %s1284 = scalar_lea.vmem %s0, 1808
  %v1285 = vld [vmem:[%s1284] sm:$0xff]
  %s1286 = scalar_lea.vmem %s1, 2000
  %1287 = vst [vmem:[%s1286] sm:$0xff] %v1285
  %s1288 = scalar_lea.vmem %s0, 240
  %v1289 = vld [vmem:[%s1288] sm:$0xff]
  %s1290 = scalar_lea.vmem %s1, 432
  %1291 = vst [vmem:[%s1290] sm:$0xff] %v1289
  %s1292 = scalar_lea.vmem %s0, 2032
  %v1293 = vld [vmem:[%s1292] sm:$0xff]
  %s1294 = scalar_lea.vmem %s1, 2224
  %1295 = vst [vmem:[%s1294] sm:$0xff] %v1293
  %s1296 = scalar_lea.vmem %s0, 464
  %v1297 = vld [vmem:[%s1296] sm:$0xff]
  %s1298 = scalar_lea.vmem %s1, 656
  %1299 = vst [vmem:[%s1298] sm:$0xff] %v1297
  %s1300 = scalar_lea.vmem %s0, 2256
  %v1301 = vld [vmem:[%s1300] sm:$0xff]
  %s1302 = scalar_lea.vmem %s1, 2448
  %1303 = vst [vmem:[%s1302] sm:$0xff] %v1301
  %s1304 = scalar_lea.vmem %s0, 688
  %v1305 = vld [vmem:[%s1304] sm:$0xff]
  %s1306 = scalar_lea.vmem %s1, 880
  %1307 = vst [vmem:[%s1306] sm:$0xff] %v1305
  %s1308 = scalar_lea.vmem %s0, 2480
  %v1309 = vld [vmem:[%s1308] sm:$0xff]
  %s1310 = scalar_lea.vmem %s1, 2672
  %1311 = vst [vmem:[%s1310] sm:$0xff] %v1309
  %s1312 = scalar_lea.vmem %s0, 912
  %v1313 = vld [vmem:[%s1312] sm:$0xff]
  %s1314 = scalar_lea.vmem %s1, 1104
  %1315 = vst [vmem:[%s1314] sm:$0xff] %v1313
  %s1316 = scalar_lea.vmem %s0, 2704
  %v1317 = vld [vmem:[%s1316] sm:$0xff]
  %s1318 = scalar_lea.vmem %s1, 2896
  %1319 = vst [vmem:[%s1318] sm:$0xff] %v1317
  %s1320 = scalar_lea.vmem %s0, 1136
  %v1321 = vld [vmem:[%s1320] sm:$0xff]
  %s1322 = scalar_lea.vmem %s1, 1328
  %1323 = vst [vmem:[%s1322] sm:$0xff] %v1321
  %s1324 = scalar_lea.vmem %s0, 2928
  %v1325 = vld [vmem:[%s1324] sm:$0xff]
  %s1326 = scalar_lea.vmem %s1, 3120
  %1327 = vst [vmem:[%s1326] sm:$0xff] %v1325
  %s1328 = scalar_lea.vmem %s0, 1360
  %v1329 = vld [vmem:[%s1328] sm:$0xff]
  %s1330 = scalar_lea.vmem %s1, 1552
  %1331 = vst [vmem:[%s1330] sm:$0xff] %v1329
  %s1332 = scalar_lea.vmem %s0, 3152
  %v1333 = vld [vmem:[%s1332] sm:$0xff]
  %s1334 = scalar_lea.vmem %s1, 3344
  %1335 = vst [vmem:[%s1334] sm:$0xff] %v1333
  %s1336 = scalar_lea.vmem %s0, 1584
  %v1337 = vld [vmem:[%s1336] sm:$0xff]
  %s1338 = scalar_lea.vmem %s1, 1776
  %1339 = vst [vmem:[%s1338] sm:$0xff] %v1337
  %s1340 = scalar_lea.vmem %s0, 3376
  %v1341 = vld [vmem:[%s1340] sm:$0xff]
  %s1342 = scalar_lea.vmem %s1, 3568
  %1343 = vst [vmem:[%s1342] sm:$0xff] %v1341
  %s1344 = scalar_lea.vmem %s0, 216
  %v1345 = vld [vmem:[%s1344] sm:$0xff]
  %s1346 = scalar_lea.vmem %s1, 24
  %1347 = vst [vmem:[%s1346] sm:$0xff] %v1345
  %s1348 = scalar_lea.vmem %s0, 2008
  %v1349 = vld [vmem:[%s1348] sm:$0xff]
  %s1350 = scalar_lea.vmem %s1, 1816
  %1351 = vst [vmem:[%s1350] sm:$0xff] %v1349
  %s1352 = scalar_lea.vmem %s0, 440
  %v1353 = vld [vmem:[%s1352] sm:$0xff]
  %s1354 = scalar_lea.vmem %s1, 248
  %1355 = vst [vmem:[%s1354] sm:$0xff] %v1353
  %s1356 = scalar_lea.vmem %s0, 2232
  %v1357 = vld [vmem:[%s1356] sm:$0xff]
  %s1358 = scalar_lea.vmem %s1, 2040
  %1359 = vst [vmem:[%s1358] sm:$0xff] %v1357
  %s1360 = scalar_lea.vmem %s0, 664
  %v1361 = vld [vmem:[%s1360] sm:$0xff]
  %s1362 = scalar_lea.vmem %s1, 472
  %1363 = vst [vmem:[%s1362] sm:$0xff] %v1361
  %s1364 = scalar_lea.vmem %s0, 2456
  %v1365 = vld [vmem:[%s1364] sm:$0xff]
  %s1366 = scalar_lea.vmem %s1, 2264
  %1367 = vst [vmem:[%s1366] sm:$0xff] %v1365
  %s1368 = scalar_lea.vmem %s0, 888
  %v1369 = vld [vmem:[%s1368] sm:$0xff]
  %s1370 = scalar_lea.vmem %s1, 696
  %1371 = vst [vmem:[%s1370] sm:$0xff] %v1369
  %s1372 = scalar_lea.vmem %s0, 2680
  %v1373 = vld [vmem:[%s1372] sm:$0xff]
  %s1374 = scalar_lea.vmem %s1, 2488
  %1375 = vst [vmem:[%s1374] sm:$0xff] %v1373
  %s1376 = scalar_lea.vmem %s0, 1112
  %v1377 = vld [vmem:[%s1376] sm:$0xff]
  %s1378 = scalar_lea.vmem %s1, 920
  %1379 = vst [vmem:[%s1378] sm:$0xff] %v1377
  %s1380 = scalar_lea.vmem %s0, 2904
  %v1381 = vld [vmem:[%s1380] sm:$0xff]
  %s1382 = scalar_lea.vmem %s1, 2712
  %1383 = vst [vmem:[%s1382] sm:$0xff] %v1381
  %s1384 = scalar_lea.vmem %s0, 1336
  %v1385 = vld [vmem:[%s1384] sm:$0xff]
  %s1386 = scalar_lea.vmem %s1, 1144
  %1387 = vst [vmem:[%s1386] sm:$0xff] %v1385
  %s1388 = scalar_lea.vmem %s0, 3128
  %v1389 = vld [vmem:[%s1388] sm:$0xff]
  %s1390 = scalar_lea.vmem %s1, 2936
  %1391 = vst [vmem:[%s1390] sm:$0xff] %v1389
  %s1392 = scalar_lea.vmem %s0, 1560
  %v1393 = vld [vmem:[%s1392] sm:$0xff]
  %s1394 = scalar_lea.vmem %s1, 1368
  %1395 = vst [vmem:[%s1394] sm:$0xff] %v1393
  %s1396 = scalar_lea.vmem %s0, 3352
  %v1397 = vld [vmem:[%s1396] sm:$0xff]
  %s1398 = scalar_lea.vmem %s1, 3160
  %1399 = vst [vmem:[%s1398] sm:$0xff] %v1397
  %s1400 = scalar_lea.vmem %s0, 1784
  %v1401 = vld [vmem:[%s1400] sm:$0xff]
  %s1402 = scalar_lea.vmem %s1, 1592
  %1403 = vst [vmem:[%s1402] sm:$0xff] %v1401
  %s1404 = scalar_lea.vmem %s0, 3576
  %v1405 = vld [vmem:[%s1404] sm:$0xff]
  %s1406 = scalar_lea.vmem %s1, 3384
  %1407 = vst [vmem:[%s1406] sm:$0xff] %v1405
  %s1408 = scalar_lea.vmem %s0, 184
  %v1409 = vld [vmem:[%s1408] sm:$0xff]
  %s1410 = scalar_lea.vmem %s1, 56
  %1411 = vst [vmem:[%s1410] sm:$0xff] %v1409
  %s1412 = scalar_lea.vmem %s0, 1976
  %v1413 = vld [vmem:[%s1412] sm:$0xff]
  %s1414 = scalar_lea.vmem %s1, 1848
  %1415 = vst [vmem:[%s1414] sm:$0xff] %v1413
  %s1416 = scalar_lea.vmem %s0, 408
  %v1417 = vld [vmem:[%s1416] sm:$0xff]
  %s1418 = scalar_lea.vmem %s1, 280
  %1419 = vst [vmem:[%s1418] sm:$0xff] %v1417
  %s1420 = scalar_lea.vmem %s0, 2200
  %v1421 = vld [vmem:[%s1420] sm:$0xff]
  %s1422 = scalar_lea.vmem %s1, 2072
  %1423 = vst [vmem:[%s1422] sm:$0xff] %v1421
  %s1424 = scalar_lea.vmem %s0, 632
  %v1425 = vld [vmem:[%s1424] sm:$0xff]
  %s1426 = scalar_lea.vmem %s1, 504
  %1427 = vst [vmem:[%s1426] sm:$0xff] %v1425
  %s1428 = scalar_lea.vmem %s0, 2424
  %v1429 = vld [vmem:[%s1428] sm:$0xff]
  %s1430 = scalar_lea.vmem %s1, 2296
  %1431 = vst [vmem:[%s1430] sm:$0xff] %v1429
  %s1432 = scalar_lea.vmem %s0, 856
  %v1433 = vld [vmem:[%s1432] sm:$0xff]
  %s1434 = scalar_lea.vmem %s1, 728
  %1435 = vst [vmem:[%s1434] sm:$0xff] %v1433
  %s1436 = scalar_lea.vmem %s0, 2648
  %v1437 = vld [vmem:[%s1436] sm:$0xff]
  %s1438 = scalar_lea.vmem %s1, 2520
  %1439 = vst [vmem:[%s1438] sm:$0xff] %v1437
  %s1440 = scalar_lea.vmem %s0, 1080
  %v1441 = vld [vmem:[%s1440] sm:$0xff]
  %s1442 = scalar_lea.vmem %s1, 952
  %1443 = vst [vmem:[%s1442] sm:$0xff] %v1441
  %s1444 = scalar_lea.vmem %s0, 2872
  %v1445 = vld [vmem:[%s1444] sm:$0xff]
  %s1446 = scalar_lea.vmem %s1, 2744
  %1447 = vst [vmem:[%s1446] sm:$0xff] %v1445
  %s1448 = scalar_lea.vmem %s0, 1304
  %v1449 = vld [vmem:[%s1448] sm:$0xff]
  %s1450 = scalar_lea.vmem %s1, 1176
  %1451 = vst [vmem:[%s1450] sm:$0xff] %v1449
  %s1452 = scalar_lea.vmem %s0, 3096
  %v1453 = vld [vmem:[%s1452] sm:$0xff]
  %s1454 = scalar_lea.vmem %s1, 2968
  %1455 = vst [vmem:[%s1454] sm:$0xff] %v1453
  %s1456 = scalar_lea.vmem %s0, 1528
  %v1457 = vld [vmem:[%s1456] sm:$0xff]
  %s1458 = scalar_lea.vmem %s1, 1400
  %1459 = vst [vmem:[%s1458] sm:$0xff] %v1457
  %s1460 = scalar_lea.vmem %s0, 3320
  %v1461 = vld [vmem:[%s1460] sm:$0xff]
  %s1462 = scalar_lea.vmem %s1, 3192
  %1463 = vst [vmem:[%s1462] sm:$0xff] %v1461
  %s1464 = scalar_lea.vmem %s0, 1752
  %v1465 = vld [vmem:[%s1464] sm:$0xff]
  %s1466 = scalar_lea.vmem %s1, 1624
  %1467 = vst [vmem:[%s1466] sm:$0xff] %v1465
  %s1468 = scalar_lea.vmem %s0, 3544
  %v1469 = vld [vmem:[%s1468] sm:$0xff]
  %s1470 = scalar_lea.vmem %s1, 3416
  %1471 = vst [vmem:[%s1470] sm:$0xff] %v1469
  %s1472 = scalar_lea.vmem %s0, 152
  %v1473 = vld [vmem:[%s1472] sm:$0xff]
  %s1474 = scalar_lea.vmem %s1, 88
  %1475 = vst [vmem:[%s1474] sm:$0xff] %v1473
  %s1476 = scalar_lea.vmem %s0, 1944
  %v1477 = vld [vmem:[%s1476] sm:$0xff]
  %s1478 = scalar_lea.vmem %s1, 1880
  %1479 = vst [vmem:[%s1478] sm:$0xff] %v1477
  %s1480 = scalar_lea.vmem %s0, 376
  %v1481 = vld [vmem:[%s1480] sm:$0xff]
  %s1482 = scalar_lea.vmem %s1, 312
  %1483 = vst [vmem:[%s1482] sm:$0xff] %v1481
  %s1484 = scalar_lea.vmem %s0, 2168
  %v1485 = vld [vmem:[%s1484] sm:$0xff]
  %s1486 = scalar_lea.vmem %s1, 2104
  %1487 = vst [vmem:[%s1486] sm:$0xff] %v1485
  %s1488 = scalar_lea.vmem %s0, 600
  %v1489 = vld [vmem:[%s1488] sm:$0xff]
  %s1490 = scalar_lea.vmem %s1, 536
  %1491 = vst [vmem:[%s1490] sm:$0xff] %v1489
  %s1492 = scalar_lea.vmem %s0, 2392
  %v1493 = vld [vmem:[%s1492] sm:$0xff]
  %s1494 = scalar_lea.vmem %s1, 2328
  %1495 = vst [vmem:[%s1494] sm:$0xff] %v1493
  %s1496 = scalar_lea.vmem %s0, 824
  %v1497 = vld [vmem:[%s1496] sm:$0xff]
  %s1498 = scalar_lea.vmem %s1, 760
  %1499 = vst [vmem:[%s1498] sm:$0xff] %v1497
  %s1500 = scalar_lea.vmem %s0, 2616
  %v1501 = vld [vmem:[%s1500] sm:$0xff]
  %s1502 = scalar_lea.vmem %s1, 2552
  %1503 = vst [vmem:[%s1502] sm:$0xff] %v1501
  %s1504 = scalar_lea.vmem %s0, 1048
  %v1505 = vld [vmem:[%s1504] sm:$0xff]
  %s1506 = scalar_lea.vmem %s1, 984
  %1507 = vst [vmem:[%s1506] sm:$0xff] %v1505
  %s1508 = scalar_lea.vmem %s0, 2840
  %v1509 = vld [vmem:[%s1508] sm:$0xff]
  %s1510 = scalar_lea.vmem %s1, 2776
  %1511 = vst [vmem:[%s1510] sm:$0xff] %v1509
  %s1512 = scalar_lea.vmem %s0, 1272
  %v1513 = vld [vmem:[%s1512] sm:$0xff]
  %s1514 = scalar_lea.vmem %s1, 1208
  %1515 = vst [vmem:[%s1514] sm:$0xff] %v1513
  %s1516 = scalar_lea.vmem %s0, 3064
  %v1517 = vld [vmem:[%s1516] sm:$0xff]
  %s1518 = scalar_lea.vmem %s1, 3000
  %1519 = vst [vmem:[%s1518] sm:$0xff] %v1517
  %s1520 = scalar_lea.vmem %s0, 1496
  %v1521 = vld [vmem:[%s1520] sm:$0xff]
  %s1522 = scalar_lea.vmem %s1, 1432
  %1523 = vst [vmem:[%s1522] sm:$0xff] %v1521
  %s1524 = scalar_lea.vmem %s0, 3288
  %v1525 = vld [vmem:[%s1524] sm:$0xff]
  %s1526 = scalar_lea.vmem %s1, 3224
  %1527 = vst [vmem:[%s1526] sm:$0xff] %v1525
  %s1528 = scalar_lea.vmem %s0, 1720
  %v1529 = vld [vmem:[%s1528] sm:$0xff]
  %s1530 = scalar_lea.vmem %s1, 1656
  %1531 = vst [vmem:[%s1530] sm:$0xff] %v1529
  %s1532 = scalar_lea.vmem %s0, 3512
  %v1533 = vld [vmem:[%s1532] sm:$0xff]
  %s1534 = scalar_lea.vmem %s1, 3448
  %1535 = vst [vmem:[%s1534] sm:$0xff] %v1533
  %s1536 = scalar_lea.vmem %s0, 120
  %v1537 = vld [vmem:[%s1536] sm:$0xff]
  %s1538 = scalar_lea.vmem %s1, 120
  %1539 = vst [vmem:[%s1538] sm:$0xff] %v1537
  %s1540 = scalar_lea.vmem %s0, 1912
  %v1541 = vld [vmem:[%s1540] sm:$0xff]
  %s1542 = scalar_lea.vmem %s1, 1912
  %1543 = vst [vmem:[%s1542] sm:$0xff] %v1541
  %s1544 = scalar_lea.vmem %s0, 344
  %v1545 = vld [vmem:[%s1544] sm:$0xff]
  %s1546 = scalar_lea.vmem %s1, 344
  %1547 = vst [vmem:[%s1546] sm:$0xff] %v1545
  %s1548 = scalar_lea.vmem %s0, 2136
  %v1549 = vld [vmem:[%s1548] sm:$0xff]
  %s1550 = scalar_lea.vmem %s1, 2136
  %1551 = vst [vmem:[%s1550] sm:$0xff] %v1549
  %s1552 = scalar_lea.vmem %s0, 568
  %v1553 = vld [vmem:[%s1552] sm:$0xff]
  %s1554 = scalar_lea.vmem %s1, 568
  %1555 = vst [vmem:[%s1554] sm:$0xff] %v1553
  %s1556 = scalar_lea.vmem %s0, 2360
  %v1557 = vld [vmem:[%s1556] sm:$0xff]
  %s1558 = scalar_lea.vmem %s1, 2360
  %1559 = vst [vmem:[%s1558] sm:$0xff] %v1557
  %s1560 = scalar_lea.vmem %s0, 792
  %v1561 = vld [vmem:[%s1560] sm:$0xff]
  %s1562 = scalar_lea.vmem %s1, 792
  %1563 = vst [vmem:[%s1562] sm:$0xff] %v1561
  %s1564 = scalar_lea.vmem %s0, 2584
  %v1565 = vld [vmem:[%s1564] sm:$0xff]
  %s1566 = scalar_lea.vmem %s1, 2584
  %1567 = vst [vmem:[%s1566] sm:$0xff] %v1565
  %s1568 = scalar_lea.vmem %s0, 1016
  %v1569 = vld [vmem:[%s1568] sm:$0xff]
  %s1570 = scalar_lea.vmem %s1, 1016
  %1571 = vst [vmem:[%s1570] sm:$0xff] %v1569
  %s1572 = scalar_lea.vmem %s0, 2808
  %v1573 = vld [vmem:[%s1572] sm:$0xff]
  %s1574 = scalar_lea.vmem %s1, 2808
  %1575 = vst [vmem:[%s1574] sm:$0xff] %v1573
  %s1576 = scalar_lea.vmem %s0, 1240
  %v1577 = vld [vmem:[%s1576] sm:$0xff]
  %s1578 = scalar_lea.vmem %s1, 1240
  %1579 = vst [vmem:[%s1578] sm:$0xff] %v1577
  %s1580 = scalar_lea.vmem %s0, 3032
  %v1581 = vld [vmem:[%s1580] sm:$0xff]
  %s1582 = scalar_lea.vmem %s1, 3032
  %1583 = vst [vmem:[%s1582] sm:$0xff] %v1581
  %s1584 = scalar_lea.vmem %s0, 1464
  %v1585 = vld [vmem:[%s1584] sm:$0xff]
  %s1586 = scalar_lea.vmem %s1, 1464
  %1587 = vst [vmem:[%s1586] sm:$0xff] %v1585
  %s1588 = scalar_lea.vmem %s0, 3256
  %v1589 = vld [vmem:[%s1588] sm:$0xff]
  %s1590 = scalar_lea.vmem %s1, 3256
  %1591 = vst [vmem:[%s1590] sm:$0xff] %v1589
  %s1592 = scalar_lea.vmem %s0, 1688
  %v1593 = vld [vmem:[%s1592] sm:$0xff]
  %s1594 = scalar_lea.vmem %s1, 1688
  %1595 = vst [vmem:[%s1594] sm:$0xff] %v1593
  %s1596 = scalar_lea.vmem %s0, 3480
  %v1597 = vld [vmem:[%s1596] sm:$0xff]
  %s1598 = scalar_lea.vmem %s1, 3480
  %1599 = vst [vmem:[%s1598] sm:$0xff] %v1597
  %s1600 = scalar_lea.vmem %s0, 88
  %v1601 = vld [vmem:[%s1600] sm:$0xff]
  %s1602 = scalar_lea.vmem %s1, 152
  %1603 = vst [vmem:[%s1602] sm:$0xff] %v1601
  %s1604 = scalar_lea.vmem %s0, 1880
  %v1605 = vld [vmem:[%s1604] sm:$0xff]
  %s1606 = scalar_lea.vmem %s1, 1944
  %1607 = vst [vmem:[%s1606] sm:$0xff] %v1605
  %s1608 = scalar_lea.vmem %s0, 312
  %v1609 = vld [vmem:[%s1608] sm:$0xff]
  %s1610 = scalar_lea.vmem %s1, 376
  %1611 = vst [vmem:[%s1610] sm:$0xff] %v1609
  %s1612 = scalar_lea.vmem %s0, 2104
  %v1613 = vld [vmem:[%s1612] sm:$0xff]
  %s1614 = scalar_lea.vmem %s1, 2168
  %1615 = vst [vmem:[%s1614] sm:$0xff] %v1613
  %s1616 = scalar_lea.vmem %s0, 536
  %v1617 = vld [vmem:[%s1616] sm:$0xff]
  %s1618 = scalar_lea.vmem %s1, 600
  %1619 = vst [vmem:[%s1618] sm:$0xff] %v1617
  %s1620 = scalar_lea.vmem %s0, 2328
  %v1621 = vld [vmem:[%s1620] sm:$0xff]
  %s1622 = scalar_lea.vmem %s1, 2392
  %1623 = vst [vmem:[%s1622] sm:$0xff] %v1621
  %s1624 = scalar_lea.vmem %s0, 760
  %v1625 = vld [vmem:[%s1624] sm:$0xff]
  %s1626 = scalar_lea.vmem %s1, 824
  %1627 = vst [vmem:[%s1626] sm:$0xff] %v1625
  %s1628 = scalar_lea.vmem %s0, 2552
  %v1629 = vld [vmem:[%s1628] sm:$0xff]
  %s1630 = scalar_lea.vmem %s1, 2616
  %1631 = vst [vmem:[%s1630] sm:$0xff] %v1629
  %s1632 = scalar_lea.vmem %s0, 984
  %v1633 = vld [vmem:[%s1632] sm:$0xff]
  %s1634 = scalar_lea.vmem %s1, 1048
  %1635 = vst [vmem:[%s1634] sm:$0xff] %v1633
  %s1636 = scalar_lea.vmem %s0, 2776
  %v1637 = vld [vmem:[%s1636] sm:$0xff]
  %s1638 = scalar_lea.vmem %s1, 2840
  %1639 = vst [vmem:[%s1638] sm:$0xff] %v1637
  %s1640 = scalar_lea.vmem %s0, 1208
  %v1641 = vld [vmem:[%s1640] sm:$0xff]
  %s1642 = scalar_lea.vmem %s1, 1272
  %1643 = vst [vmem:[%s1642] sm:$0xff] %v1641
  %s1644 = scalar_lea.vmem %s0, 3000
  %v1645 = vld [vmem:[%s1644] sm:$0xff]
  %s1646 = scalar_lea.vmem %s1, 3064
  %1647 = vst [vmem:[%s1646] sm:$0xff] %v1645
  %s1648 = scalar_lea.vmem %s0, 1432
  %v1649 = vld [vmem:[%s1648] sm:$0xff]
  %s1650 = scalar_lea.vmem %s1, 1496
  %1651 = vst [vmem:[%s1650] sm:$0xff] %v1649
  %s1652 = scalar_lea.vmem %s0, 3224
  %v1653 = vld [vmem:[%s1652] sm:$0xff]
  %s1654 = scalar_lea.vmem %s1, 3288
  %1655 = vst [vmem:[%s1654] sm:$0xff] %v1653
  %s1656 = scalar_lea.vmem %s0, 1656
  %v1657 = vld [vmem:[%s1656] sm:$0xff]
  %s1658 = scalar_lea.vmem %s1, 1720
  %1659 = vst [vmem:[%s1658] sm:$0xff] %v1657
  %s1660 = scalar_lea.vmem %s0, 3448
  %v1661 = vld [vmem:[%s1660] sm:$0xff]
  %s1662 = scalar_lea.vmem %s1, 3512
  %1663 = vst [vmem:[%s1662] sm:$0xff] %v1661
  %s1664 = scalar_lea.vmem %s0, 56
  %v1665 = vld [vmem:[%s1664] sm:$0xff]
  %s1666 = scalar_lea.vmem %s1, 184
  %1667 = vst [vmem:[%s1666] sm:$0xff] %v1665
  %s1668 = scalar_lea.vmem %s0, 1848
  %v1669 = vld [vmem:[%s1668] sm:$0xff]
  %s1670 = scalar_lea.vmem %s1, 1976
  %1671 = vst [vmem:[%s1670] sm:$0xff] %v1669
  %s1672 = scalar_lea.vmem %s0, 280
  %v1673 = vld [vmem:[%s1672] sm:$0xff]
  %s1674 = scalar_lea.vmem %s1, 408
  %1675 = vst [vmem:[%s1674] sm:$0xff] %v1673
  %s1676 = scalar_lea.vmem %s0, 2072
  %v1677 = vld [vmem:[%s1676] sm:$0xff]
  %s1678 = scalar_lea.vmem %s1, 2200
  %1679 = vst [vmem:[%s1678] sm:$0xff] %v1677
  %s1680 = scalar_lea.vmem %s0, 504
  %v1681 = vld [vmem:[%s1680] sm:$0xff]
  %s1682 = scalar_lea.vmem %s1, 632
  %1683 = vst [vmem:[%s1682] sm:$0xff] %v1681
  %s1684 = scalar_lea.vmem %s0, 2296
  %v1685 = vld [vmem:[%s1684] sm:$0xff]
  %s1686 = scalar_lea.vmem %s1, 2424
  %1687 = vst [vmem:[%s1686] sm:$0xff] %v1685
  %s1688 = scalar_lea.vmem %s0, 728
  %v1689 = vld [vmem:[%s1688] sm:$0xff]
  %s1690 = scalar_lea.vmem %s1, 856
  %1691 = vst [vmem:[%s1690] sm:$0xff] %v1689
  %s1692 = scalar_lea.vmem %s0, 2520
  %v1693 = vld [vmem:[%s1692] sm:$0xff]
  %s1694 = scalar_lea.vmem %s1, 2648
  %1695 = vst [vmem:[%s1694] sm:$0xff] %v1693
  %s1696 = scalar_lea.vmem %s0, 952
  %v1697 = vld [vmem:[%s1696] sm:$0xff]
  %s1698 = scalar_lea.vmem %s1, 1080
  %1699 = vst [vmem:[%s1698] sm:$0xff] %v1697
  %s1700 = scalar_lea.vmem %s0, 2744
  %v1701 = vld [vmem:[%s1700] sm:$0xff]
  %s1702 = scalar_lea.vmem %s1, 2872
  %1703 = vst [vmem:[%s1702] sm:$0xff] %v1701
  %s1704 = scalar_lea.vmem %s0, 1176
  %v1705 = vld [vmem:[%s1704] sm:$0xff]
  %s1706 = scalar_lea.vmem %s1, 1304
  %1707 = vst [vmem:[%s1706] sm:$0xff] %v1705
  %s1708 = scalar_lea.vmem %s0, 2968
  %v1709 = vld [vmem:[%s1708] sm:$0xff]
  %s1710 = scalar_lea.vmem %s1, 3096
  %1711 = vst [vmem:[%s1710] sm:$0xff] %v1709
  %s1712 = scalar_lea.vmem %s0, 1400
  %v1713 = vld [vmem:[%s1712] sm:$0xff]
  %s1714 = scalar_lea.vmem %s1, 1528
  %1715 = vst [vmem:[%s1714] sm:$0xff] %v1713
  %s1716 = scalar_lea.vmem %s0, 3192
  %v1717 = vld [vmem:[%s1716] sm:$0xff]
  %s1718 = scalar_lea.vmem %s1, 3320
  %1719 = vst [vmem:[%s1718] sm:$0xff] %v1717
  %s1720 = scalar_lea.vmem %s0, 1624
  %v1721 = vld [vmem:[%s1720] sm:$0xff]
  %s1722 = scalar_lea.vmem %s1, 1752
  %1723 = vst [vmem:[%s1722] sm:$0xff] %v1721
  %s1724 = scalar_lea.vmem %s0, 3416
  %v1725 = vld [vmem:[%s1724] sm:$0xff]
  %s1726 = scalar_lea.vmem %s1, 3544
  %1727 = vst [vmem:[%s1726] sm:$0xff] %v1725
  %s1728 = scalar_lea.vmem %s0, 24
  %v1729 = vld [vmem:[%s1728] sm:$0xff]
  %s1730 = scalar_lea.vmem %s1, 216
  %1731 = vst [vmem:[%s1730] sm:$0xff] %v1729
  %s1732 = scalar_lea.vmem %s0, 1816
  %v1733 = vld [vmem:[%s1732] sm:$0xff]
  %s1734 = scalar_lea.vmem %s1, 2008
  %1735 = vst [vmem:[%s1734] sm:$0xff] %v1733
  %s1736 = scalar_lea.vmem %s0, 248
  %v1737 = vld [vmem:[%s1736] sm:$0xff]
  %s1738 = scalar_lea.vmem %s1, 440
  %1739 = vst [vmem:[%s1738] sm:$0xff] %v1737
  %s1740 = scalar_lea.vmem %s0, 2040
  %v1741 = vld [vmem:[%s1740] sm:$0xff]
  %s1742 = scalar_lea.vmem %s1, 2232
  %1743 = vst [vmem:[%s1742] sm:$0xff] %v1741
  %s1744 = scalar_lea.vmem %s0, 472
  %v1745 = vld [vmem:[%s1744] sm:$0xff]
  %s1746 = scalar_lea.vmem %s1, 664
  %1747 = vst [vmem:[%s1746] sm:$0xff] %v1745
  %s1748 = scalar_lea.vmem %s0, 2264
  %v1749 = vld [vmem:[%s1748] sm:$0xff]
  %s1750 = scalar_lea.vmem %s1, 2456
  %1751 = vst [vmem:[%s1750] sm:$0xff] %v1749
  %s1752 = scalar_lea.vmem %s0, 696
  %v1753 = vld [vmem:[%s1752] sm:$0xff]
  %s1754 = scalar_lea.vmem %s1, 888
  %1755 = vst [vmem:[%s1754] sm:$0xff] %v1753
  %s1756 = scalar_lea.vmem %s0, 2488
  %v1757 = vld [vmem:[%s1756] sm:$0xff]
  %s1758 = scalar_lea.vmem %s1, 2680
  %1759 = vst [vmem:[%s1758] sm:$0xff] %v1757
  %s1760 = scalar_lea.vmem %s0, 920
  %v1761 = vld [vmem:[%s1760] sm:$0xff]
  %s1762 = scalar_lea.vmem %s1, 1112
  %1763 = vst [vmem:[%s1762] sm:$0xff] %v1761
  %s1764 = scalar_lea.vmem %s0, 2712
  %v1765 = vld [vmem:[%s1764] sm:$0xff]
  %s1766 = scalar_lea.vmem %s1, 2904
  %1767 = vst [vmem:[%s1766] sm:$0xff] %v1765
  %s1768 = scalar_lea.vmem %s0, 1144
  %v1769 = vld [vmem:[%s1768] sm:$0xff]
  %s1770 = scalar_lea.vmem %s1, 1336
  %1771 = vst [vmem:[%s1770] sm:$0xff] %v1769
  %s1772 = scalar_lea.vmem %s0, 2936
  %v1773 = vld [vmem:[%s1772] sm:$0xff]
  %s1774 = scalar_lea.vmem %s1, 3128
  %1775 = vst [vmem:[%s1774] sm:$0xff] %v1773
  %s1776 = scalar_lea.vmem %s0, 1368
  %v1777 = vld [vmem:[%s1776] sm:$0xff]
  %s1778 = scalar_lea.vmem %s1, 1560
  %1779 = vst [vmem:[%s1778] sm:$0xff] %v1777
  %s1780 = scalar_lea.vmem %s0, 3160
  %v1781 = vld [vmem:[%s1780] sm:$0xff]
  %s1782 = scalar_lea.vmem %s1, 3352
  %1783 = vst [vmem:[%s1782] sm:$0xff] %v1781
  %s1784 = scalar_lea.vmem %s0, 1592
  %v1785 = vld [vmem:[%s1784] sm:$0xff]
  %s1786 = scalar_lea.vmem %s1, 1784
  %1787 = vst [vmem:[%s1786] sm:$0xff] %v1785
  %s1788 = scalar_lea.vmem %s0, 3384
  %v1789 = vld [vmem:[%s1788] sm:$0xff]
  %s1790 = scalar_lea.vmem %s1, 3576
  %1791 = vst [vmem:[%s1790] sm:$0xff] %v1789

</llo_original>
